<compile_context>
chip_gen: v6e
topology: v6e:2x2x1
jax: 0.10.0
libtpu: 0.0.40
codegen_flags: <defaults>
</compile_context>

<pallas_src>
import functools

import jax
import jax.numpy as jnp
from jax.experimental import pallas as pl
from jax.experimental.pallas import tpu as pltpu


def _round_up(x, m):
    return (x + m - 1) // m * m


def _conv_bn_relu_kernel(xc_ref, xn_ref, w_ref, b_ref, o_ref, xbuf_ref, *, offs, tm):
    # xc_ref:   (TM, Ci_p)  bf16  current row-block of the flattened padded input
    # xn_ref:   (TM, Ci_p)  bf16  next row-block (halo for the tap offsets)
    # w_ref:    (T, Ci_p, Co_p) bf16  per-tap weights with the BN scale folded in
    # b_ref:    (1, Co_p)   f32   folded bias ((conv_bias - mean)*scale + beta)
    # o_ref:    (TM, Co_p)  f32   output row-block
    # xbuf_ref: (2*TM, Ci_p) f32 scratch (current+next, unpacked for cheap shifted reads)
    xbuf_ref[:tm, :] = xc_ref[...].astype(jnp.float32)
    xbuf_ref[tm:, :] = xn_ref[...].astype(jnp.float32)
    acc = jnp.zeros(o_ref.shape, jnp.float32)
    for t, off in enumerate(offs):            # static unroll over the kh*kw taps
        xs = xbuf_ref[off:off + tm, :].astype(jnp.bfloat16)
        acc = acc + jnp.dot(xs, w_ref[t], preferred_element_type=jnp.float32)
    o_ref[...] = jnp.maximum(acc + b_ref[...], 0.0).astype(o_ref.dtype)


@functools.partial(jax.jit, static_argnames=("pad", "eps"))
def basic_block_2d(x, weight, conv_bias, gamma, beta, run_mean, run_var,
                   *, pad=1, eps=1e-5):
    """Conv2d(stride=1, padding=pad) + BatchNorm2d(eval) + ReLU, NCHW in / NCHW out."""
    B, C_in, H, W = x.shape
    C_out, _, kh, kw = weight.shape
    Hp, Wp = H + 2 * pad, W + 2 * pad
    H_out, W_out = Hp - kh + 1, Wp - kw + 1
    T = kh * kw

    Ci_p = _round_up(C_in, 16)     # contraction dim padding (bf16-friendly)
    Co_p = _round_up(C_out, 128)   # lane-dense output stores / MXU N fill

    # ---- activations: NCHW -> NHWC, spatial zero-pad, flatten rows, bf16 ----
    xh = jnp.transpose(x, (0, 2, 3, 1))
    xh = jnp.pad(xh, ((0, 0), (pad, pad), (pad, pad), (0, Ci_p - C_in)))
    xf = xh.reshape(B, Hp * Wp, Ci_p)

    # ---- fold BN(eval) + conv bias; BN scale goes into the weight ----
    scale = gamma / jnp.sqrt(run_var + eps)
    bias = ((conv_bias - run_mean) * scale + beta).astype(jnp.float32)
    wt = weight * scale[:, None, None, None]                     # (Co, Ci, kh, kw)
    wt = jnp.transpose(wt, (2, 3, 1, 0)).reshape(T, C_in, C_out)  # (T, Ci, Co)
    wt = jnp.pad(wt, ((0, 0), (0, Ci_p - C_in), (0, Co_p - C_out))).astype(jnp.bfloat16)
    bias_p = jnp.pad(bias, (0, Co_p - C_out)).reshape(1, Co_p)

    # ---- row tiling: on the padded-width raster every tap is a constant offset ----
    M_out = H_out * Wp                         # outputs computed on width Wp, sliced later
    max_off = (kh - 1) * Wp + (kw - 1)
    TM = max(_round_up(max_off, 16), min(512, _round_up(M_out, 16)))
    M_tiles = -(-M_out // TM)
    Lin_pad = (M_tiles + 1) * TM               # +1 tile so the "next block" halo is in range
    xf = jnp.pad(xf, ((0, 0), (0, Lin_pad - Hp * Wp), (0, 0))).astype(jnp.bfloat16)

    offs = tuple(dh * Wp + dw for dh in range(kh) for dw in range(kw))
    kernel = functools.partial(_conv_bn_relu_kernel, offs=offs, tm=TM)

    out_flat = pl.pallas_call(
        kernel,
        out_shape=jax.ShapeDtypeStruct((B, M_tiles * TM, Co_p), jnp.float32),
        grid_spec=pltpu.PrefetchScalarGridSpec(
            num_scalar_prefetch=0,
            grid=(B, M_tiles),
            in_specs=[
                pl.BlockSpec((None, TM, Ci_p), lambda b, m: (b, m, 0)),
                pl.BlockSpec((None, TM, Ci_p), lambda b, m: (b, m + 1, 0)),
                pl.BlockSpec((T, Ci_p, Co_p), lambda b, m: (0, 0, 0)),
                pl.BlockSpec((1, Co_p), lambda b, m: (0, 0)),
            ],
            out_specs=pl.BlockSpec((None, TM, Co_p), lambda b, m: (b, m, 0)),
            scratch_shapes=[pltpu.VMEM((2 * TM, Ci_p), jnp.float32)],
        ),
        compiler_params=pltpu.CompilerParams(
            dimension_semantics=("parallel", "parallel"),
            vmem_limit_bytes=32 * 1024 * 1024,
        ),
    )(xf, xf, wt, bias_p)

    # ---- back to NCHW; drop padded-width columns and padded channels ----
    out = out_flat[:, :M_out, :C_out].reshape(B, H_out, Wp, C_out)
    out = out[:, :, :W_out, :]
    return jnp.transpose(out, (0, 3, 1, 2))


def _reference(x, weight, conv_bias, gamma, beta, run_mean, run_var,
               *, pad=1, eps=1e-5):
    y = jax.lax.conv_general_dilated(
        x, weight, window_strides=(1, 1), padding=((pad, pad), (pad, pad)),
        dimension_numbers=("NCHW", "OIHW", "NCHW"),
        precision=jax.lax.Precision.HIGHEST)
    y = y + conv_bias[None, :, None, None]
    y = (y - run_mean[None, :, None, None]) / jnp.sqrt(
        run_var[None, :, None, None] + eps)
    y = y * gamma[None, :, None, None] + beta[None, :, None, None]
    return jnp.maximum(y, 0.0)


if __name__ == "__main__":
    B, C_in, C_out, H, W = 2, 4, 8, 16, 16
    kh = kw = 3
    pad = 1
    eps = 1e-5

    key = jax.random.PRNGKey(0)
    k0, k1, k2, k3, k4, k5, k6 = jax.random.split(key, 7)

    x = jax.random.normal(k0, (B, C_in, H, W), dtype=jnp.float32)
    weight = 0.1 * jax.random.normal(k1, (C_out, C_in, kh, kw), dtype=jnp.float32)
    conv_bias = 0.1 * jax.random.normal(k2, (C_out,), dtype=jnp.float32)
    gamma = 1.0 + 0.1 * jax.random.normal(k3, (C_out,), dtype=jnp.float32)
    beta = 0.1 * jax.random.normal(k4, (C_out,), dtype=jnp.float32)
    run_mean = 0.1 * jax.random.normal(k5, (C_out,), dtype=jnp.float32)
    run_var = jnp.abs(1.0 + 0.1 * jax.random.normal(k6, (C_out,), dtype=jnp.float32))

    out = basic_block_2d(x, weight, conv_bias, gamma, beta, run_mean, run_var, pad=pad)
    out = jax.block_until_ready(out)

    # bf16-consistent reference (same input rounding as the kernel, f32 accumulation).
    scale = gamma / jnp.sqrt(run_var + eps)
    w_folded = (weight * scale[:, None, None, None]).astype(jnp.bfloat16).astype(jnp.float32)
    x_bf = x.astype(jnp.bfloat16).astype(jnp.float32)
    bias_f = (conv_bias - run_mean) * scale + beta
    y = jax.lax.conv_general_dilated(
        x_bf, w_folded, window_strides=(1, 1), padding=((pad, pad), (pad, pad)),
        dimension_numbers=("NCHW", "OIHW", "NCHW"),
        precision=jax.lax.Precision.HIGHEST)
    ref_bf = jnp.maximum(y + bias_f[None, :, None, None], 0.0)

    # full-precision (module semantics) reference, looser tolerance for bf16 inputs.
    ref_f32 = _reference(x, weight, conv_bias, gamma, beta, run_mean, run_var,
                         pad=pad, eps=eps)

    assert out.shape == (B, C_out, H, W), out.shape
    assert jnp.allclose(out, ref_bf, atol=2e-3, rtol=2e-3), "mismatch vs bf16-consistent reference"
    assert jnp.allclose(out, ref_f32, atol=6e-2, rtol=6e-2), "mismatch vs f32 reference"

    print("KERNEL_OK")
</pallas_src>

<mosaic_0001>
module attributes {stable_mosaic.version = 11 : i64} {
  func.func @_conv_bn_relu_kernel(%arg0: i32, %arg1: i32, %arg2: memref<1x288x16xbf16, #tpu.memory_space<vmem>>, %arg3: memref<1x288x16xbf16, #tpu.memory_space<vmem>>, %arg4: memref<9x16x128xbf16, #tpu.memory_space<vmem>>, %arg5: memref<1x128xf32, #tpu.memory_space<vmem>>, %arg6: memref<1x288x128xf32, #tpu.memory_space<vmem>>, %arg7: memref<576x16xf32, #tpu.memory_space<vmem>>) attributes {dimension_semantics = [#tpu.dimension_semantics<parallel>, #tpu.dimension_semantics<parallel>], iteration_bounds = array<i64: 2, 1>, scalar_prefetch = 0 : i64, scratch_operands = 1 : i64, tpu.core_type = #tpu.core_type<tc>, window_params = [{transform_indices = @transform_0, window_bounds = array<i64: 1, 288, 16>}, {transform_indices = @transform_1, window_bounds = array<i64: 1, 288, 16>}, {pipeline_mode = #tpu.pipeline_mode<synchronous>, transform_indices = @transform_2, window_bounds = array<i64: 9, 16, 128>}, {pipeline_mode = #tpu.pipeline_mode<synchronous>, transform_indices = @transform_3, window_bounds = array<i64: 1, 128>}, {transform_indices = @transform_4, window_bounds = array<i64: 1, 288, 128>}]} {
    %c0 = arith.constant 0 : index
    %c0_0 = arith.constant 0 : index
    %c0_1 = arith.constant 0 : index
    %0 = vector.load %arg2[%c0, %c0_0, %c0_1] : memref<1x288x16xbf16, #tpu.memory_space<vmem>>, vector<1x288x16xbf16>
    %1 = vector.shape_cast %0 : vector<1x288x16xbf16> to vector<288x16xbf16>
    %2 = arith.extf %1 : vector<288x16xbf16> to vector<288x16xf32>
    %c0_2 = arith.constant 0 : index
    %c0_3 = arith.constant 0 : index
    %3 = vector.load %arg7[%c0_2, %c0_3] : memref<576x16xf32, #tpu.memory_space<vmem>>, vector<288x16xf32>
    tpu.vector_store %arg7[%c0_2, %c0_3], %2 {strides = array<i32>} : memref<576x16xf32, #tpu.memory_space<vmem>>, vector<288x16xf32>,
    %c0_4 = arith.constant 0 : index
    %c0_5 = arith.constant 0 : index
    %c0_6 = arith.constant 0 : index
    %4 = vector.load %arg3[%c0_4, %c0_5, %c0_6] : memref<1x288x16xbf16, #tpu.memory_space<vmem>>, vector<1x288x16xbf16>
    %5 = vector.shape_cast %4 : vector<1x288x16xbf16> to vector<288x16xbf16>
    %6 = arith.extf %5 : vector<288x16xbf16> to vector<288x16xf32>
    %c288 = arith.constant 288 : index
    %c0_7 = arith.constant 0 : index
    %7 = vector.load %arg7[%c288, %c0_7] : memref<576x16xf32, #tpu.memory_space<vmem>>, vector<288x16xf32>
    tpu.vector_store %arg7[%c288, %c0_7], %6 {strides = array<i32>} : memref<576x16xf32, #tpu.memory_space<vmem>>, vector<288x16xf32>,
    %cst = arith.constant 0.000000e+00 : f32
    %8 = vector.broadcast %cst : f32 to vector<288x128xf32>
    %c0_8 = arith.constant 0 : index
    %c0_9 = arith.constant 0 : index
    %9 = vector.load %arg7[%c0_8, %c0_9] : memref<576x16xf32, #tpu.memory_space<vmem>>, vector<288x16xf32>
    %10 = arith.truncf %9 : vector<288x16xf32> to vector<288x16xbf16>
    %c0_10 = arith.constant 0 : index
    %c0_11 = arith.constant 0 : index
    %c0_12 = arith.constant 0 : index
    %11 = vector.load %arg4[%c0_10, %c0_11, %c0_12] : memref<9x16x128xbf16, #tpu.memory_space<vmem>>, vector<1x16x128xbf16>
    %12 = vector.shape_cast %11 : vector<1x16x128xbf16> to vector<16x128xbf16>
    %cst_13 = arith.constant dense<0.000000e+00> : vector<288x128xf32>
    %13 = tpu.matmul %10, %12, %cst_13 {dimension_numbers = #tpu.dot_dimension_numbers<[1], [0], [0], [1], [0, 0, 1, 1], [], []>} : vector<288x16xbf16>, vector<16x128xbf16>, vector<288x128xf32> -> vector<288x128xf32>
    %14 = arith.addf %8, %13 : vector<288x128xf32>
    %c1 = arith.constant 1 : index
    %c0_14 = arith.constant 0 : index
    %15 = vector.load %arg7[%c1, %c0_14] : memref<576x16xf32, #tpu.memory_space<vmem>>, vector<288x16xf32>
    %16 = arith.truncf %15 : vector<288x16xf32> to vector<288x16xbf16>
    %c1_15 = arith.constant 1 : index
    %c0_16 = arith.constant 0 : index
    %c0_17 = arith.constant 0 : index
    %17 = vector.load %arg4[%c1_15, %c0_16, %c0_17] : memref<9x16x128xbf16, #tpu.memory_space<vmem>>, vector<1x16x128xbf16>
    %18 = vector.shape_cast %17 : vector<1x16x128xbf16> to vector<16x128xbf16>
    %cst_18 = arith.constant dense<0.000000e+00> : vector<288x128xf32>
    %19 = tpu.matmul %16, %18, %cst_18 {dimension_numbers = #tpu.dot_dimension_numbers<[1], [0], [0], [1], [0, 0, 1, 1], [], []>} : vector<288x16xbf16>, vector<16x128xbf16>, vector<288x128xf32> -> vector<288x128xf32>
    %20 = arith.addf %14, %19 : vector<288x128xf32>
    %c2 = arith.constant 2 : index
    %c0_19 = arith.constant 0 : index
    %21 = vector.load %arg7[%c2, %c0_19] : memref<576x16xf32, #tpu.memory_space<vmem>>, vector<288x16xf32>
    %22 = arith.truncf %21 : vector<288x16xf32> to vector<288x16xbf16>
    %c2_20 = arith.constant 2 : index
    %c0_21 = arith.constant 0 : index
    %c0_22 = arith.constant 0 : index
    %23 = vector.load %arg4[%c2_20, %c0_21, %c0_22] : memref<9x16x128xbf16, #tpu.memory_space<vmem>>, vector<1x16x128xbf16>
    %24 = vector.shape_cast %23 : vector<1x16x128xbf16> to vector<16x128xbf16>
    %cst_23 = arith.constant dense<0.000000e+00> : vector<288x128xf32>
    %25 = tpu.matmul %22, %24, %cst_23 {dimension_numbers = #tpu.dot_dimension_numbers<[1], [0], [0], [1], [0, 0, 1, 1], [], []>} : vector<288x16xbf16>, vector<16x128xbf16>, vector<288x128xf32> -> vector<288x128xf32>
    %26 = arith.addf %20, %25 : vector<288x128xf32>
    %c18 = arith.constant 18 : index
    %c0_24 = arith.constant 0 : index
    %27 = vector.load %arg7[%c18, %c0_24] : memref<576x16xf32, #tpu.memory_space<vmem>>, vector<288x16xf32>
    %28 = arith.truncf %27 : vector<288x16xf32> to vector<288x16xbf16>
    %c3 = arith.constant 3 : index
    %c0_25 = arith.constant 0 : index
    %c0_26 = arith.constant 0 : index
    %29 = vector.load %arg4[%c3, %c0_25, %c0_26] : memref<9x16x128xbf16, #tpu.memory_space<vmem>>, vector<1x16x128xbf16>
    %30 = vector.shape_cast %29 : vector<1x16x128xbf16> to vector<16x128xbf16>
    %cst_27 = arith.constant dense<0.000000e+00> : vector<288x128xf32>
    %31 = tpu.matmul %28, %30, %cst_27 {dimension_numbers = #tpu.dot_dimension_numbers<[1], [0], [0], [1], [0, 0, 1, 1], [], []>} : vector<288x16xbf16>, vector<16x128xbf16>, vector<288x128xf32> -> vector<288x128xf32>
    %32 = arith.addf %26, %31 : vector<288x128xf32>
    %c19 = arith.constant 19 : index
    %c0_28 = arith.constant 0 : index
    %33 = vector.load %arg7[%c19, %c0_28] : memref<576x16xf32, #tpu.memory_space<vmem>>, vector<288x16xf32>
    %34 = arith.truncf %33 : vector<288x16xf32> to vector<288x16xbf16>
    %c4 = arith.constant 4 : index
    %c0_29 = arith.constant 0 : index
    %c0_30 = arith.constant 0 : index
    %35 = vector.load %arg4[%c4, %c0_29, %c0_30] : memref<9x16x128xbf16, #tpu.memory_space<vmem>>, vector<1x16x128xbf16>
    %36 = vector.shape_cast %35 : vector<1x16x128xbf16> to vector<16x128xbf16>
    %cst_31 = arith.constant dense<0.000000e+00> : vector<288x128xf32>
    %37 = tpu.matmul %34, %36, %cst_31 {dimension_numbers = #tpu.dot_dimension_numbers<[1], [0], [0], [1], [0, 0, 1, 1], [], []>} : vector<288x16xbf16>, vector<16x128xbf16>, vector<288x128xf32> -> vector<288x128xf32>
    %38 = arith.addf %32, %37 : vector<288x128xf32>
    %c20 = arith.constant 20 : index
    %c0_32 = arith.constant 0 : index
    %39 = vector.load %arg7[%c20, %c0_32] : memref<576x16xf32, #tpu.memory_space<vmem>>, vector<288x16xf32>
    %40 = arith.truncf %39 : vector<288x16xf32> to vector<288x16xbf16>
    %c5 = arith.constant 5 : index
    %c0_33 = arith.constant 0 : index
    %c0_34 = arith.constant 0 : index
    %41 = vector.load %arg4[%c5, %c0_33, %c0_34] : memref<9x16x128xbf16, #tpu.memory_space<vmem>>, vector<1x16x128xbf16>
    %42 = vector.shape_cast %41 : vector<1x16x128xbf16> to vector<16x128xbf16>
    %cst_35 = arith.constant dense<0.000000e+00> : vector<288x128xf32>
    %43 = tpu.matmul %40, %42, %cst_35 {dimension_numbers = #tpu.dot_dimension_numbers<[1], [0], [0], [1], [0, 0, 1, 1], [], []>} : vector<288x16xbf16>, vector<16x128xbf16>, vector<288x128xf32> -> vector<288x128xf32>
    %44 = arith.addf %38, %43 : vector<288x128xf32>
    %c36 = arith.constant 36 : index
    %c0_36 = arith.constant 0 : index
    %45 = vector.load %arg7[%c36, %c0_36] : memref<576x16xf32, #tpu.memory_space<vmem>>, vector<288x16xf32>
    %46 = arith.truncf %45 : vector<288x16xf32> to vector<288x16xbf16>
    %c6 = arith.constant 6 : index
    %c0_37 = arith.constant 0 : index
    %c0_38 = arith.constant 0 : index
    %47 = vector.load %arg4[%c6, %c0_37, %c0_38] : memref<9x16x128xbf16, #tpu.memory_space<vmem>>, vector<1x16x128xbf16>
    %48 = vector.shape_cast %47 : vector<1x16x128xbf16> to vector<16x128xbf16>
    %cst_39 = arith.constant dense<0.000000e+00> : vector<288x128xf32>
    %49 = tpu.matmul %46, %48, %cst_39 {dimension_numbers = #tpu.dot_dimension_numbers<[1], [0], [0], [1], [0, 0, 1, 1], [], []>} : vector<288x16xbf16>, vector<16x128xbf16>, vector<288x128xf32> -> vector<288x128xf32>
    %50 = arith.addf %44, %49 : vector<288x128xf32>
    %c37 = arith.constant 37 : index
    %c0_40 = arith.constant 0 : index
    %51 = vector.load %arg7[%c37, %c0_40] : memref<576x16xf32, #tpu.memory_space<vmem>>, vector<288x16xf32>
    %52 = arith.truncf %51 : vector<288x16xf32> to vector<288x16xbf16>
    %c7 = arith.constant 7 : index
    %c0_41 = arith.constant 0 : index
    %c0_42 = arith.constant 0 : index
    %53 = vector.load %arg4[%c7, %c0_41, %c0_42] : memref<9x16x128xbf16, #tpu.memory_space<vmem>>, vector<1x16x128xbf16>
    %54 = vector.shape_cast %53 : vector<1x16x128xbf16> to vector<16x128xbf16>
    %cst_43 = arith.constant dense<0.000000e+00> : vector<288x128xf32>
    %55 = tpu.matmul %52, %54, %cst_43 {dimension_numbers = #tpu.dot_dimension_numbers<[1], [0], [0], [1], [0, 0, 1, 1], [], []>} : vector<288x16xbf16>, vector<16x128xbf16>, vector<288x128xf32> -> vector<288x128xf32>
    %56 = arith.addf %50, %55 : vector<288x128xf32>
    %c38 = arith.constant 38 : index
    %c0_44 = arith.constant 0 : index
    %57 = vector.load %arg7[%c38, %c0_44] : memref<576x16xf32, #tpu.memory_space<vmem>>, vector<288x16xf32>
    %58 = arith.truncf %57 : vector<288x16xf32> to vector<288x16xbf16>
    %c8 = arith.constant 8 : index
    %c0_45 = arith.constant 0 : index
    %c0_46 = arith.constant 0 : index
    %59 = vector.load %arg4[%c8, %c0_45, %c0_46] : memref<9x16x128xbf16, #tpu.memory_space<vmem>>, vector<1x16x128xbf16>
    %60 = vector.shape_cast %59 : vector<1x16x128xbf16> to vector<16x128xbf16>
    %cst_47 = arith.constant dense<0.000000e+00> : vector<288x128xf32>
    %61 = tpu.matmul %58, %60, %cst_47 {dimension_numbers = #tpu.dot_dimension_numbers<[1], [0], [0], [1], [0, 0, 1, 1], [], []>} : vector<288x16xbf16>, vector<16x128xbf16>, vector<288x128xf32> -> vector<288x128xf32>
    %62 = arith.addf %56, %61 : vector<288x128xf32>
    %c0_48 = arith.constant 0 : index
    %c0_49 = arith.constant 0 : index
    %63 = vector.load %arg5[%c0_48, %c0_49] : memref<1x128xf32, #tpu.memory_space<vmem>>, vector<1x128xf32>
    %64 = vector.broadcast %63 : vector<1x128xf32> to vector<288x128xf32>
    %65 = arith.addf %62, %64 : vector<288x128xf32>
    %cst_50 = arith.constant 0.000000e+00 : f32
    %66 = vector.broadcast %cst_50 : f32 to vector<288x128xf32>
    %67 = arith.maximumf %65, %66 : vector<288x128xf32>
    %c0_51 = arith.constant 0 : index
    %c0_52 = arith.constant 0 : index
    %c0_53 = arith.constant 0 : index
    %68 = vector.load %arg6[%c0_51, %c0_52, %c0_53] : memref<1x288x128xf32, #tpu.memory_space<vmem>>, vector<1x288x128xf32>
    %69 = vector.shape_cast %68 : vector<1x288x128xf32> to vector<288x128xf32>
    %70 = vector.shape_cast %67 : vector<288x128xf32> to vector<1x288x128xf32>
    tpu.vector_store %arg6[%c0_51, %c0_52, %c0_53], %70 {strides = array<i32>} : memref<1x288x128xf32, #tpu.memory_space<vmem>>, vector<1x288x128xf32>,
    return
  }
  func.func @transform_0(%arg0: i32, %arg1: i32) -> (i32, i32, i32) {
    %c0_i32 = arith.constant 0 : i32
    %c0_i32_0 = arith.constant 0 : i32
    return %arg0, %arg1, %c0_i32 : i32, i32, i32
  }
  func.func @transform_1(%arg0: i32, %arg1: i32) -> (i32, i32, i32) {
    %c1_i32 = arith.constant 1 : i32
    %0 = arith.addi %arg1, %c1_i32 : i32
    %c0_i32 = arith.constant 0 : i32
    %c0_i32_0 = arith.constant 0 : i32
    return %arg0, %0, %c0_i32 : i32, i32, i32
  }
  func.func @transform_2(%arg0: i32, %arg1: i32) -> (i32, i32, i32) {
    %c0_i32 = arith.constant 0 : i32
    %c0_i32_0 = arith.constant 0 : i32
    %c0_i32_1 = arith.constant 0 : i32
    %c0_i32_2 = arith.constant 0 : i32
    return %c0_i32, %c0_i32_0, %c0_i32_1 : i32, i32, i32
  }
  func.func @transform_3(%arg0: i32, %arg1: i32) -> (i32, i32) {
    %c0_i32 = arith.constant 0 : i32
    %c0_i32_0 = arith.constant 0 : i32
    %c0_i32_1 = arith.constant 0 : i32
    return %c0_i32, %c0_i32_0 : i32, i32
  }
  func.func @transform_4(%arg0: i32, %arg1: i32) -> (i32, i32, i32) {
    %c0_i32 = arith.constant 0 : i32
    %c0_i32_0 = arith.constant 0 : i32
    return %arg0, %arg1, %c0_i32 : i32, i32, i32
  }
}

</mosaic_0001>

<llo_original>
// kernel: basic_block_2d.1
$region0: #{basic_block_2d.1}
  #allocation0 [shape = 'u32[]', space=smem, size = 0x4, offset = 0x4, fixed_abs, tag = 'smem constant byte address 0x4 - core index']
  #allocation1 [shape = 'u32[144,128]{1,0:T(1,128)}', space=vmem, size = 0x12000, scoped, tag = 'internal scratch']
  #allocation2 [shape = 'f32[576,16]{1,0:T(8,128)}', space=vmem, size = 0x48000, scoped, tag = 'scratch operand']
  %s0 = inlined_call_operand.vmem [shape: bf16[2,576,16], index: 0, kind: input, shape index: {}, may-alias: {0,1}]
  %s1 = inlined_call_operand.vmem [shape: bf16[2,576,16], index: 1, kind: input, shape index: {}, may-alias: {0,1}]
  %s2 = inlined_call_operand.vmem [shape: bf16[9,16,128], index: 2, kind: input, shape index: {}]
  %s3 = inlined_call_operand.vmem [shape: f32[1,128], index: 3, kind: input, shape index: {}]
  %s4 = inlined_call_operand.vmem [shape: f32[2,288,128], index: 4, kind: output, shape index: {}]
  %s5 = sld [smem:[#allocation0]]
  $region49: #{basic_block_2d.1} parent=0
    _
  %s7 = ssub.s32 1, %s5
  %s8 = scalar_select 0, %s7, %s5
  loop: start=0, step=1, limit=4
  $region2: #{basic_block_2d.1} parent=0 // loop_pre_header
    _
  $region3: #{basic_block_2d.1} parent=0 // loop_header
    %s10 = sphi 0, %s14
    %p11 = scmp.ge.s32.totalorder %s10, 4
    %s17 = sphi 0, %s29
    %s18 = sphi 0, %s25
    %s19 = sphi 0, %s17
    %s20 = sphi 0, %s18
    %s21 = sphi 0, %s19
    %s22 = sphi 0, %s20
    %s34 = sphi 0, %s36
    %s37 = sphi 0, %s34
    %s38 = sphi 0, %s37
    %s54 = sphi 0, %s38
    %s64 = sphi 0, %s66
    %s67 = sphi 0, %s64
    %s68 = sphi 0, %s67
    %s84 = sphi 0, %s68
    %s88 = sphi 0, %s88
    %s90 = sphi 0, %s88
    %s91 = sphi 0, %s90
    %s105 = sphi 0, %s91
    %s109 = sphi 0, %s109
    %s111 = sphi 0, %s109
    %s112 = sphi 0, %s111
    %s126 = sphi 0, %s112
    %s134 = sphi 0, %s136
    %s137 = sphi 0, %s134
    %s138 = sphi 0, %s137
    %s154 = sphi 0, %s138
  $region4: #{basic_block_2d.1} parent=0 // loop_header_branch
    %13 = sbr.rel (%p11) target = $region8
  $region5: #{basic_block_2d.1} parent=0 // loop_body
    %s15 = ssub.s32 %s10, 1
    %s16 = ssub.s32 %s10, 2
    %s23 = sadd.s32 1, %s18
    %p24 = scmp.ge.s32.totalorder %s23, 1
    %s25 = scalar_select %p24, 0, %s23
    %s26 = sadd.s32 1, %s17
    %s27 = scalar_select %p24, %s26, %s17
    %p28 = scmp.ge.s32.totalorder %s27, 2
    %s29 = scalar_select %p28, 0, %s27
    %s30 = ssub.s32 %s17, %s29
    %s31 = ssub.s32 %s18, %s25
    %s32 = sor.u32 %s30, %s31
    %p33 = scmp.eq.s32.totalorder %s32, 0
    %s35 = sadd.s32 %s34, 1
    %s36 = scalar_select %p33, %s34, %s35
    %p39 = pneg %p33
    %p40 = scmp.eq.s32.totalorder %s10, 1
    %p41 = por %p39, %p40
    %p42 = scmp.ne.s32.totalorder %s34, %s37
    %p43 = scmp.eq.s32.totalorder %s10, 0
    %p44 = por %p42, %p43
    %p45 = scmp.ne.s32.totalorder %s34, %s37
    %p46 = scmp.eq.s32.totalorder %s15, 1
    %p47 = por %p45, %p46
    %p48 = scmp.ne.s32.totalorder %s37, %s38
    %p49 = scmp.eq.s32.totalorder %s15, 0
    %p50 = por %p48, %p49
    %p51 = scmp.ne.s32.totalorder %s37, %s38
    %p52 = scmp.eq.s32.totalorder %s16, 1
    %p53 = por %p51, %p52
    %p55 = scmp.ne.s32.totalorder %s38, %s54
    %p56 = scmp.eq.s32.totalorder %s16, 0
    %p57 = por %p55, %p56
    %s58 = sadd.s32 %s18, 1
    %s59 = sadd.s32 %s25, 1
    %s60 = ssub.s32 %s17, %s29
    %s61 = ssub.s32 %s58, %s59
    %s62 = sor.u32 %s60, %s61
    %p63 = scmp.eq.s32.totalorder %s62, 0
    %s65 = sadd.s32 %s64, 1
    %s66 = scalar_select %p63, %s64, %s65
    %p69 = pneg %p63
    %p70 = scmp.eq.s32.totalorder %s10, 1
    %p71 = por %p69, %p70
    %p72 = scmp.ne.s32.totalorder %s64, %s67
    %p73 = scmp.eq.s32.totalorder %s10, 0
    %p74 = por %p72, %p73
    %p75 = scmp.ne.s32.totalorder %s64, %s67
    %p76 = scmp.eq.s32.totalorder %s15, 1
    %p77 = por %p75, %p76
    %p78 = scmp.ne.s32.totalorder %s67, %s68
    %p79 = scmp.eq.s32.totalorder %s15, 0
    %p80 = por %p78, %p79
    %p81 = scmp.ne.s32.totalorder %s67, %s68
    %p82 = scmp.eq.s32.totalorder %s16, 1
    %p83 = por %p81, %p82
    %p85 = scmp.ne.s32.totalorder %s68, %s84
    %p86 = scmp.eq.s32.totalorder %s16, 0
    %p87 = por %p85, %p86
    %s89 = sadd.s32 %s88, 1
    %p92 = scmp.eq.s32.totalorder %s10, 1
    %p93 = scmp.ne.s32.totalorder %s88, %s90
    %p94 = scmp.eq.s32.totalorder %s10, 0
    %p95 = por %p93, %p94
    %p96 = scmp.ne.s32.totalorder %s88, %s90
    %p97 = scmp.eq.s32.totalorder %s15, 1
    %p98 = por %p96, %p97
    %p99 = scmp.ne.s32.totalorder %s90, %s91
    %p100 = scmp.eq.s32.totalorder %s15, 0
    %p101 = por %p99, %p100
    %p102 = scmp.ne.s32.totalorder %s90, %s91
    %p103 = scmp.eq.s32.totalorder %s16, 1
    %p104 = por %p102, %p103
    %p106 = scmp.ne.s32.totalorder %s91, %s105
    %p107 = scmp.eq.s32.totalorder %s16, 0
    %p108 = por %p106, %p107
    %s110 = sadd.s32 %s109, 1
    %p113 = scmp.eq.s32.totalorder %s10, 1
    %p114 = scmp.ne.s32.totalorder %s109, %s111
    %p115 = scmp.eq.s32.totalorder %s10, 0
    %p116 = por %p114, %p115
    %p117 = scmp.ne.s32.totalorder %s109, %s111
    %p118 = scmp.eq.s32.totalorder %s15, 1
    %p119 = por %p117, %p118
    %p120 = scmp.ne.s32.totalorder %s111, %s112
    %p121 = scmp.eq.s32.totalorder %s15, 0
    %p122 = por %p120, %p121
    %p123 = scmp.ne.s32.totalorder %s111, %s112
    %p124 = scmp.eq.s32.totalorder %s16, 1
    %p125 = por %p123, %p124
    %p127 = scmp.ne.s32.totalorder %s112, %s126
    %p128 = scmp.eq.s32.totalorder %s16, 0
    %p129 = por %p127, %p128
    %s130 = ssub.s32 %s17, %s29
    %s131 = ssub.s32 %s18, %s25
    %s132 = sor.u32 %s130, %s131
    %p133 = scmp.eq.s32.totalorder %s132, 0
    %s135 = sadd.s32 %s134, 1
    %s136 = scalar_select %p133, %s134, %s135
    %p139 = pneg %p133
    %p140 = scmp.eq.s32.totalorder %s10, 1
    %p141 = por %p139, %p140
    %p142 = scmp.ne.s32.totalorder %s134, %s137
    %p143 = scmp.eq.s32.totalorder %s10, 0
    %p144 = por %p142, %p143
    %p145 = scmp.ne.s32.totalorder %s134, %s137
    %p146 = scmp.eq.s32.totalorder %s15, 1
    %p147 = por %p145, %p146
    %p148 = scmp.ne.s32.totalorder %s137, %s138
    %p149 = scmp.eq.s32.totalorder %s15, 0
    %p150 = por %p148, %p149
    %p151 = scmp.ne.s32.totalorder %s137, %s138
    %p152 = scmp.eq.s32.totalorder %s16, 1
    %p153 = por %p151, %p152
    %p155 = scmp.ne.s32.totalorder %s138, %s154
    %p156 = scmp.eq.s32.totalorder %s16, 0
    %p157 = por %p155, %p156
    %p158 = scmp.le.s32.totalorder 1, %s10
    %p159 = scmp.lt.s32.totalorder %s10, 3
    %p160 = pnand %p158, %p159
    %p161 = pneg %p160
    // Predicated region
    $region9: #{basic_block_2d.1} parent=5 // pred_check
      _
    $region10: #{basic_block_2d.1} parent=5 // pred_check_branch
      %163 = sbr.rel (%p160) target = $region12
    $region11: #{basic_block_2d.1} parent=5 // pred_region
      %s164 = ssub.s32 %s10, 1
      // Predicated region
      $region13: #{basic_block_2d.1} parent=11 // pred_check
        %p165 = pneg %p101
      $region14: #{basic_block_2d.1} parent=11 // pred_check_branch
        %167 = sbr.rel (%p165) target = $region16
      $region15: #{basic_block_2d.1} parent=11 // pred_region
        _
      $region16: #{basic_block_2d.1} parent=11 // pred_fallthru
        _
      // Predicated region
      $region17: #{basic_block_2d.1} parent=11 // pred_check
        %p168 = pneg %p122
      $region18: #{basic_block_2d.1} parent=11 // pred_check_branch
        %170 = sbr.rel (%p168) target = $region20
      $region19: #{basic_block_2d.1} parent=11 // pred_region
        _
      $region20: #{basic_block_2d.1} parent=11 // pred_fallthru
        _
    $region12: #{basic_block_2d.1} parent=5 // pred_fallthru
      _
    %p171 = scmp.lt.s32.totalorder %s10, 2
    // Predicated region
    $region21: #{basic_block_2d.1} parent=5 // pred_check
      %p172 = pneg %p171
    $region22: #{basic_block_2d.1} parent=5 // pred_check_branch
      %174 = sbr.rel (%p172) target = $region24
    $region23: #{basic_block_2d.1} parent=5 // pred_region
      // Predicated region
      $region25: #{basic_block_2d.1} parent=23 // pred_check
        %p175 = pneg %p44
      $region26: #{basic_block_2d.1} parent=23 // pred_check_branch
        %177 = sbr.rel (%p175) target = $region28
      $region27: #{basic_block_2d.1} parent=23 // pred_region
        %s178 = smul.u32 36, %s18
        %p179 = scmp.lt.s32.totalorder %s17, 1
        %s180 = scalar_select %p179, %s17, 1
        %p181 = scmp.lt.s32.totalorder %s178, 71
        %s182 = scalar_select %p181, %s178, 71
        %s183 = smul.addr %s180, 72
        %s184 = sadd.s32 %s182, %s183
        %s185 = smul.addr %s184, 4
        %s186 = scalar_lea.vmem %s0, %s185
        %s187 = smul.u32 36, %s18
      $region28: #{basic_block_2d.1} parent=23 // pred_fallthru
        _
      // Predicated region
      $region29: #{basic_block_2d.1} parent=23 // pred_check
        %p188 = pneg %p74
      $region30: #{basic_block_2d.1} parent=23 // pred_check_branch
        %190 = sbr.rel (%p188) target = $region32
      $region31: #{basic_block_2d.1} parent=23 // pred_region
        %s191 = sadd.s32 %s18, 1
        %s192 = smul.u32 36, %s191
        %p193 = scmp.lt.s32.totalorder %s17, 1
        %s194 = scalar_select %p193, %s17, 1
        %p195 = scmp.lt.s32.totalorder %s192, 71
        %s196 = scalar_select %p195, %s192, 71
        %s197 = smul.addr %s194, 72
        %s198 = sadd.s32 %s196, %s197
        %s199 = smul.addr %s198, 4
        %s200 = scalar_lea.vmem %s1, %s199
        %s201 = sadd.s32 %s18, 1
        %s202 = smul.u32 36, %s201
      $region32: #{basic_block_2d.1} parent=23 // pred_fallthru
        _
    $region24: #{basic_block_2d.1} parent=5 // pred_fallthru
      _
    %p203 = scmp.le.s32.totalorder 1, %s10
    %p204 = scmp.lt.s32.totalorder %s10, 3
    %p205 = pnand %p203, %p204
    %p206 = pneg %p205
    // Predicated region
    $region33: #{basic_block_2d.1} parent=5 // pred_check
      _
    $region34: #{basic_block_2d.1} parent=5 // pred_check_branch
      %208 = sbr.rel (%p205) target = $region36
    $region35: #{basic_block_2d.1} parent=5 // pred_region
      %s209 = ssub.s32 %s10, 1
      %s210 = smul.u32 36, %s20
      %p211 = scmp.lt.s32.totalorder %s19, 1
      %s212 = scalar_select %p211, %s19, 1
      %p213 = scmp.lt.s32.totalorder %s210, 71
      %s214 = scalar_select %p213, %s210, 71
      %s215 = smul.addr %s212, 72
      %s216 = sadd.s32 %s214, %s215
      %s217 = smul.addr %s216, 4
      %s218 = scalar_lea.vmem %s0, %s217
      %p219 = pneg %p50
      %p220 = pneg %p47
      %s221 = sadd.s32 %s20, 1
      %s222 = smul.u32 36, %s221
      %p223 = scmp.lt.s32.totalorder %s19, 1
      %s224 = scalar_select %p223, %s19, 1
      %p225 = scmp.lt.s32.totalorder %s222, 71
      %s226 = scalar_select %p225, %s222, 71
      %s227 = smul.addr %s224, 72
      %s228 = sadd.s32 %s226, %s227
      %s229 = smul.addr %s228, 4
      %s230 = scalar_lea.vmem %s1, %s229
      %p231 = pneg %p80
      %p232 = pneg %p77
      %p233 = pneg %p101
      %p234 = pneg %p98
      %p235 = pneg %p122
      %p236 = pneg %p119
      %p237 = pneg %p150
      %p238 = pneg %p147
      %s239 = smul.u32 36, %s20
      %p240 = scmp.lt.s32.totalorder %s19, 1
      %s241 = scalar_select %p240, %s19, 1
      %p242 = scmp.lt.s32.totalorder %s239, 35
      %s243 = scalar_select %p242, %s239, 35
      %s244 = smul.addr %s241, 36
      %s245 = sadd.s32 %s243, %s244
      %s246 = smul.addr %s245, 8
      %s247 = scalar_lea.vmem %s4, %s246
      %s248 = smul.u32 36, %s20
      %p249 = scmp.lt.s32.totalorder %s19, 1
      %s250 = scalar_select %p249, %s19, 1
      %p251 = scmp.lt.s32.totalorder %s248, 71
      %s252 = scalar_select %p251, %s248, 71
      %s253 = smul.addr %s250, 72
      %s254 = sadd.s32 %s252, %s253
      %s255 = smul.addr %s254, 4
      %s256 = scalar_lea.vmem %s0, %s255
      %s257 = smul.u32 36, %s20
      %s258 = sadd.s32 %s20, 1
      %s259 = smul.u32 36, %s258
      %p260 = scmp.lt.s32.totalorder %s19, 1
      %s261 = scalar_select %p260, %s19, 1
      %p262 = scmp.lt.s32.totalorder %s259, 71
      %s263 = scalar_select %p262, %s259, 71
      %s264 = smul.addr %s261, 72
      %s265 = sadd.s32 %s263, %s264
      %s266 = smul.addr %s265, 4
      %s267 = scalar_lea.vmem %s1, %s266
      %s268 = sadd.s32 %s20, 1
      %s269 = smul.u32 36, %s268
      %s270 = smul.u32 36, %s20
      %p271 = scmp.lt.s32.totalorder %s19, 1
      %s272 = scalar_select %p271, %s19, 1
      %p273 = scmp.lt.s32.totalorder %s270, 35
      %s274 = scalar_select %p273, %s270, 35
      %s275 = smul.addr %s272, 36
      %s276 = sadd.s32 %s274, %s275
      %s277 = smul.addr %s276, 8
      %s278 = scalar_lea.vmem %s4, %s277
      %s279 = smul.u32 36, %s20
      %v281 = vld [vmem:[%s256] sm:$0xf]
      %v282 = vld [vmem:[%s256 + $0x4] sm:$0xf]
      %v283 = vld [vmem:[%s256 + $0x8] sm:$0xf]
      %v284 = vld [vmem:[%s256 + $0xc] sm:$0xf]
      %v285 = vld [vmem:[%s256 + $0x10] sm:$0xf]
      %v286 = vld [vmem:[%s256 + $0x14] sm:$0xf]
      %v287 = vld [vmem:[%s256 + $0x18] sm:$0xf]
      %v288 = vld [vmem:[%s256 + $0x1c] sm:$0xf]
      %v289 = vld [vmem:[%s256 + $0x20] sm:$0xf]
      %v290 = vld [vmem:[%s256 + $0x24] sm:$0xf]
      %v291 = vld [vmem:[%s256 + $0x28] sm:$0xf]
      %v292 = vld [vmem:[%s256 + $0x2c] sm:$0xf]
      %v293 = vld [vmem:[%s256 + $0x30] sm:$0xf]
      %v294 = vld [vmem:[%s256 + $0x34] sm:$0xf]
      %v295 = vld [vmem:[%s256 + $0x38] sm:$0xf]
      %v296 = vld [vmem:[%s256 + $0x3c] sm:$0xf]
      %v297 = vld [vmem:[%s256 + $0x40] sm:$0xf]
      %v298 = vld [vmem:[%s256 + $0x44] sm:$0xf]
      %v299 = vld [vmem:[%s256 + $0x48] sm:$0xf]
      %v300 = vld [vmem:[%s256 + $0x4c] sm:$0xf]
      %v301 = vld [vmem:[%s256 + $0x50] sm:$0xf]
      %v302 = vld [vmem:[%s256 + $0x54] sm:$0xf]
      %v303 = vld [vmem:[%s256 + $0x58] sm:$0xf]
      %v304 = vld [vmem:[%s256 + $0x5c] sm:$0xf]
      %v305 = vld [vmem:[%s256 + $0x60] sm:$0xf]
      %v306 = vld [vmem:[%s256 + $0x64] sm:$0xf]
      %v307 = vld [vmem:[%s256 + $0x68] sm:$0xf]
      %v308 = vld [vmem:[%s256 + $0x6c] sm:$0xf]
      %v309 = vld [vmem:[%s256 + $0x70] sm:$0xf]
      %v310 = vld [vmem:[%s256 + $0x74] sm:$0xf]
      %v311 = vld [vmem:[%s256 + $0x78] sm:$0xf]
      %v312 = vld [vmem:[%s256 + $0x7c] sm:$0xf]
      %v313 = vld [vmem:[%s256 + $0x80] sm:$0xf]
      %v314 = vld [vmem:[%s256 + $0x84] sm:$0xf]
      %v315 = vld [vmem:[%s256 + $0x88] sm:$0xf]
      %v316 = vld [vmem:[%s256 + $0x8c] sm:$0xf]
      %v317 = vunpack.c.l.bf16 %v281
      %v318 = vunpack.c.l.bf16 %v282
      %v319 = vunpack.c.l.bf16 %v283
      %v320 = vunpack.c.l.bf16 %v284
      %v321 = vunpack.c.l.bf16 %v285
      %v322 = vunpack.c.l.bf16 %v286
      %v323 = vunpack.c.l.bf16 %v287
      %v324 = vunpack.c.l.bf16 %v288
      %v325 = vunpack.c.l.bf16 %v289
      %v326 = vunpack.c.l.bf16 %v290
      %v327 = vunpack.c.l.bf16 %v291
      %v328 = vunpack.c.l.bf16 %v292
      %v329 = vunpack.c.l.bf16 %v293
      %v330 = vunpack.c.l.bf16 %v294
      %v331 = vunpack.c.l.bf16 %v295
      %v332 = vunpack.c.l.bf16 %v296
      %v333 = vunpack.c.l.bf16 %v297
      %v334 = vunpack.c.l.bf16 %v298
      %v335 = vunpack.c.l.bf16 %v299
      %v336 = vunpack.c.l.bf16 %v300
      %v337 = vunpack.c.l.bf16 %v301
      %v338 = vunpack.c.l.bf16 %v302
      %v339 = vunpack.c.l.bf16 %v303
      %v340 = vunpack.c.l.bf16 %v304
      %v341 = vunpack.c.l.bf16 %v305
      %v342 = vunpack.c.l.bf16 %v306
      %v343 = vunpack.c.l.bf16 %v307
      %v344 = vunpack.c.l.bf16 %v308
      %v345 = vunpack.c.l.bf16 %v309
      %v346 = vunpack.c.l.bf16 %v310
      %v347 = vunpack.c.l.bf16 %v311
      %v348 = vunpack.c.l.bf16 %v312
      %v349 = vunpack.c.l.bf16 %v313
      %v350 = vunpack.c.l.bf16 %v314
      %v351 = vunpack.c.l.bf16 %v315
      %v352 = vunpack.c.l.bf16 %v316
      %vm353 = vcmask 130048
      %354 = vst.msk [vmem:[#allocation2] sm:$0xff] %vm353, %v317
      %355 = vst.msk [vmem:[#allocation2 + $0x8] sm:$0xff] %vm353, %v318
      %356 = vst.msk [vmem:[#allocation2 + $0x10] sm:$0xff] %vm353, %v319
      %357 = vst.msk [vmem:[#allocation2 + $0x18] sm:$0xff] %vm353, %v320
      %358 = vst.msk [vmem:[#allocation2 + $0x20] sm:$0xff] %vm353, %v321
      %359 = vst.msk [vmem:[#allocation2 + $0x28] sm:$0xff] %vm353, %v322
      %360 = vst.msk [vmem:[#allocation2 + $0x30] sm:$0xff] %vm353, %v323
      %361 = vst.msk [vmem:[#allocation2 + $0x38] sm:$0xff] %vm353, %v324
      %362 = vst.msk [vmem:[#allocation2 + $0x40] sm:$0xff] %vm353, %v325
      %363 = vst.msk [vmem:[#allocation2 + $0x48] sm:$0xff] %vm353, %v326
      %364 = vst.msk [vmem:[#allocation2 + $0x50] sm:$0xff] %vm353, %v327
      %365 = vst.msk [vmem:[#allocation2 + $0x58] sm:$0xff] %vm353, %v328
      %366 = vst.msk [vmem:[#allocation2 + $0x60] sm:$0xff] %vm353, %v329
      %367 = vst.msk [vmem:[#allocation2 + $0x68] sm:$0xff] %vm353, %v330
      %368 = vst.msk [vmem:[#allocation2 + $0x70] sm:$0xff] %vm353, %v331
      %369 = vst.msk [vmem:[#allocation2 + $0x78] sm:$0xff] %vm353, %v332
      %370 = vst.msk [vmem:[#allocation2 + $0x80] sm:$0xff] %vm353, %v333
      %371 = vst.msk [vmem:[#allocation2 + $0x88] sm:$0xff] %vm353, %v334
      %372 = vst.msk [vmem:[#allocation2 + $0x90] sm:$0xff] %vm353, %v335
      %373 = vst.msk [vmem:[#allocation2 + $0x98] sm:$0xff] %vm353, %v336
      %374 = vst.msk [vmem:[#allocation2 + $0xa0] sm:$0xff] %vm353, %v337
      %375 = vst.msk [vmem:[#allocation2 + $0xa8] sm:$0xff] %vm353, %v338
      %376 = vst.msk [vmem:[#allocation2 + $0xb0] sm:$0xff] %vm353, %v339
      %377 = vst.msk [vmem:[#allocation2 + $0xb8] sm:$0xff] %vm353, %v340
      %378 = vst.msk [vmem:[#allocation2 + $0xc0] sm:$0xff] %vm353, %v341
      %379 = vst.msk [vmem:[#allocation2 + $0xc8] sm:$0xff] %vm353, %v342
      %380 = vst.msk [vmem:[#allocation2 + $0xd0] sm:$0xff] %vm353, %v343
      %381 = vst.msk [vmem:[#allocation2 + $0xd8] sm:$0xff] %vm353, %v344
      %382 = vst.msk [vmem:[#allocation2 + $0xe0] sm:$0xff] %vm353, %v345
      %383 = vst.msk [vmem:[#allocation2 + $0xe8] sm:$0xff] %vm353, %v346
      %384 = vst.msk [vmem:[#allocation2 + $0xf0] sm:$0xff] %vm353, %v347
      %385 = vst.msk [vmem:[#allocation2 + $0xf8] sm:$0xff] %vm353, %v348
      %386 = vst.msk [vmem:[#allocation2 + $0x100] sm:$0xff] %vm353, %v349
      %387 = vst.msk [vmem:[#allocation2 + $0x108] sm:$0xff] %vm353, %v350
      %388 = vst.msk [vmem:[#allocation2 + $0x110] sm:$0xff] %vm353, %v351
      %389 = vst.msk [vmem:[#allocation2 + $0x118] sm:$0xff] %vm353, %v352
      %v390 = vld [vmem:[%s267] sm:$0xf]
      %v391 = vld [vmem:[%s267 + $0x4] sm:$0xf]
      %v392 = vld [vmem:[%s267 + $0x8] sm:$0xf]
      %v393 = vld [vmem:[%s267 + $0xc] sm:$0xf]
      %v394 = vld [vmem:[%s267 + $0x10] sm:$0xf]
      %v395 = vld [vmem:[%s267 + $0x14] sm:$0xf]
      %v396 = vld [vmem:[%s267 + $0x18] sm:$0xf]
      %v397 = vld [vmem:[%s267 + $0x1c] sm:$0xf]
      %v398 = vld [vmem:[%s267 + $0x20] sm:$0xf]
      %v399 = vld [vmem:[%s267 + $0x24] sm:$0xf]
      %v400 = vld [vmem:[%s267 + $0x28] sm:$0xf]
      %v401 = vld [vmem:[%s267 + $0x2c] sm:$0xf]
      %v402 = vld [vmem:[%s267 + $0x30] sm:$0xf]
      %v403 = vld [vmem:[%s267 + $0x34] sm:$0xf]
      %v404 = vld [vmem:[%s267 + $0x38] sm:$0xf]
      %v405 = vld [vmem:[%s267 + $0x3c] sm:$0xf]
      %v406 = vld [vmem:[%s267 + $0x40] sm:$0xf]
      %v407 = vld [vmem:[%s267 + $0x44] sm:$0xf]
      %v408 = vld [vmem:[%s267 + $0x48] sm:$0xf]
      %v409 = vld [vmem:[%s267 + $0x4c] sm:$0xf]
      %v410 = vld [vmem:[%s267 + $0x50] sm:$0xf]
      %v411 = vld [vmem:[%s267 + $0x54] sm:$0xf]
      %v412 = vld [vmem:[%s267 + $0x58] sm:$0xf]
      %v413 = vld [vmem:[%s267 + $0x5c] sm:$0xf]
      %v414 = vld [vmem:[%s267 + $0x60] sm:$0xf]
      %v415 = vld [vmem:[%s267 + $0x64] sm:$0xf]
      %v416 = vld [vmem:[%s267 + $0x68] sm:$0xf]
      %v417 = vld [vmem:[%s267 + $0x6c] sm:$0xf]
      %v418 = vld [vmem:[%s267 + $0x70] sm:$0xf]
      %v419 = vld [vmem:[%s267 + $0x74] sm:$0xf]
      %v420 = vld [vmem:[%s267 + $0x78] sm:$0xf]
      %v421 = vld [vmem:[%s267 + $0x7c] sm:$0xf]
      %v422 = vld [vmem:[%s267 + $0x80] sm:$0xf]
      %v423 = vld [vmem:[%s267 + $0x84] sm:$0xf]
      %v424 = vld [vmem:[%s267 + $0x88] sm:$0xf]
      %v425 = vld [vmem:[%s267 + $0x8c] sm:$0xf]
      %v426 = vunpack.c.l.bf16 %v390
      %v427 = vunpack.c.l.bf16 %v391
      %v428 = vunpack.c.l.bf16 %v392
      %v429 = vunpack.c.l.bf16 %v393
      %v430 = vunpack.c.l.bf16 %v394
      %v431 = vunpack.c.l.bf16 %v395
      %v432 = vunpack.c.l.bf16 %v396
      %v433 = vunpack.c.l.bf16 %v397
      %v434 = vunpack.c.l.bf16 %v398
      %v435 = vunpack.c.l.bf16 %v399
      %v436 = vunpack.c.l.bf16 %v400
      %v437 = vunpack.c.l.bf16 %v401
      %v438 = vunpack.c.l.bf16 %v402
      %v439 = vunpack.c.l.bf16 %v403
      %v440 = vunpack.c.l.bf16 %v404
      %v441 = vunpack.c.l.bf16 %v405
      %v442 = vunpack.c.l.bf16 %v406
      %v443 = vunpack.c.l.bf16 %v407
      %v444 = vunpack.c.l.bf16 %v408
      %v445 = vunpack.c.l.bf16 %v409
      %v446 = vunpack.c.l.bf16 %v410
      %v447 = vunpack.c.l.bf16 %v411
      %v448 = vunpack.c.l.bf16 %v412
      %v449 = vunpack.c.l.bf16 %v413
      %v450 = vunpack.c.l.bf16 %v414
      %v451 = vunpack.c.l.bf16 %v415
      %v452 = vunpack.c.l.bf16 %v416
      %v453 = vunpack.c.l.bf16 %v417
      %v454 = vunpack.c.l.bf16 %v418
      %v455 = vunpack.c.l.bf16 %v419
      %v456 = vunpack.c.l.bf16 %v420
      %v457 = vunpack.c.l.bf16 %v421
      %v458 = vunpack.c.l.bf16 %v422
      %v459 = vunpack.c.l.bf16 %v423
      %v460 = vunpack.c.l.bf16 %v424
      %v461 = vunpack.c.l.bf16 %v425
      %462 = vst.msk [vmem:[#allocation2 + $0x120] sm:$0xff] %vm353, %v426
      %463 = vst.msk [vmem:[#allocation2 + $0x128] sm:$0xff] %vm353, %v427
      %464 = vst.msk [vmem:[#allocation2 + $0x130] sm:$0xff] %vm353, %v428
      %465 = vst.msk [vmem:[#allocation2 + $0x138] sm:$0xff] %vm353, %v429
      %466 = vst.msk [vmem:[#allocation2 + $0x140] sm:$0xff] %vm353, %v430
      %467 = vst.msk [vmem:[#allocation2 + $0x148] sm:$0xff] %vm353, %v431
      %468 = vst.msk [vmem:[#allocation2 + $0x150] sm:$0xff] %vm353, %v432
      %469 = vst.msk [vmem:[#allocation2 + $0x158] sm:$0xff] %vm353, %v433
      %470 = vst.msk [vmem:[#allocation2 + $0x160] sm:$0xff] %vm353, %v434
      %471 = vst.msk [vmem:[#allocation2 + $0x168] sm:$0xff] %vm353, %v435
      %472 = vst.msk [vmem:[#allocation2 + $0x170] sm:$0xff] %vm353, %v436
      %473 = vst.msk [vmem:[#allocation2 + $0x178] sm:$0xff] %vm353, %v437
      %474 = vst.msk [vmem:[#allocation2 + $0x180] sm:$0xff] %vm353, %v438
      %475 = vst.msk [vmem:[#allocation2 + $0x188] sm:$0xff] %vm353, %v439
      %476 = vst.msk [vmem:[#allocation2 + $0x190] sm:$0xff] %vm353, %v440
      %477 = vst.msk [vmem:[#allocation2 + $0x198] sm:$0xff] %vm353, %v441
      %478 = vst.msk [vmem:[#allocation2 + $0x1a0] sm:$0xff] %vm353, %v442
      %479 = vst.msk [vmem:[#allocation2 + $0x1a8] sm:$0xff] %vm353, %v443
      %480 = vst.msk [vmem:[#allocation2 + $0x1b0] sm:$0xff] %vm353, %v444
      %481 = vst.msk [vmem:[#allocation2 + $0x1b8] sm:$0xff] %vm353, %v445
      %482 = vst.msk [vmem:[#allocation2 + $0x1c0] sm:$0xff] %vm353, %v446
      %483 = vst.msk [vmem:[#allocation2 + $0x1c8] sm:$0xff] %vm353, %v447
      %484 = vst.msk [vmem:[#allocation2 + $0x1d0] sm:$0xff] %vm353, %v448
      %485 = vst.msk [vmem:[#allocation2 + $0x1d8] sm:$0xff] %vm353, %v449
      %486 = vst.msk [vmem:[#allocation2 + $0x1e0] sm:$0xff] %vm353, %v450
      %487 = vst.msk [vmem:[#allocation2 + $0x1e8] sm:$0xff] %vm353, %v451
      %488 = vst.msk [vmem:[#allocation2 + $0x1f0] sm:$0xff] %vm353, %v452
      %489 = vst.msk [vmem:[#allocation2 + $0x1f8] sm:$0xff] %vm353, %v453
      %490 = vst.msk [vmem:[#allocation2 + $0x200] sm:$0xff] %vm353, %v454
      %491 = vst.msk [vmem:[#allocation2 + $0x208] sm:$0xff] %vm353, %v455
      %492 = vst.msk [vmem:[#allocation2 + $0x210] sm:$0xff] %vm353, %v456
      %493 = vst.msk [vmem:[#allocation2 + $0x218] sm:$0xff] %vm353, %v457
      %494 = vst.msk [vmem:[#allocation2 + $0x220] sm:$0xff] %vm353, %v458
      %495 = vst.msk [vmem:[#allocation2 + $0x228] sm:$0xff] %vm353, %v459
      %496 = vst.msk [vmem:[#allocation2 + $0x230] sm:$0xff] %vm353, %v460
      %497 = vst.msk [vmem:[#allocation2 + $0x238] sm:$0xff] %vm353, %v461
      %v498 = vld [vmem:[#allocation2] sm:$0xff]
      %v499 = vld [vmem:[#allocation2 + $0x8] sm:$0xff]
      %v500 = vld [vmem:[#allocation2 + $0x10] sm:$0xff]
      %v501 = vld [vmem:[#allocation2 + $0x18] sm:$0xff]
      %v502 = vld [vmem:[#allocation2 + $0x20] sm:$0xff]
      %v503 = vld [vmem:[#allocation2 + $0x28] sm:$0xff]
      %v504 = vld [vmem:[#allocation2 + $0x30] sm:$0xff]
      %v505 = vld [vmem:[#allocation2 + $0x38] sm:$0xff]
      %v506 = vld [vmem:[#allocation2 + $0x40] sm:$0xff]
      %v507 = vld [vmem:[#allocation2 + $0x48] sm:$0xff]
      %v508 = vld [vmem:[#allocation2 + $0x50] sm:$0xff]
      %v509 = vld [vmem:[#allocation2 + $0x58] sm:$0xff]
      %v510 = vld [vmem:[#allocation2 + $0x60] sm:$0xff]
      %v511 = vld [vmem:[#allocation2 + $0x68] sm:$0xff]
      %v512 = vld [vmem:[#allocation2 + $0x70] sm:$0xff]
      %v513 = vld [vmem:[#allocation2 + $0x78] sm:$0xff]
      %v514 = vld [vmem:[#allocation2 + $0x80] sm:$0xff]
      %v515 = vld [vmem:[#allocation2 + $0x88] sm:$0xff]
      %v516 = vld [vmem:[#allocation2 + $0x90] sm:$0xff]
      %v517 = vld [vmem:[#allocation2 + $0x98] sm:$0xff]
      %v518 = vld [vmem:[#allocation2 + $0xa0] sm:$0xff]
      %v519 = vld [vmem:[#allocation2 + $0xa8] sm:$0xff]
      %v520 = vld [vmem:[#allocation2 + $0xb0] sm:$0xff]
      %v521 = vld [vmem:[#allocation2 + $0xb8] sm:$0xff]
      %v522 = vld [vmem:[#allocation2 + $0xc0] sm:$0xff]
      %v523 = vld [vmem:[#allocation2 + $0xc8] sm:$0xff]
      %v524 = vld [vmem:[#allocation2 + $0xd0] sm:$0xff]
      %v525 = vld [vmem:[#allocation2 + $0xd8] sm:$0xff]
      %v526 = vld [vmem:[#allocation2 + $0xe0] sm:$0xff]
      %v527 = vld [vmem:[#allocation2 + $0xe8] sm:$0xff]
      %v528 = vld [vmem:[#allocation2 + $0xf0] sm:$0xff]
      %v529 = vld [vmem:[#allocation2 + $0xf8] sm:$0xff]
      %v530 = vld [vmem:[#allocation2 + $0x100] sm:$0xff]
      %v531 = vld [vmem:[#allocation2 + $0x108] sm:$0xff]
      %v532 = vld [vmem:[#allocation2 + $0x110] sm:$0xff]
      %v533 = vld [vmem:[#allocation2 + $0x118] sm:$0xff]
      %v534 = vpack.c.bf16 %v499, %v498
      %v535 = vpack.c.bf16 %v501, %v500
      %v536 = vpack.c.bf16 %v503, %v502
      %v537 = vpack.c.bf16 %v505, %v504
      %v538 = vpack.c.bf16 %v507, %v506
      %v539 = vpack.c.bf16 %v509, %v508
      %v540 = vpack.c.bf16 %v511, %v510
      %v541 = vpack.c.bf16 %v513, %v512
      %v542 = vpack.c.bf16 %v515, %v514
      %v543 = vpack.c.bf16 %v517, %v516
      %v544 = vpack.c.bf16 %v519, %v518
      %v545 = vpack.c.bf16 %v521, %v520
      %v546 = vpack.c.bf16 %v523, %v522
      %v547 = vpack.c.bf16 %v525, %v524
      %v548 = vpack.c.bf16 %v527, %v526
      %v549 = vpack.c.bf16 %v529, %v528
      %v550 = vpack.c.bf16 %v531, %v530
      %v551 = vpack.c.bf16 %v533, %v532
      %v552 = vld [vmem:[%s2] sm:$0xf]
      %v553 = vld [vmem:[%s2 + $0x4] sm:$0xf]
      %v554 = vld [vmem:[#allocation2 + $0x1] sm:$0xff]
      %v555 = vld [vmem:[#allocation2 + $0x9] sm:$0xff]
      %v556 = vld [vmem:[#allocation2 + $0x11] sm:$0xff]
      %v557 = vld [vmem:[#allocation2 + $0x19] sm:$0xff]
      %v558 = vld [vmem:[#allocation2 + $0x21] sm:$0xff]
      %v559 = vld [vmem:[#allocation2 + $0x29] sm:$0xff]
      %v560 = vld [vmem:[#allocation2 + $0x31] sm:$0xff]
      %v561 = vld [vmem:[#allocation2 + $0x39] sm:$0xff]
      %v562 = vld [vmem:[#allocation2 + $0x41] sm:$0xff]
      %v563 = vld [vmem:[#allocation2 + $0x49] sm:$0xff]
      %v564 = vld [vmem:[#allocation2 + $0x51] sm:$0xff]
      %v565 = vld [vmem:[#allocation2 + $0x59] sm:$0xff]
      %v566 = vld [vmem:[#allocation2 + $0x61] sm:$0xff]
      %v567 = vld [vmem:[#allocation2 + $0x69] sm:$0xff]
      %v568 = vld [vmem:[#allocation2 + $0x71] sm:$0xff]
      %v569 = vld [vmem:[#allocation2 + $0x79] sm:$0xff]
      %v570 = vld [vmem:[#allocation2 + $0x81] sm:$0xff]
      %v571 = vld [vmem:[#allocation2 + $0x89] sm:$0xff]
      %v572 = vld [vmem:[#allocation2 + $0x91] sm:$0xff]
      %v573 = vld [vmem:[#allocation2 + $0x99] sm:$0xff]
      %v574 = vld [vmem:[#allocation2 + $0xa1] sm:$0xff]
      %v575 = vld [vmem:[#allocation2 + $0xa9] sm:$0xff]
      %v576 = vld [vmem:[#allocation2 + $0xb1] sm:$0xff]
      %v577 = vld [vmem:[#allocation2 + $0xb9] sm:$0xff]
      %v578 = vld [vmem:[#allocation2 + $0xc1] sm:$0xff]
      %v579 = vld [vmem:[#allocation2 + $0xc9] sm:$0xff]
      %v580 = vld [vmem:[#allocation2 + $0xd1] sm:$0xff]
      %v581 = vld [vmem:[#allocation2 + $0xd9] sm:$0xff]
      %v582 = vld [vmem:[#allocation2 + $0xe1] sm:$0xff]
      %v583 = vld [vmem:[#allocation2 + $0xe9] sm:$0xff]
      %v584 = vld [vmem:[#allocation2 + $0xf1] sm:$0xff]
      %v585 = vld [vmem:[#allocation2 + $0xf9] sm:$0xff]
      %v586 = vld [vmem:[#allocation2 + $0x101] sm:$0xff]
      %v587 = vld [vmem:[#allocation2 + $0x109] sm:$0xff]
      %v588 = vld [vmem:[#allocation2 + $0x111] sm:$0xff]
      %v589 = vld [vmem:[#allocation2 + $0x119] sm:$0xff]
      %v590 = vpack.c.bf16 %v555, %v554
      %v591 = vpack.c.bf16 %v557, %v556
      %v592 = vpack.c.bf16 %v559, %v558
      %v593 = vpack.c.bf16 %v561, %v560
      %v594 = vpack.c.bf16 %v563, %v562
      %v595 = vpack.c.bf16 %v565, %v564
      %v596 = vpack.c.bf16 %v567, %v566
      %v597 = vpack.c.bf16 %v569, %v568
      %v598 = vpack.c.bf16 %v571, %v570
      %v599 = vpack.c.bf16 %v573, %v572
      %v600 = vpack.c.bf16 %v575, %v574
      %v601 = vpack.c.bf16 %v577, %v576
      %v602 = vpack.c.bf16 %v579, %v578
      %v603 = vpack.c.bf16 %v581, %v580
      %v604 = vpack.c.bf16 %v583, %v582
      %v605 = vpack.c.bf16 %v585, %v584
      %v606 = vpack.c.bf16 %v587, %v586
      %v607 = vpack.c.bf16 %v589, %v588
      %s608 = scalar_lea.vmem %s2, 8
      %v609 = vld [vmem:[%s608] sm:$0xf]
      %v610 = vld [vmem:[%s608 + $0x4] sm:$0xf]
      %v613 = vunpack.c.l.b16 %v609
      %v614 = vunpack.c.l.b16 %v610
      %v615 = vpack.c.b16 %v614, %v613
      %v618 = vsel %vm353, %v590, 0
      %v621 = vsel %vm353, %v591, 0
      %v624 = vsel %vm353, %v592, 0
      %v627 = vsel %vm353, %v593, 0
      %v630 = vsel %vm353, %v594, 0
      %v633 = vsel %vm353, %v595, 0
      %v636 = vsel %vm353, %v596, 0
      %v639 = vsel %vm353, %v597, 0
      %v642 = vsel %vm353, %v598, 0
      %v645 = vsel %vm353, %v599, 0
      %v648 = vsel %vm353, %v600, 0
      %v651 = vsel %vm353, %v601, 0
      %v654 = vsel %vm353, %v602, 0
      %v657 = vsel %vm353, %v603, 0
      %v660 = vsel %vm353, %v604, 0
      %v663 = vsel %vm353, %v605, 0
      %v666 = vsel %vm353, %v606, 0
      %v669 = vsel %vm353, %v607, 0
      %671 = vmatprep.subr.bf16.mxu0 0
      %672 = vmatpush1.bf16.msra.mxu0 0
      %673 = vmatprep.subr.bf16.mxu0 0
      %674 = vmatpush1.bf16.msra.mxu0 0
      %675 = vmatprep.subr.bf16.mxu0 0
      %676 = vmatpush1.bf16.msra.mxu0 0
      %677 = vmatprep.subr.bf16.mxu0 0
      %678 = vmatpush1.bf16.msra.mxu0 0
      %679 = vmatprep.subr.bf16.mxu0 0
      %680 = vmatpush1.bf16.msra.mxu0 0
      %681 = vmatprep.subr.bf16.mxu0 0
      %682 = vmatpush1.bf16.msra.mxu0 0
      %683 = vmatprep.subr.bf16.mxu0 0
      %684 = vmatpush1.bf16.msra.mxu0 0
      %685 = vmatprep.subr.bf16.mxu0 0
      %686 = vmatpush1.bf16.msra.mxu0 %v615
      %687 = vmatprep.subr.bf16.mxu0 0
      %688 = vmatpush2.bf16.msra.mxu0 0
      %689 = vmatprep.subr.bf16.mxu0 0
      %690 = vmatpush2.bf16.msra.mxu0 0
      %691 = vmatprep.subr.bf16.mxu0 0
      %692 = vmatpush2.bf16.msra.mxu0 0
      %693 = vmatprep.subr.bf16.mxu0 0
      %694 = vmatpush2.bf16.msra.mxu0 0
      %695 = vmatprep.subr.bf16.mxu0 0
      %696 = vmatpush2.bf16.msra.mxu0 0
      %697 = vmatprep.subr.bf16.mxu0 0
      %698 = vmatpush2.bf16.msra.mxu0 0
      %699 = vmatprep.subr.bf16.mxu0 0
      %700 = vmatpush2.bf16.msra.mxu0 0
      %701 = vmatprep.subr.bf16.mxu0 0
      %702 = vmatpush2.bf16.msra.mxu0 0
      %703 = vmatprep.mubr.bf16.mxu0 0
      %704 = vmatmul.mubr.bf16.gmra.mxu0 %v618
      %v705 = vpop.f32.mrf.mxu0
      %v706 = vadd.f32 0.0, %v705
      %v707 = vpop.f32.mrf.mxu0
      %v708 = vpop.f32.mrf.mxu0
      %v709 = vadd.f32 0.0, %v708
      %v710 = vpop.f32.mrf.mxu0
      %711 = vmatprep.mubr.bf16.mxu0 0
      %712 = vmatmul.mubr.bf16.gmra.mxu0 %v621
      %v713 = vpop.f32.mrf.mxu0
      %v714 = vadd.f32 0.0, %v713
      %v715 = vpop.f32.mrf.mxu0
      %v716 = vpop.f32.mrf.mxu0
      %v717 = vadd.f32 0.0, %v716
      %v718 = vpop.f32.mrf.mxu0
      %719 = vmatprep.mubr.bf16.mxu0 0
      %720 = vmatmul.mubr.bf16.gmra.mxu0 %v624
      %v721 = vpop.f32.mrf.mxu0
      %v722 = vadd.f32 0.0, %v721
      %v723 = vpop.f32.mrf.mxu0
      %v724 = vpop.f32.mrf.mxu0
      %v725 = vadd.f32 0.0, %v724
      %v726 = vpop.f32.mrf.mxu0
      %727 = vmatprep.mubr.bf16.mxu0 0
      %728 = vmatmul.mubr.bf16.gmra.mxu0 %v627
      %v729 = vpop.f32.mrf.mxu0
      %v730 = vadd.f32 0.0, %v729
      %v731 = vpop.f32.mrf.mxu0
      %v732 = vpop.f32.mrf.mxu0
      %v733 = vadd.f32 0.0, %v732
      %v734 = vpop.f32.mrf.mxu0
      %735 = vmatprep.mubr.bf16.mxu0 0
      %736 = vmatmul.mubr.bf16.gmra.mxu0 %v630
      %v737 = vpop.f32.mrf.mxu0
      %v738 = vadd.f32 0.0, %v737
      %v739 = vpop.f32.mrf.mxu0
      %v740 = vpop.f32.mrf.mxu0
      %v741 = vadd.f32 0.0, %v740
      %v742 = vpop.f32.mrf.mxu0
      %743 = vmatprep.mubr.bf16.mxu0 0
      %744 = vmatmul.mubr.bf16.gmra.mxu0 %v633
      %v745 = vpop.f32.mrf.mxu0
      %v746 = vadd.f32 0.0, %v745
      %v747 = vpop.f32.mrf.mxu0
      %v748 = vpop.f32.mrf.mxu0
      %v749 = vadd.f32 0.0, %v748
      %v750 = vpop.f32.mrf.mxu0
      %751 = vmatprep.mubr.bf16.mxu0 0
      %752 = vmatmul.mubr.bf16.gmra.mxu0 %v636
      %v753 = vpop.f32.mrf.mxu0
      %v754 = vadd.f32 0.0, %v753
      %v755 = vpop.f32.mrf.mxu0
      %v756 = vpop.f32.mrf.mxu0
      %v757 = vadd.f32 0.0, %v756
      %v758 = vpop.f32.mrf.mxu0
      %759 = vmatprep.mubr.bf16.mxu0 0
      %760 = vmatmul.mubr.bf16.gmra.mxu0 %v639
      %v761 = vpop.f32.mrf.mxu0
      %v762 = vadd.f32 0.0, %v761
      %v763 = vpop.f32.mrf.mxu0
      %v764 = vpop.f32.mrf.mxu0
      %v765 = vadd.f32 0.0, %v764
      %v766 = vpop.f32.mrf.mxu0
      %767 = vmatprep.mubr.bf16.mxu0 0
      %768 = vmatmul.mubr.bf16.gmra.mxu0 %v642
      %v769 = vpop.f32.mrf.mxu0
      %v770 = vadd.f32 0.0, %v769
      %v771 = vpop.f32.mrf.mxu0
      %v772 = vpop.f32.mrf.mxu0
      %v773 = vadd.f32 0.0, %v772
      %v774 = vpop.f32.mrf.mxu0
      %775 = vmatprep.mubr.bf16.mxu0 0
      %776 = vmatmul.mubr.bf16.gmra.mxu0 %v645
      %v777 = vpop.f32.mrf.mxu0
      %v778 = vadd.f32 0.0, %v777
      %v779 = vpop.f32.mrf.mxu0
      %v780 = vpop.f32.mrf.mxu0
      %v781 = vadd.f32 0.0, %v780
      %v782 = vpop.f32.mrf.mxu0
      %783 = vmatprep.mubr.bf16.mxu0 0
      %784 = vmatmul.mubr.bf16.gmra.mxu0 %v648
      %v785 = vpop.f32.mrf.mxu0
      %v786 = vadd.f32 0.0, %v785
      %v787 = vpop.f32.mrf.mxu0
      %v788 = vpop.f32.mrf.mxu0
      %v789 = vadd.f32 0.0, %v788
      %v790 = vpop.f32.mrf.mxu0
      %791 = vmatprep.mubr.bf16.mxu0 0
      %792 = vmatmul.mubr.bf16.gmra.mxu0 %v651
      %v793 = vpop.f32.mrf.mxu0
      %v794 = vadd.f32 0.0, %v793
      %v795 = vpop.f32.mrf.mxu0
      %v796 = vpop.f32.mrf.mxu0
      %v797 = vadd.f32 0.0, %v796
      %v798 = vpop.f32.mrf.mxu0
      %799 = vmatprep.mubr.bf16.mxu0 0
      %800 = vmatmul.mubr.bf16.gmra.mxu0 %v654
      %v801 = vpop.f32.mrf.mxu0
      %v802 = vadd.f32 0.0, %v801
      %v803 = vpop.f32.mrf.mxu0
      %v804 = vpop.f32.mrf.mxu0
      %v805 = vadd.f32 0.0, %v804
      %v806 = vpop.f32.mrf.mxu0
      %807 = vmatprep.mubr.bf16.mxu0 0
      %808 = vmatmul.mubr.bf16.gmra.mxu0 %v657
      %v809 = vpop.f32.mrf.mxu0
      %v810 = vadd.f32 0.0, %v809
      %v811 = vpop.f32.mrf.mxu0
      %v812 = vpop.f32.mrf.mxu0
      %v813 = vadd.f32 0.0, %v812
      %v814 = vpop.f32.mrf.mxu0
      %815 = vmatprep.mubr.bf16.mxu0 0
      %816 = vmatmul.mubr.bf16.gmra.mxu0 %v660
      %v817 = vpop.f32.mrf.mxu0
      %v818 = vadd.f32 0.0, %v817
      %v819 = vpop.f32.mrf.mxu0
      %v820 = vpop.f32.mrf.mxu0
      %v821 = vadd.f32 0.0, %v820
      %v822 = vpop.f32.mrf.mxu0
      %823 = vmatprep.mubr.bf16.mxu0 0
      %824 = vmatmul.mubr.bf16.gmra.mxu0 %v663
      %v825 = vpop.f32.mrf.mxu0
      %v826 = vadd.f32 0.0, %v825
      %v827 = vpop.f32.mrf.mxu0
      %v828 = vpop.f32.mrf.mxu0
      %v829 = vadd.f32 0.0, %v828
      %v830 = vpop.f32.mrf.mxu0
      %831 = vmatprep.mubr.bf16.mxu0 0
      %832 = vmatmul.mubr.bf16.gmra.mxu0 %v666
      %v833 = vpop.f32.mrf.mxu0
      %v834 = vadd.f32 0.0, %v833
      %v835 = vpop.f32.mrf.mxu0
      %v836 = vpop.f32.mrf.mxu0
      %v837 = vadd.f32 0.0, %v836
      %v838 = vpop.f32.mrf.mxu0
      %839 = vmatprep.mubr.bf16.mxu0 0
      %840 = vmatmul.mubr.bf16.gmra.mxu0 %v669
      %v841 = vpop.f32.mrf.mxu0
      %v842 = vadd.f32 0.0, %v841
      %v843 = vpop.f32.mrf.mxu0
      %v844 = vpop.f32.mrf.mxu0
      %v845 = vadd.f32 0.0, %v844
      %v846 = vpop.f32.mrf.mxu0
      %847 = vdwg.mxu0
      %v850 = vunpack.c.l.b16 %v552
      %v851 = vunpack.c.l.b16 %v553
      %v852 = vpack.c.b16 %v851, %v850
      %v855 = vsel %vm353, %v534, 0
      %v858 = vsel %vm353, %v535, 0
      %v861 = vsel %vm353, %v536, 0
      %v864 = vsel %vm353, %v537, 0
      %v867 = vsel %vm353, %v538, 0
      %v870 = vsel %vm353, %v539, 0
      %v873 = vsel %vm353, %v540, 0
      %v876 = vsel %vm353, %v541, 0
      %v879 = vsel %vm353, %v542, 0
      %v882 = vsel %vm353, %v543, 0
      %v885 = vsel %vm353, %v544, 0
      %v888 = vsel %vm353, %v545, 0
      %v891 = vsel %vm353, %v546, 0
      %v894 = vsel %vm353, %v547, 0
      %v897 = vsel %vm353, %v548, 0
      %v900 = vsel %vm353, %v549, 0
      %v903 = vsel %vm353, %v550, 0
      %v906 = vsel %vm353, %v551, 0
      %908 = vmatprep.subr.bf16.mxu0 0
      %909 = vmatpush1.bf16.msra.mxu0 0
      %910 = vmatprep.subr.bf16.mxu0 0
      %911 = vmatpush1.bf16.msra.mxu0 0
      %912 = vmatprep.subr.bf16.mxu0 0
      %913 = vmatpush1.bf16.msra.mxu0 0
      %914 = vmatprep.subr.bf16.mxu0 0
      %915 = vmatpush1.bf16.msra.mxu0 0
      %916 = vmatprep.subr.bf16.mxu0 0
      %917 = vmatpush1.bf16.msra.mxu0 0
      %918 = vmatprep.subr.bf16.mxu0 0
      %919 = vmatpush1.bf16.msra.mxu0 0
      %920 = vmatprep.subr.bf16.mxu0 0
      %921 = vmatpush1.bf16.msra.mxu0 0
      %922 = vmatprep.subr.bf16.mxu0 0
      %923 = vmatpush1.bf16.msra.mxu0 %v852
      %924 = vmatprep.subr.bf16.mxu0 0
      %925 = vmatpush2.bf16.msra.mxu0 0
      %926 = vmatprep.subr.bf16.mxu0 0
      %927 = vmatpush2.bf16.msra.mxu0 0
      %928 = vmatprep.subr.bf16.mxu0 0
      %929 = vmatpush2.bf16.msra.mxu0 0
      %930 = vmatprep.subr.bf16.mxu0 0
      %931 = vmatpush2.bf16.msra.mxu0 0
      %932 = vmatprep.subr.bf16.mxu0 0
      %933 = vmatpush2.bf16.msra.mxu0 0
      %934 = vmatprep.subr.bf16.mxu0 0
      %935 = vmatpush2.bf16.msra.mxu0 0
      %936 = vmatprep.subr.bf16.mxu0 0
      %937 = vmatpush2.bf16.msra.mxu0 0
      %938 = vmatprep.subr.bf16.mxu0 0
      %939 = vmatpush2.bf16.msra.mxu0 0
      %940 = vmatprep.mubr.bf16.mxu0 0
      %941 = vmatmul.mubr.bf16.gmra.mxu0 %v855
      %v942 = vpop.f32.mrf.mxu0
      %v943 = vadd.f32 %v706, %v942
      %v944 = vpop.f32.mrf.mxu0
      %v945 = vpop.f32.mrf.mxu0
      %v946 = vadd.f32 %v709, %v945
      %v947 = vpop.f32.mrf.mxu0
      %948 = vmatprep.mubr.bf16.mxu0 0
      %949 = vmatmul.mubr.bf16.gmra.mxu0 %v858
      %v950 = vpop.f32.mrf.mxu0
      %v951 = vadd.f32 %v714, %v950
      %v952 = vpop.f32.mrf.mxu0
      %v953 = vpop.f32.mrf.mxu0
      %v954 = vadd.f32 %v717, %v953
      %v955 = vpop.f32.mrf.mxu0
      %956 = vmatprep.mubr.bf16.mxu0 0
      %957 = vmatmul.mubr.bf16.gmra.mxu0 %v861
      %v958 = vpop.f32.mrf.mxu0
      %v959 = vadd.f32 %v722, %v958
      %v960 = vpop.f32.mrf.mxu0
      %v961 = vpop.f32.mrf.mxu0
      %v962 = vadd.f32 %v725, %v961
      %v963 = vpop.f32.mrf.mxu0
      %964 = vmatprep.mubr.bf16.mxu0 0
      %965 = vmatmul.mubr.bf16.gmra.mxu0 %v864
      %v966 = vpop.f32.mrf.mxu0
      %v967 = vadd.f32 %v730, %v966
      %v968 = vpop.f32.mrf.mxu0
      %v969 = vpop.f32.mrf.mxu0
      %v970 = vadd.f32 %v733, %v969
      %v971 = vpop.f32.mrf.mxu0
      %972 = vmatprep.mubr.bf16.mxu0 0
      %973 = vmatmul.mubr.bf16.gmra.mxu0 %v867
      %v974 = vpop.f32.mrf.mxu0
      %v975 = vadd.f32 %v738, %v974
      %v976 = vpop.f32.mrf.mxu0
      %v977 = vpop.f32.mrf.mxu0
      %v978 = vadd.f32 %v741, %v977
      %v979 = vpop.f32.mrf.mxu0
      %980 = vmatprep.mubr.bf16.mxu0 0
      %981 = vmatmul.mubr.bf16.gmra.mxu0 %v870
      %v982 = vpop.f32.mrf.mxu0
      %v983 = vadd.f32 %v746, %v982
      %v984 = vpop.f32.mrf.mxu0
      %v985 = vpop.f32.mrf.mxu0
      %v986 = vadd.f32 %v749, %v985
      %v987 = vpop.f32.mrf.mxu0
      %988 = vmatprep.mubr.bf16.mxu0 0
      %989 = vmatmul.mubr.bf16.gmra.mxu0 %v873
      %v990 = vpop.f32.mrf.mxu0
      %v991 = vadd.f32 %v754, %v990
      %v992 = vpop.f32.mrf.mxu0
      %v993 = vpop.f32.mrf.mxu0
      %v994 = vadd.f32 %v757, %v993
      %v995 = vpop.f32.mrf.mxu0
      %996 = vmatprep.mubr.bf16.mxu0 0
      %997 = vmatmul.mubr.bf16.gmra.mxu0 %v876
      %v998 = vpop.f32.mrf.mxu0
      %v999 = vadd.f32 %v762, %v998
      %v1000 = vpop.f32.mrf.mxu0
      %v1001 = vpop.f32.mrf.mxu0
      %v1002 = vadd.f32 %v765, %v1001
      %v1003 = vpop.f32.mrf.mxu0
      %1004 = vmatprep.mubr.bf16.mxu0 0
      %1005 = vmatmul.mubr.bf16.gmra.mxu0 %v879
      %v1006 = vpop.f32.mrf.mxu0
      %v1007 = vadd.f32 %v770, %v1006
      %v1008 = vpop.f32.mrf.mxu0
      %v1009 = vpop.f32.mrf.mxu0
      %v1010 = vadd.f32 %v773, %v1009
      %v1011 = vpop.f32.mrf.mxu0
      %1012 = vmatprep.mubr.bf16.mxu0 0
      %1013 = vmatmul.mubr.bf16.gmra.mxu0 %v882
      %v1014 = vpop.f32.mrf.mxu0
      %v1015 = vadd.f32 %v778, %v1014
      %v1016 = vpop.f32.mrf.mxu0
      %v1017 = vpop.f32.mrf.mxu0
      %v1018 = vadd.f32 %v781, %v1017
      %v1019 = vpop.f32.mrf.mxu0
      %1020 = vmatprep.mubr.bf16.mxu0 0
      %1021 = vmatmul.mubr.bf16.gmra.mxu0 %v885
      %v1022 = vpop.f32.mrf.mxu0
      %v1023 = vadd.f32 %v786, %v1022
      %v1024 = vpop.f32.mrf.mxu0
      %v1025 = vpop.f32.mrf.mxu0
      %v1026 = vadd.f32 %v789, %v1025
      %v1027 = vpop.f32.mrf.mxu0
      %1028 = vmatprep.mubr.bf16.mxu0 0
      %1029 = vmatmul.mubr.bf16.gmra.mxu0 %v888
      %v1030 = vpop.f32.mrf.mxu0
      %v1031 = vadd.f32 %v794, %v1030
      %v1032 = vpop.f32.mrf.mxu0
      %v1033 = vpop.f32.mrf.mxu0
      %v1034 = vadd.f32 %v797, %v1033
      %v1035 = vpop.f32.mrf.mxu0
      %1036 = vmatprep.mubr.bf16.mxu0 0
      %1037 = vmatmul.mubr.bf16.gmra.mxu0 %v891
      %v1038 = vpop.f32.mrf.mxu0
      %v1039 = vadd.f32 %v802, %v1038
      %v1040 = vpop.f32.mrf.mxu0
      %v1041 = vpop.f32.mrf.mxu0
      %v1042 = vadd.f32 %v805, %v1041
      %v1043 = vpop.f32.mrf.mxu0
      %1044 = vmatprep.mubr.bf16.mxu0 0
      %1045 = vmatmul.mubr.bf16.gmra.mxu0 %v894
      %v1046 = vpop.f32.mrf.mxu0
      %v1047 = vadd.f32 %v810, %v1046
      %v1048 = vpop.f32.mrf.mxu0
      %v1049 = vpop.f32.mrf.mxu0
      %v1050 = vadd.f32 %v813, %v1049
      %v1051 = vpop.f32.mrf.mxu0
      %1052 = vmatprep.mubr.bf16.mxu0 0
      %1053 = vmatmul.mubr.bf16.gmra.mxu0 %v897
      %v1054 = vpop.f32.mrf.mxu0
      %v1055 = vadd.f32 %v818, %v1054
      %v1056 = vpop.f32.mrf.mxu0
      %v1057 = vpop.f32.mrf.mxu0
      %v1058 = vadd.f32 %v821, %v1057
      %v1059 = vpop.f32.mrf.mxu0
      %1060 = vmatprep.mubr.bf16.mxu0 0
      %1061 = vmatmul.mubr.bf16.gmra.mxu0 %v900
      %v1062 = vpop.f32.mrf.mxu0
      %v1063 = vadd.f32 %v826, %v1062
      %v1064 = vpop.f32.mrf.mxu0
      %v1065 = vpop.f32.mrf.mxu0
      %v1066 = vadd.f32 %v829, %v1065
      %v1067 = vpop.f32.mrf.mxu0
      %1068 = vmatprep.mubr.bf16.mxu0 0
      %1069 = vmatmul.mubr.bf16.gmra.mxu0 %v903
      %v1070 = vpop.f32.mrf.mxu0
      %v1071 = vadd.f32 %v834, %v1070
      %v1072 = vpop.f32.mrf.mxu0
      %v1073 = vpop.f32.mrf.mxu0
      %v1074 = vadd.f32 %v837, %v1073
      %v1075 = vpop.f32.mrf.mxu0
      %1076 = vmatprep.mubr.bf16.mxu0 0
      %1077 = vmatmul.mubr.bf16.gmra.mxu0 %v906
      %v1078 = vpop.f32.mrf.mxu0
      %v1079 = vadd.f32 %v842, %v1078
      %v1080 = vpop.f32.mrf.mxu0
      %v1081 = vpop.f32.mrf.mxu0
      %v1082 = vadd.f32 %v845, %v1081
      %v1083 = vpop.f32.mrf.mxu0
      %1084 = vdwg.mxu0
      %v1085 = vld [vmem:[#allocation2 + $0x2] sm:$0xff]
      %v1086 = vld [vmem:[#allocation2 + $0xa] sm:$0xff]
      %v1087 = vld [vmem:[#allocation2 + $0x12] sm:$0xff]
      %v1088 = vld [vmem:[#allocation2 + $0x1a] sm:$0xff]
      %v1089 = vld [vmem:[#allocation2 + $0x22] sm:$0xff]
      %v1090 = vld [vmem:[#allocation2 + $0x2a] sm:$0xff]
      %v1091 = vld [vmem:[#allocation2 + $0x32] sm:$0xff]
      %v1092 = vld [vmem:[#allocation2 + $0x3a] sm:$0xff]
      %v1093 = vld [vmem:[#allocation2 + $0x42] sm:$0xff]
      %v1094 = vld [vmem:[#allocation2 + $0x4a] sm:$0xff]
      %v1095 = vld [vmem:[#allocation2 + $0x52] sm:$0xff]
      %v1096 = vld [vmem:[#allocation2 + $0x5a] sm:$0xff]
      %v1097 = vld [vmem:[#allocation2 + $0x62] sm:$0xff]
      %v1098 = vld [vmem:[#allocation2 + $0x6a] sm:$0xff]
      %v1099 = vld [vmem:[#allocation2 + $0x72] sm:$0xff]
      %v1100 = vld [vmem:[#allocation2 + $0x7a] sm:$0xff]
      %v1101 = vld [vmem:[#allocation2 + $0x82] sm:$0xff]
      %v1102 = vld [vmem:[#allocation2 + $0x8a] sm:$0xff]
      %v1103 = vld [vmem:[#allocation2 + $0x92] sm:$0xff]
      %v1104 = vld [vmem:[#allocation2 + $0x9a] sm:$0xff]
      %v1105 = vld [vmem:[#allocation2 + $0xa2] sm:$0xff]
      %v1106 = vld [vmem:[#allocation2 + $0xaa] sm:$0xff]
      %v1107 = vld [vmem:[#allocation2 + $0xb2] sm:$0xff]
      %v1108 = vld [vmem:[#allocation2 + $0xba] sm:$0xff]
      %v1109 = vld [vmem:[#allocation2 + $0xc2] sm:$0xff]
      %v1110 = vld [vmem:[#allocation2 + $0xca] sm:$0xff]
      %v1111 = vld [vmem:[#allocation2 + $0xd2] sm:$0xff]
      %v1112 = vld [vmem:[#allocation2 + $0xda] sm:$0xff]
      %v1113 = vld [vmem:[#allocation2 + $0xe2] sm:$0xff]
      %v1114 = vld [vmem:[#allocation2 + $0xea] sm:$0xff]
      %v1115 = vld [vmem:[#allocation2 + $0xf2] sm:$0xff]
      %v1116 = vld [vmem:[#allocation2 + $0xfa] sm:$0xff]
      %v1117 = vld [vmem:[#allocation2 + $0x102] sm:$0xff]
      %v1118 = vld [vmem:[#allocation2 + $0x10a] sm:$0xff]
      %v1119 = vld [vmem:[#allocation2 + $0x112] sm:$0xff]
      %v1120 = vld [vmem:[#allocation2 + $0x11a] sm:$0xff]
      %v1121 = vpack.c.bf16 %v1086, %v1085
      %v1122 = vpack.c.bf16 %v1088, %v1087
      %v1123 = vpack.c.bf16 %v1090, %v1089
      %v1124 = vpack.c.bf16 %v1092, %v1091
      %v1125 = vpack.c.bf16 %v1094, %v1093
      %v1126 = vpack.c.bf16 %v1096, %v1095
      %v1127 = vpack.c.bf16 %v1098, %v1097
      %v1128 = vpack.c.bf16 %v1100, %v1099
      %v1129 = vpack.c.bf16 %v1102, %v1101
      %v1130 = vpack.c.bf16 %v1104, %v1103
      %v1131 = vpack.c.bf16 %v1106, %v1105
      %v1132 = vpack.c.bf16 %v1108, %v1107
      %v1133 = vpack.c.bf16 %v1110, %v1109
      %v1134 = vpack.c.bf16 %v1112, %v1111
      %v1135 = vpack.c.bf16 %v1114, %v1113
      %v1136 = vpack.c.bf16 %v1116, %v1115
      %v1137 = vpack.c.bf16 %v1118, %v1117
      %v1138 = vpack.c.bf16 %v1120, %v1119
      %s1139 = scalar_lea.vmem %s2, 16
      %v1140 = vld [vmem:[%s1139] sm:$0xf]
      %v1141 = vld [vmem:[%s1139 + $0x4] sm:$0xf]
      %v1144 = vunpack.c.l.b16 %v1140
      %v1145 = vunpack.c.l.b16 %v1141
      %v1146 = vpack.c.b16 %v1145, %v1144
      %v1149 = vsel %vm353, %v1121, 0
      %v1152 = vsel %vm353, %v1122, 0
      %v1155 = vsel %vm353, %v1123, 0
      %v1158 = vsel %vm353, %v1124, 0
      %v1161 = vsel %vm353, %v1125, 0
      %v1164 = vsel %vm353, %v1126, 0
      %v1167 = vsel %vm353, %v1127, 0
      %v1170 = vsel %vm353, %v1128, 0
      %v1173 = vsel %vm353, %v1129, 0
      %v1176 = vsel %vm353, %v1130, 0
      %v1179 = vsel %vm353, %v1131, 0
      %v1182 = vsel %vm353, %v1132, 0
      %v1185 = vsel %vm353, %v1133, 0
      %v1188 = vsel %vm353, %v1134, 0
      %v1191 = vsel %vm353, %v1135, 0
      %v1194 = vsel %vm353, %v1136, 0
      %v1197 = vsel %vm353, %v1137, 0
      %v1200 = vsel %vm353, %v1138, 0
      %1202 = vmatprep.subr.bf16.mxu0 0
      %1203 = vmatpush1.bf16.msra.mxu0 0
      %1204 = vmatprep.subr.bf16.mxu0 0
      %1205 = vmatpush1.bf16.msra.mxu0 0
      %1206 = vmatprep.subr.bf16.mxu0 0
      %1207 = vmatpush1.bf16.msra.mxu0 0
      %1208 = vmatprep.subr.bf16.mxu0 0
      %1209 = vmatpush1.bf16.msra.mxu0 0
      %1210 = vmatprep.subr.bf16.mxu0 0
      %1211 = vmatpush1.bf16.msra.mxu0 0
      %1212 = vmatprep.subr.bf16.mxu0 0
      %1213 = vmatpush1.bf16.msra.mxu0 0
      %1214 = vmatprep.subr.bf16.mxu0 0
      %1215 = vmatpush1.bf16.msra.mxu0 0
      %1216 = vmatprep.subr.bf16.mxu0 0
      %1217 = vmatpush1.bf16.msra.mxu0 %v1146
      %1218 = vmatprep.subr.bf16.mxu0 0
      %1219 = vmatpush2.bf16.msra.mxu0 0
      %1220 = vmatprep.subr.bf16.mxu0 0
      %1221 = vmatpush2.bf16.msra.mxu0 0
      %1222 = vmatprep.subr.bf16.mxu0 0
      %1223 = vmatpush2.bf16.msra.mxu0 0
      %1224 = vmatprep.subr.bf16.mxu0 0
      %1225 = vmatpush2.bf16.msra.mxu0 0
      %1226 = vmatprep.subr.bf16.mxu0 0
      %1227 = vmatpush2.bf16.msra.mxu0 0
      %1228 = vmatprep.subr.bf16.mxu0 0
      %1229 = vmatpush2.bf16.msra.mxu0 0
      %1230 = vmatprep.subr.bf16.mxu0 0
      %1231 = vmatpush2.bf16.msra.mxu0 0
      %1232 = vmatprep.subr.bf16.mxu0 0
      %1233 = vmatpush2.bf16.msra.mxu0 0
      %1234 = vmatprep.mubr.bf16.mxu0 0
      %1235 = vmatmul.mubr.bf16.gmra.mxu0 %v1149
      %v1236 = vpop.f32.mrf.mxu0
      %v1237 = vadd.f32 0.0, %v1236
      %v1238 = vpop.f32.mrf.mxu0
      %v1239 = vpop.f32.mrf.mxu0
      %v1240 = vadd.f32 0.0, %v1239
      %v1241 = vpop.f32.mrf.mxu0
      %1242 = vmatprep.mubr.bf16.mxu0 0
      %1243 = vmatmul.mubr.bf16.gmra.mxu0 %v1152
      %v1244 = vpop.f32.mrf.mxu0
      %v1245 = vadd.f32 0.0, %v1244
      %v1246 = vpop.f32.mrf.mxu0
      %v1247 = vpop.f32.mrf.mxu0
      %v1248 = vadd.f32 0.0, %v1247
      %v1249 = vpop.f32.mrf.mxu0
      %1250 = vmatprep.mubr.bf16.mxu0 0
      %1251 = vmatmul.mubr.bf16.gmra.mxu0 %v1155
      %v1252 = vpop.f32.mrf.mxu0
      %v1253 = vadd.f32 0.0, %v1252
      %v1254 = vpop.f32.mrf.mxu0
      %v1255 = vpop.f32.mrf.mxu0
      %v1256 = vadd.f32 0.0, %v1255
      %v1257 = vpop.f32.mrf.mxu0
      %1258 = vmatprep.mubr.bf16.mxu0 0
      %1259 = vmatmul.mubr.bf16.gmra.mxu0 %v1158
      %v1260 = vpop.f32.mrf.mxu0
      %v1261 = vadd.f32 0.0, %v1260
      %v1262 = vpop.f32.mrf.mxu0
      %v1263 = vpop.f32.mrf.mxu0
      %v1264 = vadd.f32 0.0, %v1263
      %v1265 = vpop.f32.mrf.mxu0
      %1266 = vmatprep.mubr.bf16.mxu0 0
      %1267 = vmatmul.mubr.bf16.gmra.mxu0 %v1161
      %v1268 = vpop.f32.mrf.mxu0
      %v1269 = vadd.f32 0.0, %v1268
      %v1270 = vpop.f32.mrf.mxu0
      %v1271 = vpop.f32.mrf.mxu0
      %v1272 = vadd.f32 0.0, %v1271
      %v1273 = vpop.f32.mrf.mxu0
      %1274 = vmatprep.mubr.bf16.mxu0 0
      %1275 = vmatmul.mubr.bf16.gmra.mxu0 %v1164
      %v1276 = vpop.f32.mrf.mxu0
      %v1277 = vadd.f32 0.0, %v1276
      %v1278 = vpop.f32.mrf.mxu0
      %v1279 = vpop.f32.mrf.mxu0
      %v1280 = vadd.f32 0.0, %v1279
      %v1281 = vpop.f32.mrf.mxu0
      %1282 = vmatprep.mubr.bf16.mxu0 0
      %1283 = vmatmul.mubr.bf16.gmra.mxu0 %v1167
      %v1284 = vpop.f32.mrf.mxu0
      %v1285 = vadd.f32 0.0, %v1284
      %v1286 = vpop.f32.mrf.mxu0
      %v1287 = vpop.f32.mrf.mxu0
      %v1288 = vadd.f32 0.0, %v1287
      %v1289 = vpop.f32.mrf.mxu0
      %1290 = vmatprep.mubr.bf16.mxu0 0
      %1291 = vmatmul.mubr.bf16.gmra.mxu0 %v1170
      %v1292 = vpop.f32.mrf.mxu0
      %v1293 = vadd.f32 0.0, %v1292
      %v1294 = vpop.f32.mrf.mxu0
      %v1295 = vpop.f32.mrf.mxu0
      %v1296 = vadd.f32 0.0, %v1295
      %v1297 = vpop.f32.mrf.mxu0
      %1298 = vmatprep.mubr.bf16.mxu0 0
      %1299 = vmatmul.mubr.bf16.gmra.mxu0 %v1173
      %v1300 = vpop.f32.mrf.mxu0
      %v1301 = vadd.f32 0.0, %v1300
      %v1302 = vpop.f32.mrf.mxu0
      %v1303 = vpop.f32.mrf.mxu0
      %v1304 = vadd.f32 0.0, %v1303
      %v1305 = vpop.f32.mrf.mxu0
      %1306 = vmatprep.mubr.bf16.mxu0 0
      %1307 = vmatmul.mubr.bf16.gmra.mxu0 %v1176
      %v1308 = vpop.f32.mrf.mxu0
      %v1309 = vadd.f32 0.0, %v1308
      %v1310 = vpop.f32.mrf.mxu0
      %v1311 = vpop.f32.mrf.mxu0
      %v1312 = vadd.f32 0.0, %v1311
      %v1313 = vpop.f32.mrf.mxu0
      %1314 = vmatprep.mubr.bf16.mxu0 0
      %1315 = vmatmul.mubr.bf16.gmra.mxu0 %v1179
      %v1316 = vpop.f32.mrf.mxu0
      %v1317 = vadd.f32 0.0, %v1316
      %v1318 = vpop.f32.mrf.mxu0
      %v1319 = vpop.f32.mrf.mxu0
      %v1320 = vadd.f32 0.0, %v1319
      %v1321 = vpop.f32.mrf.mxu0
      %1322 = vmatprep.mubr.bf16.mxu0 0
      %1323 = vmatmul.mubr.bf16.gmra.mxu0 %v1182
      %v1324 = vpop.f32.mrf.mxu0
      %v1325 = vadd.f32 0.0, %v1324
      %v1326 = vpop.f32.mrf.mxu0
      %v1327 = vpop.f32.mrf.mxu0
      %v1328 = vadd.f32 0.0, %v1327
      %v1329 = vpop.f32.mrf.mxu0
      %1330 = vmatprep.mubr.bf16.mxu0 0
      %1331 = vmatmul.mubr.bf16.gmra.mxu0 %v1185
      %v1332 = vpop.f32.mrf.mxu0
      %v1333 = vadd.f32 0.0, %v1332
      %v1334 = vpop.f32.mrf.mxu0
      %v1335 = vpop.f32.mrf.mxu0
      %v1336 = vadd.f32 0.0, %v1335
      %v1337 = vpop.f32.mrf.mxu0
      %1338 = vmatprep.mubr.bf16.mxu0 0
      %1339 = vmatmul.mubr.bf16.gmra.mxu0 %v1188
      %v1340 = vpop.f32.mrf.mxu0
      %v1341 = vadd.f32 0.0, %v1340
      %v1342 = vpop.f32.mrf.mxu0
      %v1343 = vpop.f32.mrf.mxu0
      %v1344 = vadd.f32 0.0, %v1343
      %v1345 = vpop.f32.mrf.mxu0
      %1346 = vmatprep.mubr.bf16.mxu0 0
      %1347 = vmatmul.mubr.bf16.gmra.mxu0 %v1191
      %v1348 = vpop.f32.mrf.mxu0
      %v1349 = vadd.f32 0.0, %v1348
      %v1350 = vpop.f32.mrf.mxu0
      %v1351 = vpop.f32.mrf.mxu0
      %v1352 = vadd.f32 0.0, %v1351
      %v1353 = vpop.f32.mrf.mxu0
      %1354 = vmatprep.mubr.bf16.mxu0 0
      %1355 = vmatmul.mubr.bf16.gmra.mxu0 %v1194
      %v1356 = vpop.f32.mrf.mxu0
      %v1357 = vadd.f32 0.0, %v1356
      %v1358 = vpop.f32.mrf.mxu0
      %v1359 = vpop.f32.mrf.mxu0
      %v1360 = vadd.f32 0.0, %v1359
      %v1361 = vpop.f32.mrf.mxu0
      %1362 = vmatprep.mubr.bf16.mxu0 0
      %1363 = vmatmul.mubr.bf16.gmra.mxu0 %v1197
      %v1364 = vpop.f32.mrf.mxu0
      %v1365 = vadd.f32 0.0, %v1364
      %v1366 = vpop.f32.mrf.mxu0
      %v1367 = vpop.f32.mrf.mxu0
      %v1368 = vadd.f32 0.0, %v1367
      %v1369 = vpop.f32.mrf.mxu0
      %1370 = vmatprep.mubr.bf16.mxu0 0
      %1371 = vmatmul.mubr.bf16.gmra.mxu0 %v1200
      %v1372 = vpop.f32.mrf.mxu0
      %v1373 = vadd.f32 0.0, %v1372
      %v1374 = vpop.f32.mrf.mxu0
      %v1375 = vpop.f32.mrf.mxu0
      %v1376 = vadd.f32 0.0, %v1375
      %v1377 = vpop.f32.mrf.mxu0
      %1378 = vdwg.mxu0
      %v1379 = vadd.f32 %v943, %v1237
      %v1380 = vadd.f32 %v946, %v1240
      %v1381 = vadd.f32 %v951, %v1245
      %v1382 = vadd.f32 %v954, %v1248
      %v1383 = vadd.f32 %v959, %v1253
      %v1384 = vadd.f32 %v962, %v1256
      %v1385 = vadd.f32 %v967, %v1261
      %v1386 = vadd.f32 %v970, %v1264
      %v1387 = vadd.f32 %v975, %v1269
      %v1388 = vadd.f32 %v978, %v1272
      %v1389 = vadd.f32 %v983, %v1277
      %v1390 = vadd.f32 %v986, %v1280
      %v1391 = vadd.f32 %v991, %v1285
      %v1392 = vadd.f32 %v994, %v1288
      %v1393 = vadd.f32 %v999, %v1293
      %v1394 = vadd.f32 %v1002, %v1296
      %v1395 = vadd.f32 %v1007, %v1301
      %v1396 = vadd.f32 %v1010, %v1304
      %v1397 = vadd.f32 %v1015, %v1309
      %v1398 = vadd.f32 %v1018, %v1312
      %v1399 = vadd.f32 %v1023, %v1317
      %v1400 = vadd.f32 %v1026, %v1320
      %v1401 = vadd.f32 %v1031, %v1325
      %v1402 = vadd.f32 %v1034, %v1328
      %v1403 = vadd.f32 %v1039, %v1333
      %v1404 = vadd.f32 %v1042, %v1336
      %v1405 = vadd.f32 %v1047, %v1341
      %v1406 = vadd.f32 %v1050, %v1344
      %v1407 = vadd.f32 %v1055, %v1349
      %v1408 = vadd.f32 %v1058, %v1352
      %v1409 = vadd.f32 %v1063, %v1357
      %v1410 = vadd.f32 %v1066, %v1360
      %v1411 = vadd.f32 %v1071, %v1365
      %v1412 = vadd.f32 %v1074, %v1368
      %v1413 = vadd.f32 %v1079, %v1373
      %v1414 = vadd.f32 %v1082, %v1376
      %v1415 = vld [vmem:[#allocation2 + $0x12] sm:$0xff]
      %v1416 = vld [vmem:[#allocation2 + $0x1a] sm:$0xff]
      %v1417 = vld [vmem:[#allocation2 + $0x22] sm:$0xff]
      %v1418 = vld [vmem:[#allocation2 + $0x2a] sm:$0xff]
      %v1419 = vld [vmem:[#allocation2 + $0x32] sm:$0xff]
      %v1420 = vld [vmem:[#allocation2 + $0x3a] sm:$0xff]
      %v1421 = vld [vmem:[#allocation2 + $0x42] sm:$0xff]
      %v1422 = vld [vmem:[#allocation2 + $0x4a] sm:$0xff]
      %v1423 = vld [vmem:[#allocation2 + $0x52] sm:$0xff]
      %v1424 = vld [vmem:[#allocation2 + $0x5a] sm:$0xff]
      %v1425 = vld [vmem:[#allocation2 + $0x62] sm:$0xff]
      %v1426 = vld [vmem:[#allocation2 + $0x6a] sm:$0xff]
      %v1427 = vld [vmem:[#allocation2 + $0x72] sm:$0xff]
      %v1428 = vld [vmem:[#allocation2 + $0x7a] sm:$0xff]
      %v1429 = vld [vmem:[#allocation2 + $0x82] sm:$0xff]
      %v1430 = vld [vmem:[#allocation2 + $0x8a] sm:$0xff]
      %v1431 = vld [vmem:[#allocation2 + $0x92] sm:$0xff]
      %v1432 = vld [vmem:[#allocation2 + $0x9a] sm:$0xff]
      %v1433 = vld [vmem:[#allocation2 + $0xa2] sm:$0xff]
      %v1434 = vld [vmem:[#allocation2 + $0xaa] sm:$0xff]
      %v1435 = vld [vmem:[#allocation2 + $0xb2] sm:$0xff]
      %v1436 = vld [vmem:[#allocation2 + $0xba] sm:$0xff]
      %v1437 = vld [vmem:[#allocation2 + $0xc2] sm:$0xff]
      %v1438 = vld [vmem:[#allocation2 + $0xca] sm:$0xff]
      %v1439 = vld [vmem:[#allocation2 + $0xd2] sm:$0xff]
      %v1440 = vld [vmem:[#allocation2 + $0xda] sm:$0xff]
      %v1441 = vld [vmem:[#allocation2 + $0xe2] sm:$0xff]
      %v1442 = vld [vmem:[#allocation2 + $0xea] sm:$0xff]
      %v1443 = vld [vmem:[#allocation2 + $0xf2] sm:$0xff]
      %v1444 = vld [vmem:[#allocation2 + $0xfa] sm:$0xff]
      %v1445 = vld [vmem:[#allocation2 + $0x102] sm:$0xff]
      %v1446 = vld [vmem:[#allocation2 + $0x10a] sm:$0xff]
      %v1447 = vld [vmem:[#allocation2 + $0x112] sm:$0xff]
      %v1448 = vld [vmem:[#allocation2 + $0x11a] sm:$0xff]
      %v1449 = vld [vmem:[#allocation2 + $0x122] sm:$0xff]
      %v1450 = vld [vmem:[#allocation2 + $0x12a] sm:$0xff]
      %v1451 = vpack.c.bf16 %v1416, %v1415
      %v1452 = vpack.c.bf16 %v1418, %v1417
      %v1453 = vpack.c.bf16 %v1420, %v1419
      %v1454 = vpack.c.bf16 %v1422, %v1421
      %v1455 = vpack.c.bf16 %v1424, %v1423
      %v1456 = vpack.c.bf16 %v1426, %v1425
      %v1457 = vpack.c.bf16 %v1428, %v1427
      %v1458 = vpack.c.bf16 %v1430, %v1429
      %v1459 = vpack.c.bf16 %v1432, %v1431
      %v1460 = vpack.c.bf16 %v1434, %v1433
      %v1461 = vpack.c.bf16 %v1436, %v1435
      %v1462 = vpack.c.bf16 %v1438, %v1437
      %v1463 = vpack.c.bf16 %v1440, %v1439
      %v1464 = vpack.c.bf16 %v1442, %v1441
      %v1465 = vpack.c.bf16 %v1444, %v1443
      %v1466 = vpack.c.bf16 %v1446, %v1445
      %v1467 = vpack.c.bf16 %v1448, %v1447
      %v1468 = vpack.c.bf16 %v1450, %v1449
      %s1469 = scalar_lea.vmem %s2, 24
      %v1470 = vld [vmem:[%s1469] sm:$0xf]
      %v1471 = vld [vmem:[%s1469 + $0x4] sm:$0xf]
      %v1474 = vunpack.c.l.b16 %v1470
      %v1475 = vunpack.c.l.b16 %v1471
      %v1476 = vpack.c.b16 %v1475, %v1474
      %v1479 = vsel %vm353, %v1451, 0
      %v1482 = vsel %vm353, %v1452, 0
      %v1485 = vsel %vm353, %v1453, 0
      %v1488 = vsel %vm353, %v1454, 0
      %v1491 = vsel %vm353, %v1455, 0
      %v1494 = vsel %vm353, %v1456, 0
      %v1497 = vsel %vm353, %v1457, 0
      %v1500 = vsel %vm353, %v1458, 0
      %v1503 = vsel %vm353, %v1459, 0
      %v1506 = vsel %vm353, %v1460, 0
      %v1509 = vsel %vm353, %v1461, 0
      %v1512 = vsel %vm353, %v1462, 0
      %v1515 = vsel %vm353, %v1463, 0
      %v1518 = vsel %vm353, %v1464, 0
      %v1521 = vsel %vm353, %v1465, 0
      %v1524 = vsel %vm353, %v1466, 0
      %v1527 = vsel %vm353, %v1467, 0
      %v1530 = vsel %vm353, %v1468, 0
      %1532 = vmatprep.subr.bf16.mxu0 0
      %1533 = vmatpush1.bf16.msra.mxu0 0
      %1534 = vmatprep.subr.bf16.mxu0 0
      %1535 = vmatpush1.bf16.msra.mxu0 0
      %1536 = vmatprep.subr.bf16.mxu0 0
      %1537 = vmatpush1.bf16.msra.mxu0 0
      %1538 = vmatprep.subr.bf16.mxu0 0
      %1539 = vmatpush1.bf16.msra.mxu0 0
      %1540 = vmatprep.subr.bf16.mxu0 0
      %1541 = vmatpush1.bf16.msra.mxu0 0
      %1542 = vmatprep.subr.bf16.mxu0 0
      %1543 = vmatpush1.bf16.msra.mxu0 0
      %1544 = vmatprep.subr.bf16.mxu0 0
      %1545 = vmatpush1.bf16.msra.mxu0 0
      %1546 = vmatprep.subr.bf16.mxu0 0
      %1547 = vmatpush1.bf16.msra.mxu0 %v1476
      %1548 = vmatprep.subr.bf16.mxu0 0
      %1549 = vmatpush2.bf16.msra.mxu0 0
      %1550 = vmatprep.subr.bf16.mxu0 0
      %1551 = vmatpush2.bf16.msra.mxu0 0
      %1552 = vmatprep.subr.bf16.mxu0 0
      %1553 = vmatpush2.bf16.msra.mxu0 0
      %1554 = vmatprep.subr.bf16.mxu0 0
      %1555 = vmatpush2.bf16.msra.mxu0 0
      %1556 = vmatprep.subr.bf16.mxu0 0
      %1557 = vmatpush2.bf16.msra.mxu0 0
      %1558 = vmatprep.subr.bf16.mxu0 0
      %1559 = vmatpush2.bf16.msra.mxu0 0
      %1560 = vmatprep.subr.bf16.mxu0 0
      %1561 = vmatpush2.bf16.msra.mxu0 0
      %1562 = vmatprep.subr.bf16.mxu0 0
      %1563 = vmatpush2.bf16.msra.mxu0 0
      %1564 = vmatprep.mubr.bf16.mxu0 0
      %1565 = vmatmul.mubr.bf16.gmra.mxu0 %v1479
      %v1566 = vpop.f32.mrf.mxu0
      %v1567 = vadd.f32 0.0, %v1566
      %v1568 = vpop.f32.mrf.mxu0
      %v1569 = vpop.f32.mrf.mxu0
      %v1570 = vadd.f32 0.0, %v1569
      %v1571 = vpop.f32.mrf.mxu0
      %1572 = vmatprep.mubr.bf16.mxu0 0
      %1573 = vmatmul.mubr.bf16.gmra.mxu0 %v1482
      %v1574 = vpop.f32.mrf.mxu0
      %v1575 = vadd.f32 0.0, %v1574
      %v1576 = vpop.f32.mrf.mxu0
      %v1577 = vpop.f32.mrf.mxu0
      %v1578 = vadd.f32 0.0, %v1577
      %v1579 = vpop.f32.mrf.mxu0
      %1580 = vmatprep.mubr.bf16.mxu0 0
      %1581 = vmatmul.mubr.bf16.gmra.mxu0 %v1485
      %v1582 = vpop.f32.mrf.mxu0
      %v1583 = vadd.f32 0.0, %v1582
      %v1584 = vpop.f32.mrf.mxu0
      %v1585 = vpop.f32.mrf.mxu0
      %v1586 = vadd.f32 0.0, %v1585
      %v1587 = vpop.f32.mrf.mxu0
      %1588 = vmatprep.mubr.bf16.mxu0 0
      %1589 = vmatmul.mubr.bf16.gmra.mxu0 %v1488
      %v1590 = vpop.f32.mrf.mxu0
      %v1591 = vadd.f32 0.0, %v1590
      %v1592 = vpop.f32.mrf.mxu0
      %v1593 = vpop.f32.mrf.mxu0
      %v1594 = vadd.f32 0.0, %v1593
      %v1595 = vpop.f32.mrf.mxu0
      %1596 = vmatprep.mubr.bf16.mxu0 0
      %1597 = vmatmul.mubr.bf16.gmra.mxu0 %v1491
      %v1598 = vpop.f32.mrf.mxu0
      %v1599 = vadd.f32 0.0, %v1598
      %v1600 = vpop.f32.mrf.mxu0
      %v1601 = vpop.f32.mrf.mxu0
      %v1602 = vadd.f32 0.0, %v1601
      %v1603 = vpop.f32.mrf.mxu0
      %1604 = vmatprep.mubr.bf16.mxu0 0
      %1605 = vmatmul.mubr.bf16.gmra.mxu0 %v1494
      %v1606 = vpop.f32.mrf.mxu0
      %v1607 = vadd.f32 0.0, %v1606
      %v1608 = vpop.f32.mrf.mxu0
      %v1609 = vpop.f32.mrf.mxu0
      %v1610 = vadd.f32 0.0, %v1609
      %v1611 = vpop.f32.mrf.mxu0
      %1612 = vmatprep.mubr.bf16.mxu0 0
      %1613 = vmatmul.mubr.bf16.gmra.mxu0 %v1497
      %v1614 = vpop.f32.mrf.mxu0
      %v1615 = vadd.f32 0.0, %v1614
      %v1616 = vpop.f32.mrf.mxu0
      %v1617 = vpop.f32.mrf.mxu0
      %v1618 = vadd.f32 0.0, %v1617
      %v1619 = vpop.f32.mrf.mxu0
      %1620 = vmatprep.mubr.bf16.mxu0 0
      %1621 = vmatmul.mubr.bf16.gmra.mxu0 %v1500
      %v1622 = vpop.f32.mrf.mxu0
      %v1623 = vadd.f32 0.0, %v1622
      %v1624 = vpop.f32.mrf.mxu0
      %v1625 = vpop.f32.mrf.mxu0
      %v1626 = vadd.f32 0.0, %v1625
      %v1627 = vpop.f32.mrf.mxu0
      %1628 = vmatprep.mubr.bf16.mxu0 0
      %1629 = vmatmul.mubr.bf16.gmra.mxu0 %v1503
      %v1630 = vpop.f32.mrf.mxu0
      %v1631 = vadd.f32 0.0, %v1630
      %v1632 = vpop.f32.mrf.mxu0
      %v1633 = vpop.f32.mrf.mxu0
      %v1634 = vadd.f32 0.0, %v1633
      %v1635 = vpop.f32.mrf.mxu0
      %1636 = vmatprep.mubr.bf16.mxu0 0
      %1637 = vmatmul.mubr.bf16.gmra.mxu0 %v1506
      %v1638 = vpop.f32.mrf.mxu0
      %v1639 = vadd.f32 0.0, %v1638
      %v1640 = vpop.f32.mrf.mxu0
      %v1641 = vpop.f32.mrf.mxu0
      %v1642 = vadd.f32 0.0, %v1641
      %v1643 = vpop.f32.mrf.mxu0
      %1644 = vmatprep.mubr.bf16.mxu0 0
      %1645 = vmatmul.mubr.bf16.gmra.mxu0 %v1509
      %v1646 = vpop.f32.mrf.mxu0
      %v1647 = vadd.f32 0.0, %v1646
      %v1648 = vpop.f32.mrf.mxu0
      %v1649 = vpop.f32.mrf.mxu0
      %v1650 = vadd.f32 0.0, %v1649
      %v1651 = vpop.f32.mrf.mxu0
      %1652 = vmatprep.mubr.bf16.mxu0 0
      %1653 = vmatmul.mubr.bf16.gmra.mxu0 %v1512
      %v1654 = vpop.f32.mrf.mxu0
      %v1655 = vadd.f32 0.0, %v1654
      %v1656 = vpop.f32.mrf.mxu0
      %v1657 = vpop.f32.mrf.mxu0
      %v1658 = vadd.f32 0.0, %v1657
      %v1659 = vpop.f32.mrf.mxu0
      %1660 = vmatprep.mubr.bf16.mxu0 0
      %1661 = vmatmul.mubr.bf16.gmra.mxu0 %v1515
      %v1662 = vpop.f32.mrf.mxu0
      %v1663 = vadd.f32 0.0, %v1662
      %v1664 = vpop.f32.mrf.mxu0
      %v1665 = vpop.f32.mrf.mxu0
      %v1666 = vadd.f32 0.0, %v1665
      %v1667 = vpop.f32.mrf.mxu0
      %1668 = vmatprep.mubr.bf16.mxu0 0
      %1669 = vmatmul.mubr.bf16.gmra.mxu0 %v1518
      %v1670 = vpop.f32.mrf.mxu0
      %v1671 = vadd.f32 0.0, %v1670
      %v1672 = vpop.f32.mrf.mxu0
      %v1673 = vpop.f32.mrf.mxu0
      %v1674 = vadd.f32 0.0, %v1673
      %v1675 = vpop.f32.mrf.mxu0
      %1676 = vmatprep.mubr.bf16.mxu0 0
      %1677 = vmatmul.mubr.bf16.gmra.mxu0 %v1521
      %v1678 = vpop.f32.mrf.mxu0
      %v1679 = vadd.f32 0.0, %v1678
      %v1680 = vpop.f32.mrf.mxu0
      %v1681 = vpop.f32.mrf.mxu0
      %v1682 = vadd.f32 0.0, %v1681
      %v1683 = vpop.f32.mrf.mxu0
      %1684 = vmatprep.mubr.bf16.mxu0 0
      %1685 = vmatmul.mubr.bf16.gmra.mxu0 %v1524
      %v1686 = vpop.f32.mrf.mxu0
      %v1687 = vadd.f32 0.0, %v1686
      %v1688 = vpop.f32.mrf.mxu0
      %v1689 = vpop.f32.mrf.mxu0
      %v1690 = vadd.f32 0.0, %v1689
      %v1691 = vpop.f32.mrf.mxu0
      %1692 = vmatprep.mubr.bf16.mxu0 0
      %1693 = vmatmul.mubr.bf16.gmra.mxu0 %v1527
      %v1694 = vpop.f32.mrf.mxu0
      %v1695 = vadd.f32 0.0, %v1694
      %v1696 = vpop.f32.mrf.mxu0
      %v1697 = vpop.f32.mrf.mxu0
      %v1698 = vadd.f32 0.0, %v1697
      %v1699 = vpop.f32.mrf.mxu0
      %1700 = vmatprep.mubr.bf16.mxu0 0
      %1701 = vmatmul.mubr.bf16.gmra.mxu0 %v1530
      %v1702 = vpop.f32.mrf.mxu0
      %v1703 = vadd.f32 0.0, %v1702
      %v1704 = vpop.f32.mrf.mxu0
      %v1705 = vpop.f32.mrf.mxu0
      %v1706 = vadd.f32 0.0, %v1705
      %v1707 = vpop.f32.mrf.mxu0
      %1708 = vdwg.mxu0
      %v1709 = vadd.f32 %v1379, %v1567
      %v1710 = vadd.f32 %v1380, %v1570
      %v1711 = vadd.f32 %v1381, %v1575
      %v1712 = vadd.f32 %v1382, %v1578
      %v1713 = vadd.f32 %v1383, %v1583
      %v1714 = vadd.f32 %v1384, %v1586
      %v1715 = vadd.f32 %v1385, %v1591
      %v1716 = vadd.f32 %v1386, %v1594
      %v1717 = vadd.f32 %v1387, %v1599
      %v1718 = vadd.f32 %v1388, %v1602
      %v1719 = vadd.f32 %v1389, %v1607
      %v1720 = vadd.f32 %v1390, %v1610
      %v1721 = vadd.f32 %v1391, %v1615
      %v1722 = vadd.f32 %v1392, %v1618
      %v1723 = vadd.f32 %v1393, %v1623
      %v1724 = vadd.f32 %v1394, %v1626
      %v1725 = vadd.f32 %v1395, %v1631
      %v1726 = vadd.f32 %v1396, %v1634
      %v1727 = vadd.f32 %v1397, %v1639
      %v1728 = vadd.f32 %v1398, %v1642
      %v1729 = vadd.f32 %v1399, %v1647
      %v1730 = vadd.f32 %v1400, %v1650
      %v1731 = vadd.f32 %v1401, %v1655
      %v1732 = vadd.f32 %v1402, %v1658
      %v1733 = vadd.f32 %v1403, %v1663
      %v1734 = vadd.f32 %v1404, %v1666
      %v1735 = vadd.f32 %v1405, %v1671
      %v1736 = vadd.f32 %v1406, %v1674
      %v1737 = vadd.f32 %v1407, %v1679
      %v1738 = vadd.f32 %v1408, %v1682
      %v1739 = vadd.f32 %v1409, %v1687
      %v1740 = vadd.f32 %v1410, %v1690
      %v1741 = vadd.f32 %v1411, %v1695
      %v1742 = vadd.f32 %v1412, %v1698
      %v1743 = vadd.f32 %v1413, %v1703
      %v1744 = vadd.f32 %v1414, %v1706
      %v1745 = vld [vmem:[#allocation2 + $0x13] sm:$0xff]
      %v1746 = vld [vmem:[#allocation2 + $0x1b] sm:$0xff]
      %v1747 = vld [vmem:[#allocation2 + $0x23] sm:$0xff]
      %v1748 = vld [vmem:[#allocation2 + $0x2b] sm:$0xff]
      %v1749 = vld [vmem:[#allocation2 + $0x33] sm:$0xff]
      %v1750 = vld [vmem:[#allocation2 + $0x3b] sm:$0xff]
      %v1751 = vld [vmem:[#allocation2 + $0x43] sm:$0xff]
      %v1752 = vld [vmem:[#allocation2 + $0x4b] sm:$0xff]
      %v1753 = vld [vmem:[#allocation2 + $0x53] sm:$0xff]
      %v1754 = vld [vmem:[#allocation2 + $0x5b] sm:$0xff]
      %v1755 = vld [vmem:[#allocation2 + $0x63] sm:$0xff]
      %v1756 = vld [vmem:[#allocation2 + $0x6b] sm:$0xff]
      %v1757 = vld [vmem:[#allocation2 + $0x73] sm:$0xff]
      %v1758 = vld [vmem:[#allocation2 + $0x7b] sm:$0xff]
      %v1759 = vld [vmem:[#allocation2 + $0x83] sm:$0xff]
      %v1760 = vld [vmem:[#allocation2 + $0x8b] sm:$0xff]
      %v1761 = vld [vmem:[#allocation2 + $0x93] sm:$0xff]
      %v1762 = vld [vmem:[#allocation2 + $0x9b] sm:$0xff]
      %v1763 = vld [vmem:[#allocation2 + $0xa3] sm:$0xff]
      %v1764 = vld [vmem:[#allocation2 + $0xab] sm:$0xff]
      %v1765 = vld [vmem:[#allocation2 + $0xb3] sm:$0xff]
      %v1766 = vld [vmem:[#allocation2 + $0xbb] sm:$0xff]
      %v1767 = vld [vmem:[#allocation2 + $0xc3] sm:$0xff]
      %v1768 = vld [vmem:[#allocation2 + $0xcb] sm:$0xff]
      %v1769 = vld [vmem:[#allocation2 + $0xd3] sm:$0xff]
      %v1770 = vld [vmem:[#allocation2 + $0xdb] sm:$0xff]
      %v1771 = vld [vmem:[#allocation2 + $0xe3] sm:$0xff]
      %v1772 = vld [vmem:[#allocation2 + $0xeb] sm:$0xff]
      %v1773 = vld [vmem:[#allocation2 + $0xf3] sm:$0xff]
      %v1774 = vld [vmem:[#allocation2 + $0xfb] sm:$0xff]
      %v1775 = vld [vmem:[#allocation2 + $0x103] sm:$0xff]
      %v1776 = vld [vmem:[#allocation2 + $0x10b] sm:$0xff]
      %v1777 = vld [vmem:[#allocation2 + $0x113] sm:$0xff]
      %v1778 = vld [vmem:[#allocation2 + $0x11b] sm:$0xff]
      %v1779 = vld [vmem:[#allocation2 + $0x123] sm:$0xff]
      %v1780 = vld [vmem:[#allocation2 + $0x12b] sm:$0xff]
      %v1781 = vpack.c.bf16 %v1746, %v1745
      %v1782 = vpack.c.bf16 %v1748, %v1747
      %v1783 = vpack.c.bf16 %v1750, %v1749
      %v1784 = vpack.c.bf16 %v1752, %v1751
      %v1785 = vpack.c.bf16 %v1754, %v1753
      %v1786 = vpack.c.bf16 %v1756, %v1755
      %v1787 = vpack.c.bf16 %v1758, %v1757
      %v1788 = vpack.c.bf16 %v1760, %v1759
      %v1789 = vpack.c.bf16 %v1762, %v1761
      %v1790 = vpack.c.bf16 %v1764, %v1763
      %v1791 = vpack.c.bf16 %v1766, %v1765
      %v1792 = vpack.c.bf16 %v1768, %v1767
      %v1793 = vpack.c.bf16 %v1770, %v1769
      %v1794 = vpack.c.bf16 %v1772, %v1771
      %v1795 = vpack.c.bf16 %v1774, %v1773
      %v1796 = vpack.c.bf16 %v1776, %v1775
      %v1797 = vpack.c.bf16 %v1778, %v1777
      %v1798 = vpack.c.bf16 %v1780, %v1779
      %s1799 = scalar_lea.vmem %s2, 32
      %v1800 = vld [vmem:[%s1799] sm:$0xf]
      %v1801 = vld [vmem:[%s1799 + $0x4] sm:$0xf]
      %v1804 = vunpack.c.l.b16 %v1800
      %v1805 = vunpack.c.l.b16 %v1801
      %v1806 = vpack.c.b16 %v1805, %v1804
      %v1809 = vsel %vm353, %v1781, 0
      %v1812 = vsel %vm353, %v1782, 0
      %v1815 = vsel %vm353, %v1783, 0
      %v1818 = vsel %vm353, %v1784, 0
      %v1821 = vsel %vm353, %v1785, 0
      %v1824 = vsel %vm353, %v1786, 0
      %v1827 = vsel %vm353, %v1787, 0
      %v1830 = vsel %vm353, %v1788, 0
      %v1833 = vsel %vm353, %v1789, 0
      %v1836 = vsel %vm353, %v1790, 0
      %v1839 = vsel %vm353, %v1791, 0
      %v1842 = vsel %vm353, %v1792, 0
      %v1845 = vsel %vm353, %v1793, 0
      %v1848 = vsel %vm353, %v1794, 0
      %v1851 = vsel %vm353, %v1795, 0
      %v1854 = vsel %vm353, %v1796, 0
      %v1857 = vsel %vm353, %v1797, 0
      %v1860 = vsel %vm353, %v1798, 0
      %1862 = vmatprep.subr.bf16.mxu0 0
      %1863 = vmatpush1.bf16.msra.mxu0 0
      %1864 = vmatprep.subr.bf16.mxu0 0
      %1865 = vmatpush1.bf16.msra.mxu0 0
      %1866 = vmatprep.subr.bf16.mxu0 0
      %1867 = vmatpush1.bf16.msra.mxu0 0
      %1868 = vmatprep.subr.bf16.mxu0 0
      %1869 = vmatpush1.bf16.msra.mxu0 0
      %1870 = vmatprep.subr.bf16.mxu0 0
      %1871 = vmatpush1.bf16.msra.mxu0 0
      %1872 = vmatprep.subr.bf16.mxu0 0
      %1873 = vmatpush1.bf16.msra.mxu0 0
      %1874 = vmatprep.subr.bf16.mxu0 0
      %1875 = vmatpush1.bf16.msra.mxu0 0
      %1876 = vmatprep.subr.bf16.mxu0 0
      %1877 = vmatpush1.bf16.msra.mxu0 %v1806
      %1878 = vmatprep.subr.bf16.mxu0 0
      %1879 = vmatpush2.bf16.msra.mxu0 0
      %1880 = vmatprep.subr.bf16.mxu0 0
      %1881 = vmatpush2.bf16.msra.mxu0 0
      %1882 = vmatprep.subr.bf16.mxu0 0
      %1883 = vmatpush2.bf16.msra.mxu0 0
      %1884 = vmatprep.subr.bf16.mxu0 0
      %1885 = vmatpush2.bf16.msra.mxu0 0
      %1886 = vmatprep.subr.bf16.mxu0 0
      %1887 = vmatpush2.bf16.msra.mxu0 0
      %1888 = vmatprep.subr.bf16.mxu0 0
      %1889 = vmatpush2.bf16.msra.mxu0 0
      %1890 = vmatprep.subr.bf16.mxu0 0
      %1891 = vmatpush2.bf16.msra.mxu0 0
      %1892 = vmatprep.subr.bf16.mxu0 0
      %1893 = vmatpush2.bf16.msra.mxu0 0
      %1894 = vmatprep.mubr.bf16.mxu0 0
      %1895 = vmatmul.mubr.bf16.gmra.mxu0 %v1809
      %v1896 = vpop.f32.mrf.mxu0
      %v1897 = vadd.f32 0.0, %v1896
      %v1898 = vpop.f32.mrf.mxu0
      %v1899 = vpop.f32.mrf.mxu0
      %v1900 = vadd.f32 0.0, %v1899
      %v1901 = vpop.f32.mrf.mxu0
      %1902 = vmatprep.mubr.bf16.mxu0 0
      %1903 = vmatmul.mubr.bf16.gmra.mxu0 %v1812
      %v1904 = vpop.f32.mrf.mxu0
      %v1905 = vadd.f32 0.0, %v1904
      %v1906 = vpop.f32.mrf.mxu0
      %v1907 = vpop.f32.mrf.mxu0
      %v1908 = vadd.f32 0.0, %v1907
      %v1909 = vpop.f32.mrf.mxu0
      %1910 = vmatprep.mubr.bf16.mxu0 0
      %1911 = vmatmul.mubr.bf16.gmra.mxu0 %v1815
      %v1912 = vpop.f32.mrf.mxu0
      %v1913 = vadd.f32 0.0, %v1912
      %v1914 = vpop.f32.mrf.mxu0
      %v1915 = vpop.f32.mrf.mxu0
      %v1916 = vadd.f32 0.0, %v1915
      %v1917 = vpop.f32.mrf.mxu0
      %1918 = vmatprep.mubr.bf16.mxu0 0
      %1919 = vmatmul.mubr.bf16.gmra.mxu0 %v1818
      %v1920 = vpop.f32.mrf.mxu0
      %v1921 = vadd.f32 0.0, %v1920
      %v1922 = vpop.f32.mrf.mxu0
      %v1923 = vpop.f32.mrf.mxu0
      %v1924 = vadd.f32 0.0, %v1923
      %v1925 = vpop.f32.mrf.mxu0
      %1926 = vmatprep.mubr.bf16.mxu0 0
      %1927 = vmatmul.mubr.bf16.gmra.mxu0 %v1821
      %v1928 = vpop.f32.mrf.mxu0
      %v1929 = vadd.f32 0.0, %v1928
      %v1930 = vpop.f32.mrf.mxu0
      %v1931 = vpop.f32.mrf.mxu0
      %v1932 = vadd.f32 0.0, %v1931
      %v1933 = vpop.f32.mrf.mxu0
      %1934 = vmatprep.mubr.bf16.mxu0 0
      %1935 = vmatmul.mubr.bf16.gmra.mxu0 %v1824
      %v1936 = vpop.f32.mrf.mxu0
      %v1937 = vadd.f32 0.0, %v1936
      %v1938 = vpop.f32.mrf.mxu0
      %v1939 = vpop.f32.mrf.mxu0
      %v1940 = vadd.f32 0.0, %v1939
      %v1941 = vpop.f32.mrf.mxu0
      %1942 = vmatprep.mubr.bf16.mxu0 0
      %1943 = vmatmul.mubr.bf16.gmra.mxu0 %v1827
      %v1944 = vpop.f32.mrf.mxu0
      %v1945 = vadd.f32 0.0, %v1944
      %v1946 = vpop.f32.mrf.mxu0
      %v1947 = vpop.f32.mrf.mxu0
      %v1948 = vadd.f32 0.0, %v1947
      %v1949 = vpop.f32.mrf.mxu0
      %1950 = vmatprep.mubr.bf16.mxu0 0
      %1951 = vmatmul.mubr.bf16.gmra.mxu0 %v1830
      %v1952 = vpop.f32.mrf.mxu0
      %v1953 = vadd.f32 0.0, %v1952
      %v1954 = vpop.f32.mrf.mxu0
      %v1955 = vpop.f32.mrf.mxu0
      %v1956 = vadd.f32 0.0, %v1955
      %v1957 = vpop.f32.mrf.mxu0
      %1958 = vmatprep.mubr.bf16.mxu0 0
      %1959 = vmatmul.mubr.bf16.gmra.mxu0 %v1833
      %v1960 = vpop.f32.mrf.mxu0
      %v1961 = vadd.f32 0.0, %v1960
      %v1962 = vpop.f32.mrf.mxu0
      %v1963 = vpop.f32.mrf.mxu0
      %v1964 = vadd.f32 0.0, %v1963
      %v1965 = vpop.f32.mrf.mxu0
      %1966 = vmatprep.mubr.bf16.mxu0 0
      %1967 = vmatmul.mubr.bf16.gmra.mxu0 %v1836
      %v1968 = vpop.f32.mrf.mxu0
      %v1969 = vadd.f32 0.0, %v1968
      %v1970 = vpop.f32.mrf.mxu0
      %v1971 = vpop.f32.mrf.mxu0
      %v1972 = vadd.f32 0.0, %v1971
      %v1973 = vpop.f32.mrf.mxu0
      %1974 = vmatprep.mubr.bf16.mxu0 0
      %1975 = vmatmul.mubr.bf16.gmra.mxu0 %v1839
      %v1976 = vpop.f32.mrf.mxu0
      %v1977 = vadd.f32 0.0, %v1976
      %v1978 = vpop.f32.mrf.mxu0
      %v1979 = vpop.f32.mrf.mxu0
      %v1980 = vadd.f32 0.0, %v1979
      %v1981 = vpop.f32.mrf.mxu0
      %1982 = vmatprep.mubr.bf16.mxu0 0
      %1983 = vmatmul.mubr.bf16.gmra.mxu0 %v1842
      %v1984 = vpop.f32.mrf.mxu0
      %v1985 = vadd.f32 0.0, %v1984
      %v1986 = vpop.f32.mrf.mxu0
      %v1987 = vpop.f32.mrf.mxu0
      %v1988 = vadd.f32 0.0, %v1987
      %v1989 = vpop.f32.mrf.mxu0
      %1990 = vmatprep.mubr.bf16.mxu0 0
      %1991 = vmatmul.mubr.bf16.gmra.mxu0 %v1845
      %v1992 = vpop.f32.mrf.mxu0
      %v1993 = vadd.f32 0.0, %v1992
      %v1994 = vpop.f32.mrf.mxu0
      %v1995 = vpop.f32.mrf.mxu0
      %v1996 = vadd.f32 0.0, %v1995
      %v1997 = vpop.f32.mrf.mxu0
      %1998 = vmatprep.mubr.bf16.mxu0 0
      %1999 = vmatmul.mubr.bf16.gmra.mxu0 %v1848
      %v2000 = vpop.f32.mrf.mxu0
      %v2001 = vadd.f32 0.0, %v2000
      %v2002 = vpop.f32.mrf.mxu0
      %v2003 = vpop.f32.mrf.mxu0
      %v2004 = vadd.f32 0.0, %v2003
      %v2005 = vpop.f32.mrf.mxu0
      %2006 = vmatprep.mubr.bf16.mxu0 0
      %2007 = vmatmul.mubr.bf16.gmra.mxu0 %v1851
      %v2008 = vpop.f32.mrf.mxu0
      %v2009 = vadd.f32 0.0, %v2008
      %v2010 = vpop.f32.mrf.mxu0
      %v2011 = vpop.f32.mrf.mxu0
      %v2012 = vadd.f32 0.0, %v2011
      %v2013 = vpop.f32.mrf.mxu0
      %2014 = vmatprep.mubr.bf16.mxu0 0
      %2015 = vmatmul.mubr.bf16.gmra.mxu0 %v1854
      %v2016 = vpop.f32.mrf.mxu0
      %v2017 = vadd.f32 0.0, %v2016
      %v2018 = vpop.f32.mrf.mxu0
      %v2019 = vpop.f32.mrf.mxu0
      %v2020 = vadd.f32 0.0, %v2019
      %v2021 = vpop.f32.mrf.mxu0
      %2022 = vmatprep.mubr.bf16.mxu0 0
      %2023 = vmatmul.mubr.bf16.gmra.mxu0 %v1857
      %v2024 = vpop.f32.mrf.mxu0
      %v2025 = vadd.f32 0.0, %v2024
      %v2026 = vpop.f32.mrf.mxu0
      %v2027 = vpop.f32.mrf.mxu0
      %v2028 = vadd.f32 0.0, %v2027
      %v2029 = vpop.f32.mrf.mxu0
      %2030 = vmatprep.mubr.bf16.mxu0 0
      %2031 = vmatmul.mubr.bf16.gmra.mxu0 %v1860
      %v2032 = vpop.f32.mrf.mxu0
      %v2033 = vadd.f32 0.0, %v2032
      %v2034 = vpop.f32.mrf.mxu0
      %v2035 = vpop.f32.mrf.mxu0
      %v2036 = vadd.f32 0.0, %v2035
      %v2037 = vpop.f32.mrf.mxu0
      %2038 = vdwg.mxu0
      %v2039 = vadd.f32 %v1709, %v1897
      %v2040 = vadd.f32 %v1710, %v1900
      %v2041 = vadd.f32 %v1711, %v1905
      %v2042 = vadd.f32 %v1712, %v1908
      %v2043 = vadd.f32 %v1713, %v1913
      %v2044 = vadd.f32 %v1714, %v1916
      %v2045 = vadd.f32 %v1715, %v1921
      %v2046 = vadd.f32 %v1716, %v1924
      %v2047 = vadd.f32 %v1717, %v1929
      %v2048 = vadd.f32 %v1718, %v1932
      %v2049 = vadd.f32 %v1719, %v1937
      %v2050 = vadd.f32 %v1720, %v1940
      %v2051 = vadd.f32 %v1721, %v1945
      %v2052 = vadd.f32 %v1722, %v1948
      %v2053 = vadd.f32 %v1723, %v1953
      %v2054 = vadd.f32 %v1724, %v1956
      %v2055 = vadd.f32 %v1725, %v1961
      %v2056 = vadd.f32 %v1726, %v1964
      %v2057 = vadd.f32 %v1727, %v1969
      %v2058 = vadd.f32 %v1728, %v1972
      %v2059 = vadd.f32 %v1729, %v1977
      %v2060 = vadd.f32 %v1730, %v1980
      %v2061 = vadd.f32 %v1731, %v1985
      %v2062 = vadd.f32 %v1732, %v1988
      %v2063 = vadd.f32 %v1733, %v1993
      %v2064 = vadd.f32 %v1734, %v1996
      %v2065 = vadd.f32 %v1735, %v2001
      %v2066 = vadd.f32 %v1736, %v2004
      %v2067 = vadd.f32 %v1737, %v2009
      %v2068 = vadd.f32 %v1738, %v2012
      %v2069 = vadd.f32 %v1739, %v2017
      %v2070 = vadd.f32 %v1740, %v2020
      %v2071 = vadd.f32 %v1741, %v2025
      %v2072 = vadd.f32 %v1742, %v2028
      %v2073 = vadd.f32 %v1743, %v2033
      %v2074 = vadd.f32 %v1744, %v2036
      %v2075 = vld [vmem:[#allocation2 + $0x14] sm:$0xff]
      %v2076 = vld [vmem:[#allocation2 + $0x1c] sm:$0xff]
      %v2077 = vld [vmem:[#allocation2 + $0x24] sm:$0xff]
      %v2078 = vld [vmem:[#allocation2 + $0x2c] sm:$0xff]
      %v2079 = vld [vmem:[#allocation2 + $0x34] sm:$0xff]
      %v2080 = vld [vmem:[#allocation2 + $0x3c] sm:$0xff]
      %v2081 = vld [vmem:[#allocation2 + $0x44] sm:$0xff]
      %v2082 = vld [vmem:[#allocation2 + $0x4c] sm:$0xff]
      %v2083 = vld [vmem:[#allocation2 + $0x54] sm:$0xff]
      %v2084 = vld [vmem:[#allocation2 + $0x5c] sm:$0xff]
      %v2085 = vld [vmem:[#allocation2 + $0x64] sm:$0xff]
      %v2086 = vld [vmem:[#allocation2 + $0x6c] sm:$0xff]
      %v2087 = vld [vmem:[#allocation2 + $0x74] sm:$0xff]
      %v2088 = vld [vmem:[#allocation2 + $0x7c] sm:$0xff]
      %v2089 = vld [vmem:[#allocation2 + $0x84] sm:$0xff]
      %v2090 = vld [vmem:[#allocation2 + $0x8c] sm:$0xff]
      %v2091 = vld [vmem:[#allocation2 + $0x94] sm:$0xff]
      %v2092 = vld [vmem:[#allocation2 + $0x9c] sm:$0xff]
      %v2093 = vld [vmem:[#allocation2 + $0xa4] sm:$0xff]
      %v2094 = vld [vmem:[#allocation2 + $0xac] sm:$0xff]
      %v2095 = vld [vmem:[#allocation2 + $0xb4] sm:$0xff]
      %v2096 = vld [vmem:[#allocation2 + $0xbc] sm:$0xff]
      %v2097 = vld [vmem:[#allocation2 + $0xc4] sm:$0xff]
      %v2098 = vld [vmem:[#allocation2 + $0xcc] sm:$0xff]
      %v2099 = vld [vmem:[#allocation2 + $0xd4] sm:$0xff]
      %v2100 = vld [vmem:[#allocation2 + $0xdc] sm:$0xff]
      %v2101 = vld [vmem:[#allocation2 + $0xe4] sm:$0xff]
      %v2102 = vld [vmem:[#allocation2 + $0xec] sm:$0xff]
      %v2103 = vld [vmem:[#allocation2 + $0xf4] sm:$0xff]
      %v2104 = vld [vmem:[#allocation2 + $0xfc] sm:$0xff]
      %v2105 = vld [vmem:[#allocation2 + $0x104] sm:$0xff]
      %v2106 = vld [vmem:[#allocation2 + $0x10c] sm:$0xff]
      %v2107 = vld [vmem:[#allocation2 + $0x114] sm:$0xff]
      %v2108 = vld [vmem:[#allocation2 + $0x11c] sm:$0xff]
      %v2109 = vld [vmem:[#allocation2 + $0x124] sm:$0xff]
      %v2110 = vld [vmem:[#allocation2 + $0x12c] sm:$0xff]
      %v2111 = vpack.c.bf16 %v2076, %v2075
      %v2112 = vpack.c.bf16 %v2078, %v2077
      %v2113 = vpack.c.bf16 %v2080, %v2079
      %v2114 = vpack.c.bf16 %v2082, %v2081
      %v2115 = vpack.c.bf16 %v2084, %v2083
      %v2116 = vpack.c.bf16 %v2086, %v2085
      %v2117 = vpack.c.bf16 %v2088, %v2087
      %v2118 = vpack.c.bf16 %v2090, %v2089
      %v2119 = vpack.c.bf16 %v2092, %v2091
      %v2120 = vpack.c.bf16 %v2094, %v2093
      %v2121 = vpack.c.bf16 %v2096, %v2095
      %v2122 = vpack.c.bf16 %v2098, %v2097
      %v2123 = vpack.c.bf16 %v2100, %v2099
      %v2124 = vpack.c.bf16 %v2102, %v2101
      %v2125 = vpack.c.bf16 %v2104, %v2103
      %v2126 = vpack.c.bf16 %v2106, %v2105
      %v2127 = vpack.c.bf16 %v2108, %v2107
      %v2128 = vpack.c.bf16 %v2110, %v2109
      %s2129 = scalar_lea.vmem %s2, 40
      %v2130 = vld [vmem:[%s2129] sm:$0xf]
      %v2131 = vld [vmem:[%s2129 + $0x4] sm:$0xf]
      %v2134 = vunpack.c.l.b16 %v2130
      %v2135 = vunpack.c.l.b16 %v2131
      %v2136 = vpack.c.b16 %v2135, %v2134
      %v2139 = vsel %vm353, %v2111, 0
      %v2142 = vsel %vm353, %v2112, 0
      %v2145 = vsel %vm353, %v2113, 0
      %v2148 = vsel %vm353, %v2114, 0
      %v2151 = vsel %vm353, %v2115, 0
      %v2154 = vsel %vm353, %v2116, 0
      %v2157 = vsel %vm353, %v2117, 0
      %v2160 = vsel %vm353, %v2118, 0
      %v2163 = vsel %vm353, %v2119, 0
      %v2166 = vsel %vm353, %v2120, 0
      %v2169 = vsel %vm353, %v2121, 0
      %v2172 = vsel %vm353, %v2122, 0
      %v2175 = vsel %vm353, %v2123, 0
      %v2178 = vsel %vm353, %v2124, 0
      %v2181 = vsel %vm353, %v2125, 0
      %v2184 = vsel %vm353, %v2126, 0
      %v2187 = vsel %vm353, %v2127, 0
      %v2190 = vsel %vm353, %v2128, 0
      %2192 = vmatprep.subr.bf16.mxu0 0
      %2193 = vmatpush1.bf16.msra.mxu0 0
      %2194 = vmatprep.subr.bf16.mxu0 0
      %2195 = vmatpush1.bf16.msra.mxu0 0
      %2196 = vmatprep.subr.bf16.mxu0 0
      %2197 = vmatpush1.bf16.msra.mxu0 0
      %2198 = vmatprep.subr.bf16.mxu0 0
      %2199 = vmatpush1.bf16.msra.mxu0 0
      %2200 = vmatprep.subr.bf16.mxu0 0
      %2201 = vmatpush1.bf16.msra.mxu0 0
      %2202 = vmatprep.subr.bf16.mxu0 0
      %2203 = vmatpush1.bf16.msra.mxu0 0
      %2204 = vmatprep.subr.bf16.mxu0 0
      %2205 = vmatpush1.bf16.msra.mxu0 0
      %2206 = vmatprep.subr.bf16.mxu0 0
      %2207 = vmatpush1.bf16.msra.mxu0 %v2136
      %2208 = vmatprep.subr.bf16.mxu0 0
      %2209 = vmatpush2.bf16.msra.mxu0 0
      %2210 = vmatprep.subr.bf16.mxu0 0
      %2211 = vmatpush2.bf16.msra.mxu0 0
      %2212 = vmatprep.subr.bf16.mxu0 0
      %2213 = vmatpush2.bf16.msra.mxu0 0
      %2214 = vmatprep.subr.bf16.mxu0 0
      %2215 = vmatpush2.bf16.msra.mxu0 0
      %2216 = vmatprep.subr.bf16.mxu0 0
      %2217 = vmatpush2.bf16.msra.mxu0 0
      %2218 = vmatprep.subr.bf16.mxu0 0
      %2219 = vmatpush2.bf16.msra.mxu0 0
      %2220 = vmatprep.subr.bf16.mxu0 0
      %2221 = vmatpush2.bf16.msra.mxu0 0
      %2222 = vmatprep.subr.bf16.mxu0 0
      %2223 = vmatpush2.bf16.msra.mxu0 0
      %2224 = vmatprep.mubr.bf16.mxu0 0
      %2225 = vmatmul.mubr.bf16.gmra.mxu0 %v2139
      %v2226 = vpop.f32.mrf.mxu0
      %v2227 = vadd.f32 0.0, %v2226
      %v2228 = vpop.f32.mrf.mxu0
      %v2229 = vpop.f32.mrf.mxu0
      %v2230 = vadd.f32 0.0, %v2229
      %v2231 = vpop.f32.mrf.mxu0
      %2232 = vmatprep.mubr.bf16.mxu0 0
      %2233 = vmatmul.mubr.bf16.gmra.mxu0 %v2142
      %v2234 = vpop.f32.mrf.mxu0
      %v2235 = vadd.f32 0.0, %v2234
      %v2236 = vpop.f32.mrf.mxu0
      %v2237 = vpop.f32.mrf.mxu0
      %v2238 = vadd.f32 0.0, %v2237
      %v2239 = vpop.f32.mrf.mxu0
      %2240 = vmatprep.mubr.bf16.mxu0 0
      %2241 = vmatmul.mubr.bf16.gmra.mxu0 %v2145
      %v2242 = vpop.f32.mrf.mxu0
      %v2243 = vadd.f32 0.0, %v2242
      %v2244 = vpop.f32.mrf.mxu0
      %v2245 = vpop.f32.mrf.mxu0
      %v2246 = vadd.f32 0.0, %v2245
      %v2247 = vpop.f32.mrf.mxu0
      %2248 = vmatprep.mubr.bf16.mxu0 0
      %2249 = vmatmul.mubr.bf16.gmra.mxu0 %v2148
      %v2250 = vpop.f32.mrf.mxu0
      %v2251 = vadd.f32 0.0, %v2250
      %v2252 = vpop.f32.mrf.mxu0
      %v2253 = vpop.f32.mrf.mxu0
      %v2254 = vadd.f32 0.0, %v2253
      %v2255 = vpop.f32.mrf.mxu0
      %2256 = vmatprep.mubr.bf16.mxu0 0
      %2257 = vmatmul.mubr.bf16.gmra.mxu0 %v2151
      %v2258 = vpop.f32.mrf.mxu0
      %v2259 = vadd.f32 0.0, %v2258
      %v2260 = vpop.f32.mrf.mxu0
      %v2261 = vpop.f32.mrf.mxu0
      %v2262 = vadd.f32 0.0, %v2261
      %v2263 = vpop.f32.mrf.mxu0
      %2264 = vmatprep.mubr.bf16.mxu0 0
      %2265 = vmatmul.mubr.bf16.gmra.mxu0 %v2154
      %v2266 = vpop.f32.mrf.mxu0
      %v2267 = vadd.f32 0.0, %v2266
      %v2268 = vpop.f32.mrf.mxu0
      %v2269 = vpop.f32.mrf.mxu0
      %v2270 = vadd.f32 0.0, %v2269
      %v2271 = vpop.f32.mrf.mxu0
      %2272 = vmatprep.mubr.bf16.mxu0 0
      %2273 = vmatmul.mubr.bf16.gmra.mxu0 %v2157
      %v2274 = vpop.f32.mrf.mxu0
      %v2275 = vadd.f32 0.0, %v2274
      %v2276 = vpop.f32.mrf.mxu0
      %v2277 = vpop.f32.mrf.mxu0
      %v2278 = vadd.f32 0.0, %v2277
      %v2279 = vpop.f32.mrf.mxu0
      %2280 = vmatprep.mubr.bf16.mxu0 0
      %2281 = vmatmul.mubr.bf16.gmra.mxu0 %v2160
      %v2282 = vpop.f32.mrf.mxu0
      %v2283 = vadd.f32 0.0, %v2282
      %v2284 = vpop.f32.mrf.mxu0
      %v2285 = vpop.f32.mrf.mxu0
      %v2286 = vadd.f32 0.0, %v2285
      %v2287 = vpop.f32.mrf.mxu0
      %2288 = vmatprep.mubr.bf16.mxu0 0
      %2289 = vmatmul.mubr.bf16.gmra.mxu0 %v2163
      %v2290 = vpop.f32.mrf.mxu0
      %v2291 = vadd.f32 0.0, %v2290
      %v2292 = vpop.f32.mrf.mxu0
      %v2293 = vpop.f32.mrf.mxu0
      %v2294 = vadd.f32 0.0, %v2293
      %v2295 = vpop.f32.mrf.mxu0
      %2296 = vmatprep.mubr.bf16.mxu0 0
      %2297 = vmatmul.mubr.bf16.gmra.mxu0 %v2166
      %v2298 = vpop.f32.mrf.mxu0
      %v2299 = vadd.f32 0.0, %v2298
      %v2300 = vpop.f32.mrf.mxu0
      %v2301 = vpop.f32.mrf.mxu0
      %v2302 = vadd.f32 0.0, %v2301
      %v2303 = vpop.f32.mrf.mxu0
      %2304 = vmatprep.mubr.bf16.mxu0 0
      %2305 = vmatmul.mubr.bf16.gmra.mxu0 %v2169
      %v2306 = vpop.f32.mrf.mxu0
      %v2307 = vadd.f32 0.0, %v2306
      %v2308 = vpop.f32.mrf.mxu0
      %v2309 = vpop.f32.mrf.mxu0
      %v2310 = vadd.f32 0.0, %v2309
      %v2311 = vpop.f32.mrf.mxu0
      %2312 = vmatprep.mubr.bf16.mxu0 0
      %2313 = vmatmul.mubr.bf16.gmra.mxu0 %v2172
      %v2314 = vpop.f32.mrf.mxu0
      %v2315 = vadd.f32 0.0, %v2314
      %v2316 = vpop.f32.mrf.mxu0
      %v2317 = vpop.f32.mrf.mxu0
      %v2318 = vadd.f32 0.0, %v2317
      %v2319 = vpop.f32.mrf.mxu0
      %2320 = vmatprep.mubr.bf16.mxu0 0
      %2321 = vmatmul.mubr.bf16.gmra.mxu0 %v2175
      %v2322 = vpop.f32.mrf.mxu0
      %v2323 = vadd.f32 0.0, %v2322
      %v2324 = vpop.f32.mrf.mxu0
      %v2325 = vpop.f32.mrf.mxu0
      %v2326 = vadd.f32 0.0, %v2325
      %v2327 = vpop.f32.mrf.mxu0
      %2328 = vmatprep.mubr.bf16.mxu0 0
      %2329 = vmatmul.mubr.bf16.gmra.mxu0 %v2178
      %v2330 = vpop.f32.mrf.mxu0
      %v2331 = vadd.f32 0.0, %v2330
      %v2332 = vpop.f32.mrf.mxu0
      %v2333 = vpop.f32.mrf.mxu0
      %v2334 = vadd.f32 0.0, %v2333
      %v2335 = vpop.f32.mrf.mxu0
      %2336 = vmatprep.mubr.bf16.mxu0 0
      %2337 = vmatmul.mubr.bf16.gmra.mxu0 %v2181
      %v2338 = vpop.f32.mrf.mxu0
      %v2339 = vadd.f32 0.0, %v2338
      %v2340 = vpop.f32.mrf.mxu0
      %v2341 = vpop.f32.mrf.mxu0
      %v2342 = vadd.f32 0.0, %v2341
      %v2343 = vpop.f32.mrf.mxu0
      %2344 = vmatprep.mubr.bf16.mxu0 0
      %2345 = vmatmul.mubr.bf16.gmra.mxu0 %v2184
      %v2346 = vpop.f32.mrf.mxu0
      %v2347 = vadd.f32 0.0, %v2346
      %v2348 = vpop.f32.mrf.mxu0
      %v2349 = vpop.f32.mrf.mxu0
      %v2350 = vadd.f32 0.0, %v2349
      %v2351 = vpop.f32.mrf.mxu0
      %2352 = vmatprep.mubr.bf16.mxu0 0
      %2353 = vmatmul.mubr.bf16.gmra.mxu0 %v2187
      %v2354 = vpop.f32.mrf.mxu0
      %v2355 = vadd.f32 0.0, %v2354
      %v2356 = vpop.f32.mrf.mxu0
      %v2357 = vpop.f32.mrf.mxu0
      %v2358 = vadd.f32 0.0, %v2357
      %v2359 = vpop.f32.mrf.mxu0
      %2360 = vmatprep.mubr.bf16.mxu0 0
      %2361 = vmatmul.mubr.bf16.gmra.mxu0 %v2190
      %v2362 = vpop.f32.mrf.mxu0
      %v2363 = vadd.f32 0.0, %v2362
      %v2364 = vpop.f32.mrf.mxu0
      %v2365 = vpop.f32.mrf.mxu0
      %v2366 = vadd.f32 0.0, %v2365
      %v2367 = vpop.f32.mrf.mxu0
      %2368 = vdwg.mxu0
      %v2369 = vadd.f32 %v2039, %v2227
      %v2370 = vadd.f32 %v2040, %v2230
      %v2371 = vadd.f32 %v2041, %v2235
      %v2372 = vadd.f32 %v2042, %v2238
      %v2373 = vadd.f32 %v2043, %v2243
      %v2374 = vadd.f32 %v2044, %v2246
      %v2375 = vadd.f32 %v2045, %v2251
      %v2376 = vadd.f32 %v2046, %v2254
      %v2377 = vadd.f32 %v2047, %v2259
      %v2378 = vadd.f32 %v2048, %v2262
      %v2379 = vadd.f32 %v2049, %v2267
      %v2380 = vadd.f32 %v2050, %v2270
      %v2381 = vadd.f32 %v2051, %v2275
      %v2382 = vadd.f32 %v2052, %v2278
      %v2383 = vadd.f32 %v2053, %v2283
      %v2384 = vadd.f32 %v2054, %v2286
      %v2385 = vadd.f32 %v2055, %v2291
      %v2386 = vadd.f32 %v2056, %v2294
      %v2387 = vadd.f32 %v2057, %v2299
      %v2388 = vadd.f32 %v2058, %v2302
      %v2389 = vadd.f32 %v2059, %v2307
      %v2390 = vadd.f32 %v2060, %v2310
      %v2391 = vadd.f32 %v2061, %v2315
      %v2392 = vadd.f32 %v2062, %v2318
      %v2393 = vadd.f32 %v2063, %v2323
      %v2394 = vadd.f32 %v2064, %v2326
      %v2395 = vadd.f32 %v2065, %v2331
      %v2396 = vadd.f32 %v2066, %v2334
      %v2397 = vadd.f32 %v2067, %v2339
      %v2398 = vadd.f32 %v2068, %v2342
      %v2399 = vadd.f32 %v2069, %v2347
      %v2400 = vadd.f32 %v2070, %v2350
      %v2401 = vadd.f32 %v2071, %v2355
      %v2402 = vadd.f32 %v2072, %v2358
      %v2403 = vadd.f32 %v2073, %v2363
      %v2404 = vadd.f32 %v2074, %v2366
      %v2405 = vld [vmem:[#allocation2 + $0x24] sm:$0xff]
      %v2406 = vld [vmem:[#allocation2 + $0x2c] sm:$0xff]
      %v2407 = vld [vmem:[#allocation2 + $0x34] sm:$0xff]
      %v2408 = vld [vmem:[#allocation2 + $0x3c] sm:$0xff]
      %v2409 = vld [vmem:[#allocation2 + $0x44] sm:$0xff]
      %v2410 = vld [vmem:[#allocation2 + $0x4c] sm:$0xff]
      %v2411 = vld [vmem:[#allocation2 + $0x54] sm:$0xff]
      %v2412 = vld [vmem:[#allocation2 + $0x5c] sm:$0xff]
      %v2413 = vld [vmem:[#allocation2 + $0x64] sm:$0xff]
      %v2414 = vld [vmem:[#allocation2 + $0x6c] sm:$0xff]
      %v2415 = vld [vmem:[#allocation2 + $0x74] sm:$0xff]
      %v2416 = vld [vmem:[#allocation2 + $0x7c] sm:$0xff]
      %v2417 = vld [vmem:[#allocation2 + $0x84] sm:$0xff]
      %v2418 = vld [vmem:[#allocation2 + $0x8c] sm:$0xff]
      %v2419 = vld [vmem:[#allocation2 + $0x94] sm:$0xff]
      %v2420 = vld [vmem:[#allocation2 + $0x9c] sm:$0xff]
      %v2421 = vld [vmem:[#allocation2 + $0xa4] sm:$0xff]
      %v2422 = vld [vmem:[#allocation2 + $0xac] sm:$0xff]
      %v2423 = vld [vmem:[#allocation2 + $0xb4] sm:$0xff]
      %v2424 = vld [vmem:[#allocation2 + $0xbc] sm:$0xff]
      %v2425 = vld [vmem:[#allocation2 + $0xc4] sm:$0xff]
      %v2426 = vld [vmem:[#allocation2 + $0xcc] sm:$0xff]
      %v2427 = vld [vmem:[#allocation2 + $0xd4] sm:$0xff]
      %v2428 = vld [vmem:[#allocation2 + $0xdc] sm:$0xff]
      %v2429 = vld [vmem:[#allocation2 + $0xe4] sm:$0xff]
      %v2430 = vld [vmem:[#allocation2 + $0xec] sm:$0xff]
      %v2431 = vld [vmem:[#allocation2 + $0xf4] sm:$0xff]
      %v2432 = vld [vmem:[#allocation2 + $0xfc] sm:$0xff]
      %v2433 = vld [vmem:[#allocation2 + $0x104] sm:$0xff]
      %v2434 = vld [vmem:[#allocation2 + $0x10c] sm:$0xff]
      %v2435 = vld [vmem:[#allocation2 + $0x114] sm:$0xff]
      %v2436 = vld [vmem:[#allocation2 + $0x11c] sm:$0xff]
      %v2437 = vld [vmem:[#allocation2 + $0x124] sm:$0xff]
      %v2438 = vld [vmem:[#allocation2 + $0x12c] sm:$0xff]
      %v2439 = vld [vmem:[#allocation2 + $0x134] sm:$0xff]
      %v2440 = vld [vmem:[#allocation2 + $0x13c] sm:$0xff]
      %v2441 = vpack.c.bf16 %v2406, %v2405
      %v2442 = vpack.c.bf16 %v2408, %v2407
      %v2443 = vpack.c.bf16 %v2410, %v2409
      %v2444 = vpack.c.bf16 %v2412, %v2411
      %v2445 = vpack.c.bf16 %v2414, %v2413
      %v2446 = vpack.c.bf16 %v2416, %v2415
      %v2447 = vpack.c.bf16 %v2418, %v2417
      %v2448 = vpack.c.bf16 %v2420, %v2419
      %v2449 = vpack.c.bf16 %v2422, %v2421
      %v2450 = vpack.c.bf16 %v2424, %v2423
      %v2451 = vpack.c.bf16 %v2426, %v2425
      %v2452 = vpack.c.bf16 %v2428, %v2427
      %v2453 = vpack.c.bf16 %v2430, %v2429
      %v2454 = vpack.c.bf16 %v2432, %v2431
      %v2455 = vpack.c.bf16 %v2434, %v2433
      %v2456 = vpack.c.bf16 %v2436, %v2435
      %v2457 = vpack.c.bf16 %v2438, %v2437
      %v2458 = vpack.c.bf16 %v2440, %v2439
      %s2459 = scalar_lea.vmem %s2, 48
      %v2460 = vld [vmem:[%s2459] sm:$0xf]
      %v2461 = vld [vmem:[%s2459 + $0x4] sm:$0xf]
      %v2464 = vunpack.c.l.b16 %v2460
      %v2465 = vunpack.c.l.b16 %v2461
      %v2466 = vpack.c.b16 %v2465, %v2464
      %v2469 = vsel %vm353, %v2441, 0
      %v2472 = vsel %vm353, %v2442, 0
      %v2475 = vsel %vm353, %v2443, 0
      %v2478 = vsel %vm353, %v2444, 0
      %v2481 = vsel %vm353, %v2445, 0
      %v2484 = vsel %vm353, %v2446, 0
      %v2487 = vsel %vm353, %v2447, 0
      %v2490 = vsel %vm353, %v2448, 0
      %v2493 = vsel %vm353, %v2449, 0
      %v2496 = vsel %vm353, %v2450, 0
      %v2499 = vsel %vm353, %v2451, 0
      %v2502 = vsel %vm353, %v2452, 0
      %v2505 = vsel %vm353, %v2453, 0
      %v2508 = vsel %vm353, %v2454, 0
      %v2511 = vsel %vm353, %v2455, 0
      %v2514 = vsel %vm353, %v2456, 0
      %v2517 = vsel %vm353, %v2457, 0
      %v2520 = vsel %vm353, %v2458, 0
      %2522 = vmatprep.subr.bf16.mxu0 0
      %2523 = vmatpush1.bf16.msra.mxu0 0
      %2524 = vmatprep.subr.bf16.mxu0 0
      %2525 = vmatpush1.bf16.msra.mxu0 0
      %2526 = vmatprep.subr.bf16.mxu0 0
      %2527 = vmatpush1.bf16.msra.mxu0 0
      %2528 = vmatprep.subr.bf16.mxu0 0
      %2529 = vmatpush1.bf16.msra.mxu0 0
      %2530 = vmatprep.subr.bf16.mxu0 0
      %2531 = vmatpush1.bf16.msra.mxu0 0
      %2532 = vmatprep.subr.bf16.mxu0 0
      %2533 = vmatpush1.bf16.msra.mxu0 0
      %2534 = vmatprep.subr.bf16.mxu0 0
      %2535 = vmatpush1.bf16.msra.mxu0 0
      %2536 = vmatprep.subr.bf16.mxu0 0
      %2537 = vmatpush1.bf16.msra.mxu0 %v2466
      %2538 = vmatprep.subr.bf16.mxu0 0
      %2539 = vmatpush2.bf16.msra.mxu0 0
      %2540 = vmatprep.subr.bf16.mxu0 0
      %2541 = vmatpush2.bf16.msra.mxu0 0
      %2542 = vmatprep.subr.bf16.mxu0 0
      %2543 = vmatpush2.bf16.msra.mxu0 0
      %2544 = vmatprep.subr.bf16.mxu0 0
      %2545 = vmatpush2.bf16.msra.mxu0 0
      %2546 = vmatprep.subr.bf16.mxu0 0
      %2547 = vmatpush2.bf16.msra.mxu0 0
      %2548 = vmatprep.subr.bf16.mxu0 0
      %2549 = vmatpush2.bf16.msra.mxu0 0
      %2550 = vmatprep.subr.bf16.mxu0 0
      %2551 = vmatpush2.bf16.msra.mxu0 0
      %2552 = vmatprep.subr.bf16.mxu0 0
      %2553 = vmatpush2.bf16.msra.mxu0 0
      %2554 = vmatprep.mubr.bf16.mxu0 0
      %2555 = vmatmul.mubr.bf16.gmra.mxu0 %v2469
      %v2556 = vpop.f32.mrf.mxu0
      %v2557 = vadd.f32 0.0, %v2556
      %v2558 = vpop.f32.mrf.mxu0
      %v2559 = vpop.f32.mrf.mxu0
      %v2560 = vadd.f32 0.0, %v2559
      %v2561 = vpop.f32.mrf.mxu0
      %2562 = vmatprep.mubr.bf16.mxu0 0
      %2563 = vmatmul.mubr.bf16.gmra.mxu0 %v2472
      %v2564 = vpop.f32.mrf.mxu0
      %v2565 = vadd.f32 0.0, %v2564
      %v2566 = vpop.f32.mrf.mxu0
      %v2567 = vpop.f32.mrf.mxu0
      %v2568 = vadd.f32 0.0, %v2567
      %v2569 = vpop.f32.mrf.mxu0
      %2570 = vmatprep.mubr.bf16.mxu0 0
      %2571 = vmatmul.mubr.bf16.gmra.mxu0 %v2475
      %v2572 = vpop.f32.mrf.mxu0
      %v2573 = vadd.f32 0.0, %v2572
      %v2574 = vpop.f32.mrf.mxu0
      %v2575 = vpop.f32.mrf.mxu0
      %v2576 = vadd.f32 0.0, %v2575
      %v2577 = vpop.f32.mrf.mxu0
      %2578 = vmatprep.mubr.bf16.mxu0 0
      %2579 = vmatmul.mubr.bf16.gmra.mxu0 %v2478
      %v2580 = vpop.f32.mrf.mxu0
      %v2581 = vadd.f32 0.0, %v2580
      %v2582 = vpop.f32.mrf.mxu0
      %v2583 = vpop.f32.mrf.mxu0
      %v2584 = vadd.f32 0.0, %v2583
      %v2585 = vpop.f32.mrf.mxu0
      %2586 = vmatprep.mubr.bf16.mxu0 0
      %2587 = vmatmul.mubr.bf16.gmra.mxu0 %v2481
      %v2588 = vpop.f32.mrf.mxu0
      %v2589 = vadd.f32 0.0, %v2588
      %v2590 = vpop.f32.mrf.mxu0
      %v2591 = vpop.f32.mrf.mxu0
      %v2592 = vadd.f32 0.0, %v2591
      %v2593 = vpop.f32.mrf.mxu0
      %2594 = vmatprep.mubr.bf16.mxu0 0
      %2595 = vmatmul.mubr.bf16.gmra.mxu0 %v2484
      %v2596 = vpop.f32.mrf.mxu0
      %v2597 = vadd.f32 0.0, %v2596
      %v2598 = vpop.f32.mrf.mxu0
      %v2599 = vpop.f32.mrf.mxu0
      %v2600 = vadd.f32 0.0, %v2599
      %v2601 = vpop.f32.mrf.mxu0
      %2602 = vmatprep.mubr.bf16.mxu0 0
      %2603 = vmatmul.mubr.bf16.gmra.mxu0 %v2487
      %v2604 = vpop.f32.mrf.mxu0
      %v2605 = vadd.f32 0.0, %v2604
      %v2606 = vpop.f32.mrf.mxu0
      %v2607 = vpop.f32.mrf.mxu0
      %v2608 = vadd.f32 0.0, %v2607
      %v2609 = vpop.f32.mrf.mxu0
      %2610 = vmatprep.mubr.bf16.mxu0 0
      %2611 = vmatmul.mubr.bf16.gmra.mxu0 %v2490
      %v2612 = vpop.f32.mrf.mxu0
      %v2613 = vadd.f32 0.0, %v2612
      %v2614 = vpop.f32.mrf.mxu0
      %v2615 = vpop.f32.mrf.mxu0
      %v2616 = vadd.f32 0.0, %v2615
      %v2617 = vpop.f32.mrf.mxu0
      %2618 = vmatprep.mubr.bf16.mxu0 0
      %2619 = vmatmul.mubr.bf16.gmra.mxu0 %v2493
      %v2620 = vpop.f32.mrf.mxu0
      %v2621 = vadd.f32 0.0, %v2620
      %v2622 = vpop.f32.mrf.mxu0
      %v2623 = vpop.f32.mrf.mxu0
      %v2624 = vadd.f32 0.0, %v2623
      %v2625 = vpop.f32.mrf.mxu0
      %2626 = vmatprep.mubr.bf16.mxu0 0
      %2627 = vmatmul.mubr.bf16.gmra.mxu0 %v2496
      %v2628 = vpop.f32.mrf.mxu0
      %v2629 = vadd.f32 0.0, %v2628
      %v2630 = vpop.f32.mrf.mxu0
      %v2631 = vpop.f32.mrf.mxu0
      %v2632 = vadd.f32 0.0, %v2631
      %v2633 = vpop.f32.mrf.mxu0
      %2634 = vmatprep.mubr.bf16.mxu0 0
      %2635 = vmatmul.mubr.bf16.gmra.mxu0 %v2499
      %v2636 = vpop.f32.mrf.mxu0
      %v2637 = vadd.f32 0.0, %v2636
      %v2638 = vpop.f32.mrf.mxu0
      %v2639 = vpop.f32.mrf.mxu0
      %v2640 = vadd.f32 0.0, %v2639
      %v2641 = vpop.f32.mrf.mxu0
      %2642 = vmatprep.mubr.bf16.mxu0 0
      %2643 = vmatmul.mubr.bf16.gmra.mxu0 %v2502
      %v2644 = vpop.f32.mrf.mxu0
      %v2645 = vadd.f32 0.0, %v2644
      %v2646 = vpop.f32.mrf.mxu0
      %v2647 = vpop.f32.mrf.mxu0
      %v2648 = vadd.f32 0.0, %v2647
      %v2649 = vpop.f32.mrf.mxu0
      %2650 = vmatprep.mubr.bf16.mxu0 0
      %2651 = vmatmul.mubr.bf16.gmra.mxu0 %v2505
      %v2652 = vpop.f32.mrf.mxu0
      %v2653 = vadd.f32 0.0, %v2652
      %v2654 = vpop.f32.mrf.mxu0
      %v2655 = vpop.f32.mrf.mxu0
      %v2656 = vadd.f32 0.0, %v2655
      %v2657 = vpop.f32.mrf.mxu0
      %2658 = vmatprep.mubr.bf16.mxu0 0
      %2659 = vmatmul.mubr.bf16.gmra.mxu0 %v2508
      %v2660 = vpop.f32.mrf.mxu0
      %v2661 = vadd.f32 0.0, %v2660
      %v2662 = vpop.f32.mrf.mxu0
      %v2663 = vpop.f32.mrf.mxu0
      %v2664 = vadd.f32 0.0, %v2663
      %v2665 = vpop.f32.mrf.mxu0
      %2666 = vmatprep.mubr.bf16.mxu0 0
      %2667 = vmatmul.mubr.bf16.gmra.mxu0 %v2511
      %v2668 = vpop.f32.mrf.mxu0
      %v2669 = vadd.f32 0.0, %v2668
      %v2670 = vpop.f32.mrf.mxu0
      %v2671 = vpop.f32.mrf.mxu0
      %v2672 = vadd.f32 0.0, %v2671
      %v2673 = vpop.f32.mrf.mxu0
      %2674 = vmatprep.mubr.bf16.mxu0 0
      %2675 = vmatmul.mubr.bf16.gmra.mxu0 %v2514
      %v2676 = vpop.f32.mrf.mxu0
      %v2677 = vadd.f32 0.0, %v2676
      %v2678 = vpop.f32.mrf.mxu0
      %v2679 = vpop.f32.mrf.mxu0
      %v2680 = vadd.f32 0.0, %v2679
      %v2681 = vpop.f32.mrf.mxu0
      %2682 = vmatprep.mubr.bf16.mxu0 0
      %2683 = vmatmul.mubr.bf16.gmra.mxu0 %v2517
      %v2684 = vpop.f32.mrf.mxu0
      %v2685 = vadd.f32 0.0, %v2684
      %v2686 = vpop.f32.mrf.mxu0
      %v2687 = vpop.f32.mrf.mxu0
      %v2688 = vadd.f32 0.0, %v2687
      %v2689 = vpop.f32.mrf.mxu0
      %2690 = vmatprep.mubr.bf16.mxu0 0
      %2691 = vmatmul.mubr.bf16.gmra.mxu0 %v2520
      %v2692 = vpop.f32.mrf.mxu0
      %v2693 = vadd.f32 0.0, %v2692
      %v2694 = vpop.f32.mrf.mxu0
      %v2695 = vpop.f32.mrf.mxu0
      %v2696 = vadd.f32 0.0, %v2695
      %v2697 = vpop.f32.mrf.mxu0
      %2698 = vdwg.mxu0
      %v2699 = vadd.f32 %v2369, %v2557
      %v2700 = vadd.f32 %v2370, %v2560
      %v2701 = vadd.f32 %v2371, %v2565
      %v2702 = vadd.f32 %v2372, %v2568
      %v2703 = vadd.f32 %v2373, %v2573
      %v2704 = vadd.f32 %v2374, %v2576
      %v2705 = vadd.f32 %v2375, %v2581
      %v2706 = vadd.f32 %v2376, %v2584
      %v2707 = vadd.f32 %v2377, %v2589
      %v2708 = vadd.f32 %v2378, %v2592
      %v2709 = vadd.f32 %v2379, %v2597
      %v2710 = vadd.f32 %v2380, %v2600
      %v2711 = vadd.f32 %v2381, %v2605
      %v2712 = vadd.f32 %v2382, %v2608
      %v2713 = vadd.f32 %v2383, %v2613
      %v2714 = vadd.f32 %v2384, %v2616
      %v2715 = vadd.f32 %v2385, %v2621
      %v2716 = vadd.f32 %v2386, %v2624
      %v2717 = vadd.f32 %v2387, %v2629
      %v2718 = vadd.f32 %v2388, %v2632
      %v2719 = vadd.f32 %v2389, %v2637
      %v2720 = vadd.f32 %v2390, %v2640
      %v2721 = vadd.f32 %v2391, %v2645
      %v2722 = vadd.f32 %v2392, %v2648
      %v2723 = vadd.f32 %v2393, %v2653
      %v2724 = vadd.f32 %v2394, %v2656
      %v2725 = vadd.f32 %v2395, %v2661
      %v2726 = vadd.f32 %v2396, %v2664
      %v2727 = vadd.f32 %v2397, %v2669
      %v2728 = vadd.f32 %v2398, %v2672
      %v2729 = vadd.f32 %v2399, %v2677
      %v2730 = vadd.f32 %v2400, %v2680
      %v2731 = vadd.f32 %v2401, %v2685
      %v2732 = vadd.f32 %v2402, %v2688
      %v2733 = vadd.f32 %v2403, %v2693
      %v2734 = vadd.f32 %v2404, %v2696
      %v2735 = vld [vmem:[#allocation2 + $0x25] sm:$0xff]
      %v2736 = vld [vmem:[#allocation2 + $0x2d] sm:$0xff]
      %v2737 = vld [vmem:[#allocation2 + $0x35] sm:$0xff]
      %v2738 = vld [vmem:[#allocation2 + $0x3d] sm:$0xff]
      %v2739 = vld [vmem:[#allocation2 + $0x45] sm:$0xff]
      %v2740 = vld [vmem:[#allocation2 + $0x4d] sm:$0xff]
      %v2741 = vld [vmem:[#allocation2 + $0x55] sm:$0xff]
      %v2742 = vld [vmem:[#allocation2 + $0x5d] sm:$0xff]
      %v2743 = vld [vmem:[#allocation2 + $0x65] sm:$0xff]
      %v2744 = vld [vmem:[#allocation2 + $0x6d] sm:$0xff]
      %v2745 = vld [vmem:[#allocation2 + $0x75] sm:$0xff]
      %v2746 = vld [vmem:[#allocation2 + $0x7d] sm:$0xff]
      %v2747 = vld [vmem:[#allocation2 + $0x85] sm:$0xff]
      %v2748 = vld [vmem:[#allocation2 + $0x8d] sm:$0xff]
      %v2749 = vld [vmem:[#allocation2 + $0x95] sm:$0xff]
      %v2750 = vld [vmem:[#allocation2 + $0x9d] sm:$0xff]
      %v2751 = vld [vmem:[#allocation2 + $0xa5] sm:$0xff]
      %v2752 = vld [vmem:[#allocation2 + $0xad] sm:$0xff]
      %v2753 = vld [vmem:[#allocation2 + $0xb5] sm:$0xff]
      %v2754 = vld [vmem:[#allocation2 + $0xbd] sm:$0xff]
      %v2755 = vld [vmem:[#allocation2 + $0xc5] sm:$0xff]
      %v2756 = vld [vmem:[#allocation2 + $0xcd] sm:$0xff]
      %v2757 = vld [vmem:[#allocation2 + $0xd5] sm:$0xff]
      %v2758 = vld [vmem:[#allocation2 + $0xdd] sm:$0xff]
      %v2759 = vld [vmem:[#allocation2 + $0xe5] sm:$0xff]
      %v2760 = vld [vmem:[#allocation2 + $0xed] sm:$0xff]
      %v2761 = vld [vmem:[#allocation2 + $0xf5] sm:$0xff]
      %v2762 = vld [vmem:[#allocation2 + $0xfd] sm:$0xff]
      %v2763 = vld [vmem:[#allocation2 + $0x105] sm:$0xff]
      %v2764 = vld [vmem:[#allocation2 + $0x10d] sm:$0xff]
      %v2765 = vld [vmem:[#allocation2 + $0x115] sm:$0xff]
      %v2766 = vld [vmem:[#allocation2 + $0x11d] sm:$0xff]
      %v2767 = vld [vmem:[#allocation2 + $0x125] sm:$0xff]
      %v2768 = vld [vmem:[#allocation2 + $0x12d] sm:$0xff]
      %v2769 = vld [vmem:[#allocation2 + $0x135] sm:$0xff]
      %v2770 = vld [vmem:[#allocation2 + $0x13d] sm:$0xff]
      %v2771 = vpack.c.bf16 %v2736, %v2735
      %v2772 = vpack.c.bf16 %v2738, %v2737
      %v2773 = vpack.c.bf16 %v2740, %v2739
      %v2774 = vpack.c.bf16 %v2742, %v2741
      %v2775 = vpack.c.bf16 %v2744, %v2743
      %v2776 = vpack.c.bf16 %v2746, %v2745
      %v2777 = vpack.c.bf16 %v2748, %v2747
      %v2778 = vpack.c.bf16 %v2750, %v2749
      %v2779 = vpack.c.bf16 %v2752, %v2751
      %v2780 = vpack.c.bf16 %v2754, %v2753
      %v2781 = vpack.c.bf16 %v2756, %v2755
      %v2782 = vpack.c.bf16 %v2758, %v2757
      %v2783 = vpack.c.bf16 %v2760, %v2759
      %v2784 = vpack.c.bf16 %v2762, %v2761
      %v2785 = vpack.c.bf16 %v2764, %v2763
      %v2786 = vpack.c.bf16 %v2766, %v2765
      %v2787 = vpack.c.bf16 %v2768, %v2767
      %v2788 = vpack.c.bf16 %v2770, %v2769
      %s2789 = scalar_lea.vmem %s2, 56
      %v2790 = vld [vmem:[%s2789] sm:$0xf]
      %v2791 = vld [vmem:[%s2789 + $0x4] sm:$0xf]
      %v2794 = vunpack.c.l.b16 %v2790
      %v2795 = vunpack.c.l.b16 %v2791
      %v2796 = vpack.c.b16 %v2795, %v2794
      %v2799 = vsel %vm353, %v2771, 0
      %v2802 = vsel %vm353, %v2772, 0
      %v2805 = vsel %vm353, %v2773, 0
      %v2808 = vsel %vm353, %v2774, 0
      %v2811 = vsel %vm353, %v2775, 0
      %v2814 = vsel %vm353, %v2776, 0
      %v2817 = vsel %vm353, %v2777, 0
      %v2820 = vsel %vm353, %v2778, 0
      %v2823 = vsel %vm353, %v2779, 0
      %v2826 = vsel %vm353, %v2780, 0
      %v2829 = vsel %vm353, %v2781, 0
      %v2832 = vsel %vm353, %v2782, 0
      %v2835 = vsel %vm353, %v2783, 0
      %v2838 = vsel %vm353, %v2784, 0
      %v2841 = vsel %vm353, %v2785, 0
      %v2844 = vsel %vm353, %v2786, 0
      %v2847 = vsel %vm353, %v2787, 0
      %v2850 = vsel %vm353, %v2788, 0
      %2852 = vmatprep.subr.bf16.mxu0 0
      %2853 = vmatpush1.bf16.msra.mxu0 0
      %2854 = vmatprep.subr.bf16.mxu0 0
      %2855 = vmatpush1.bf16.msra.mxu0 0
      %2856 = vmatprep.subr.bf16.mxu0 0
      %2857 = vmatpush1.bf16.msra.mxu0 0
      %2858 = vmatprep.subr.bf16.mxu0 0
      %2859 = vmatpush1.bf16.msra.mxu0 0
      %2860 = vmatprep.subr.bf16.mxu0 0
      %2861 = vmatpush1.bf16.msra.mxu0 0
      %2862 = vmatprep.subr.bf16.mxu0 0
      %2863 = vmatpush1.bf16.msra.mxu0 0
      %2864 = vmatprep.subr.bf16.mxu0 0
      %2865 = vmatpush1.bf16.msra.mxu0 0
      %2866 = vmatprep.subr.bf16.mxu0 0
      %2867 = vmatpush1.bf16.msra.mxu0 %v2796
      %2868 = vmatprep.subr.bf16.mxu0 0
      %2869 = vmatpush2.bf16.msra.mxu0 0
      %2870 = vmatprep.subr.bf16.mxu0 0
      %2871 = vmatpush2.bf16.msra.mxu0 0
      %2872 = vmatprep.subr.bf16.mxu0 0
      %2873 = vmatpush2.bf16.msra.mxu0 0
      %2874 = vmatprep.subr.bf16.mxu0 0
      %2875 = vmatpush2.bf16.msra.mxu0 0
      %2876 = vmatprep.subr.bf16.mxu0 0
      %2877 = vmatpush2.bf16.msra.mxu0 0
      %2878 = vmatprep.subr.bf16.mxu0 0
      %2879 = vmatpush2.bf16.msra.mxu0 0
      %2880 = vmatprep.subr.bf16.mxu0 0
      %2881 = vmatpush2.bf16.msra.mxu0 0
      %2882 = vmatprep.subr.bf16.mxu0 0
      %2883 = vmatpush2.bf16.msra.mxu0 0
      %2884 = vmatprep.mubr.bf16.mxu0 0
      %2885 = vmatmul.mubr.bf16.gmra.mxu0 %v2799
      %v2886 = vpop.f32.mrf.mxu0
      %v2887 = vadd.f32 0.0, %v2886
      %v2888 = vpop.f32.mrf.mxu0
      %v2889 = vpop.f32.mrf.mxu0
      %v2890 = vadd.f32 0.0, %v2889
      %v2891 = vpop.f32.mrf.mxu0
      %2892 = vmatprep.mubr.bf16.mxu0 0
      %2893 = vmatmul.mubr.bf16.gmra.mxu0 %v2802
      %v2894 = vpop.f32.mrf.mxu0
      %v2895 = vadd.f32 0.0, %v2894
      %v2896 = vpop.f32.mrf.mxu0
      %v2897 = vpop.f32.mrf.mxu0
      %v2898 = vadd.f32 0.0, %v2897
      %v2899 = vpop.f32.mrf.mxu0
      %2900 = vmatprep.mubr.bf16.mxu0 0
      %2901 = vmatmul.mubr.bf16.gmra.mxu0 %v2805
      %v2902 = vpop.f32.mrf.mxu0
      %v2903 = vadd.f32 0.0, %v2902
      %v2904 = vpop.f32.mrf.mxu0
      %v2905 = vpop.f32.mrf.mxu0
      %v2906 = vadd.f32 0.0, %v2905
      %v2907 = vpop.f32.mrf.mxu0
      %2908 = vmatprep.mubr.bf16.mxu0 0
      %2909 = vmatmul.mubr.bf16.gmra.mxu0 %v2808
      %v2910 = vpop.f32.mrf.mxu0
      %v2911 = vadd.f32 0.0, %v2910
      %v2912 = vpop.f32.mrf.mxu0
      %v2913 = vpop.f32.mrf.mxu0
      %v2914 = vadd.f32 0.0, %v2913
      %v2915 = vpop.f32.mrf.mxu0
      %2916 = vmatprep.mubr.bf16.mxu0 0
      %2917 = vmatmul.mubr.bf16.gmra.mxu0 %v2811
      %v2918 = vpop.f32.mrf.mxu0
      %v2919 = vadd.f32 0.0, %v2918
      %v2920 = vpop.f32.mrf.mxu0
      %v2921 = vpop.f32.mrf.mxu0
      %v2922 = vadd.f32 0.0, %v2921
      %v2923 = vpop.f32.mrf.mxu0
      %2924 = vmatprep.mubr.bf16.mxu0 0
      %2925 = vmatmul.mubr.bf16.gmra.mxu0 %v2814
      %v2926 = vpop.f32.mrf.mxu0
      %v2927 = vadd.f32 0.0, %v2926
      %v2928 = vpop.f32.mrf.mxu0
      %v2929 = vpop.f32.mrf.mxu0
      %v2930 = vadd.f32 0.0, %v2929
      %v2931 = vpop.f32.mrf.mxu0
      %2932 = vmatprep.mubr.bf16.mxu0 0
      %2933 = vmatmul.mubr.bf16.gmra.mxu0 %v2817
      %v2934 = vpop.f32.mrf.mxu0
      %v2935 = vadd.f32 0.0, %v2934
      %v2936 = vpop.f32.mrf.mxu0
      %v2937 = vpop.f32.mrf.mxu0
      %v2938 = vadd.f32 0.0, %v2937
      %v2939 = vpop.f32.mrf.mxu0
      %2940 = vmatprep.mubr.bf16.mxu0 0
      %2941 = vmatmul.mubr.bf16.gmra.mxu0 %v2820
      %v2942 = vpop.f32.mrf.mxu0
      %v2943 = vadd.f32 0.0, %v2942
      %v2944 = vpop.f32.mrf.mxu0
      %v2945 = vpop.f32.mrf.mxu0
      %v2946 = vadd.f32 0.0, %v2945
      %v2947 = vpop.f32.mrf.mxu0
      %2948 = vmatprep.mubr.bf16.mxu0 0
      %2949 = vmatmul.mubr.bf16.gmra.mxu0 %v2823
      %v2950 = vpop.f32.mrf.mxu0
      %v2951 = vadd.f32 0.0, %v2950
      %v2952 = vpop.f32.mrf.mxu0
      %v2953 = vpop.f32.mrf.mxu0
      %v2954 = vadd.f32 0.0, %v2953
      %v2955 = vpop.f32.mrf.mxu0
      %2956 = vmatprep.mubr.bf16.mxu0 0
      %2957 = vmatmul.mubr.bf16.gmra.mxu0 %v2826
      %v2958 = vpop.f32.mrf.mxu0
      %v2959 = vadd.f32 0.0, %v2958
      %v2960 = vpop.f32.mrf.mxu0
      %v2961 = vpop.f32.mrf.mxu0
      %v2962 = vadd.f32 0.0, %v2961
      %v2963 = vpop.f32.mrf.mxu0
      %2964 = vmatprep.mubr.bf16.mxu0 0
      %2965 = vmatmul.mubr.bf16.gmra.mxu0 %v2829
      %v2966 = vpop.f32.mrf.mxu0
      %v2967 = vadd.f32 0.0, %v2966
      %v2968 = vpop.f32.mrf.mxu0
      %v2969 = vpop.f32.mrf.mxu0
      %v2970 = vadd.f32 0.0, %v2969
      %v2971 = vpop.f32.mrf.mxu0
      %2972 = vmatprep.mubr.bf16.mxu0 0
      %2973 = vmatmul.mubr.bf16.gmra.mxu0 %v2832
      %v2974 = vpop.f32.mrf.mxu0
      %v2975 = vadd.f32 0.0, %v2974
      %v2976 = vpop.f32.mrf.mxu0
      %v2977 = vpop.f32.mrf.mxu0
      %v2978 = vadd.f32 0.0, %v2977
      %v2979 = vpop.f32.mrf.mxu0
      %2980 = vmatprep.mubr.bf16.mxu0 0
      %2981 = vmatmul.mubr.bf16.gmra.mxu0 %v2835
      %v2982 = vpop.f32.mrf.mxu0
      %v2983 = vadd.f32 0.0, %v2982
      %v2984 = vpop.f32.mrf.mxu0
      %v2985 = vpop.f32.mrf.mxu0
      %v2986 = vadd.f32 0.0, %v2985
      %v2987 = vpop.f32.mrf.mxu0
      %2988 = vmatprep.mubr.bf16.mxu0 0
      %2989 = vmatmul.mubr.bf16.gmra.mxu0 %v2838
      %v2990 = vpop.f32.mrf.mxu0
      %v2991 = vadd.f32 0.0, %v2990
      %v2992 = vpop.f32.mrf.mxu0
      %v2993 = vpop.f32.mrf.mxu0
      %v2994 = vadd.f32 0.0, %v2993
      %v2995 = vpop.f32.mrf.mxu0
      %2996 = vmatprep.mubr.bf16.mxu0 0
      %2997 = vmatmul.mubr.bf16.gmra.mxu0 %v2841
      %v2998 = vpop.f32.mrf.mxu0
      %v2999 = vadd.f32 0.0, %v2998
      %v3000 = vpop.f32.mrf.mxu0
      %v3001 = vpop.f32.mrf.mxu0
      %v3002 = vadd.f32 0.0, %v3001
      %v3003 = vpop.f32.mrf.mxu0
      %3004 = vmatprep.mubr.bf16.mxu0 0
      %3005 = vmatmul.mubr.bf16.gmra.mxu0 %v2844
      %v3006 = vpop.f32.mrf.mxu0
      %v3007 = vadd.f32 0.0, %v3006
      %v3008 = vpop.f32.mrf.mxu0
      %v3009 = vpop.f32.mrf.mxu0
      %v3010 = vadd.f32 0.0, %v3009
      %v3011 = vpop.f32.mrf.mxu0
      %3012 = vmatprep.mubr.bf16.mxu0 0
      %3013 = vmatmul.mubr.bf16.gmra.mxu0 %v2847
      %v3014 = vpop.f32.mrf.mxu0
      %v3015 = vadd.f32 0.0, %v3014
      %v3016 = vpop.f32.mrf.mxu0
      %v3017 = vpop.f32.mrf.mxu0
      %v3018 = vadd.f32 0.0, %v3017
      %v3019 = vpop.f32.mrf.mxu0
      %3020 = vmatprep.mubr.bf16.mxu0 0
      %3021 = vmatmul.mubr.bf16.gmra.mxu0 %v2850
      %v3022 = vpop.f32.mrf.mxu0
      %v3023 = vadd.f32 0.0, %v3022
      %v3024 = vpop.f32.mrf.mxu0
      %v3025 = vpop.f32.mrf.mxu0
      %v3026 = vadd.f32 0.0, %v3025
      %v3027 = vpop.f32.mrf.mxu0
      %3028 = vdwg.mxu0
      %v3029 = vadd.f32 %v2699, %v2887
      %v3030 = vadd.f32 %v2700, %v2890
      %v3031 = vadd.f32 %v2701, %v2895
      %v3032 = vadd.f32 %v2702, %v2898
      %v3033 = vadd.f32 %v2703, %v2903
      %v3034 = vadd.f32 %v2704, %v2906
      %v3035 = vadd.f32 %v2705, %v2911
      %v3036 = vadd.f32 %v2706, %v2914
      %v3037 = vadd.f32 %v2707, %v2919
      %v3038 = vadd.f32 %v2708, %v2922
      %v3039 = vadd.f32 %v2709, %v2927
      %v3040 = vadd.f32 %v2710, %v2930
      %v3041 = vadd.f32 %v2711, %v2935
      %v3042 = vadd.f32 %v2712, %v2938
      %v3043 = vadd.f32 %v2713, %v2943
      %v3044 = vadd.f32 %v2714, %v2946
      %v3045 = vadd.f32 %v2715, %v2951
      %v3046 = vadd.f32 %v2716, %v2954
      %v3047 = vadd.f32 %v2717, %v2959
      %v3048 = vadd.f32 %v2718, %v2962
      %v3049 = vadd.f32 %v2719, %v2967
      %v3050 = vadd.f32 %v2720, %v2970
      %v3051 = vadd.f32 %v2721, %v2975
      %v3052 = vadd.f32 %v2722, %v2978
      %v3053 = vadd.f32 %v2723, %v2983
      %v3054 = vadd.f32 %v2724, %v2986
      %v3055 = vadd.f32 %v2725, %v2991
      %v3056 = vadd.f32 %v2726, %v2994
      %v3057 = vadd.f32 %v2727, %v2999
      %v3058 = vadd.f32 %v2728, %v3002
      %v3059 = vadd.f32 %v2729, %v3007
      %v3060 = vadd.f32 %v2730, %v3010
      %v3061 = vadd.f32 %v2731, %v3015
      %v3062 = vadd.f32 %v2732, %v3018
      %v3063 = vadd.f32 %v2733, %v3023
      %v3064 = vadd.f32 %v2734, %v3026
      %v3065 = vld [vmem:[#allocation2 + $0x26] sm:$0xff]
      %v3066 = vld [vmem:[#allocation2 + $0x2e] sm:$0xff]
      %v3067 = vld [vmem:[#allocation2 + $0x36] sm:$0xff]
      %v3068 = vld [vmem:[#allocation2 + $0x3e] sm:$0xff]
      %v3069 = vld [vmem:[#allocation2 + $0x46] sm:$0xff]
      %v3070 = vld [vmem:[#allocation2 + $0x4e] sm:$0xff]
      %v3071 = vld [vmem:[#allocation2 + $0x56] sm:$0xff]
      %v3072 = vld [vmem:[#allocation2 + $0x5e] sm:$0xff]
      %v3073 = vld [vmem:[#allocation2 + $0x66] sm:$0xff]
      %v3074 = vld [vmem:[#allocation2 + $0x6e] sm:$0xff]
      %v3075 = vld [vmem:[#allocation2 + $0x76] sm:$0xff]
      %v3076 = vld [vmem:[#allocation2 + $0x7e] sm:$0xff]
      %v3077 = vld [vmem:[#allocation2 + $0x86] sm:$0xff]
      %v3078 = vld [vmem:[#allocation2 + $0x8e] sm:$0xff]
      %v3079 = vld [vmem:[#allocation2 + $0x96] sm:$0xff]
      %v3080 = vld [vmem:[#allocation2 + $0x9e] sm:$0xff]
      %v3081 = vld [vmem:[#allocation2 + $0xa6] sm:$0xff]
      %v3082 = vld [vmem:[#allocation2 + $0xae] sm:$0xff]
      %v3083 = vld [vmem:[#allocation2 + $0xb6] sm:$0xff]
      %v3084 = vld [vmem:[#allocation2 + $0xbe] sm:$0xff]
      %v3085 = vld [vmem:[#allocation2 + $0xc6] sm:$0xff]
      %v3086 = vld [vmem:[#allocation2 + $0xce] sm:$0xff]
      %v3087 = vld [vmem:[#allocation2 + $0xd6] sm:$0xff]
      %v3088 = vld [vmem:[#allocation2 + $0xde] sm:$0xff]
      %v3089 = vld [vmem:[#allocation2 + $0xe6] sm:$0xff]
      %v3090 = vld [vmem:[#allocation2 + $0xee] sm:$0xff]
      %v3091 = vld [vmem:[#allocation2 + $0xf6] sm:$0xff]
      %v3092 = vld [vmem:[#allocation2 + $0xfe] sm:$0xff]
      %v3093 = vld [vmem:[#allocation2 + $0x106] sm:$0xff]
      %v3094 = vld [vmem:[#allocation2 + $0x10e] sm:$0xff]
      %v3095 = vld [vmem:[#allocation2 + $0x116] sm:$0xff]
      %v3096 = vld [vmem:[#allocation2 + $0x11e] sm:$0xff]
      %v3097 = vld [vmem:[#allocation2 + $0x126] sm:$0xff]
      %v3098 = vld [vmem:[#allocation2 + $0x12e] sm:$0xff]
      %v3099 = vld [vmem:[#allocation2 + $0x136] sm:$0xff]
      %v3100 = vld [vmem:[#allocation2 + $0x13e] sm:$0xff]
      %v3101 = vpack.c.bf16 %v3066, %v3065
      %v3102 = vpack.c.bf16 %v3068, %v3067
      %v3103 = vpack.c.bf16 %v3070, %v3069
      %v3104 = vpack.c.bf16 %v3072, %v3071
      %v3105 = vpack.c.bf16 %v3074, %v3073
      %v3106 = vpack.c.bf16 %v3076, %v3075
      %v3107 = vpack.c.bf16 %v3078, %v3077
      %v3108 = vpack.c.bf16 %v3080, %v3079
      %v3109 = vpack.c.bf16 %v3082, %v3081
      %v3110 = vpack.c.bf16 %v3084, %v3083
      %v3111 = vpack.c.bf16 %v3086, %v3085
      %v3112 = vpack.c.bf16 %v3088, %v3087
      %v3113 = vpack.c.bf16 %v3090, %v3089
      %v3114 = vpack.c.bf16 %v3092, %v3091
      %v3115 = vpack.c.bf16 %v3094, %v3093
      %v3116 = vpack.c.bf16 %v3096, %v3095
      %v3117 = vpack.c.bf16 %v3098, %v3097
      %v3118 = vpack.c.bf16 %v3100, %v3099
      %s3119 = scalar_lea.vmem %s2, 64
      %v3120 = vld [vmem:[%s3119] sm:$0xf]
      %v3121 = vld [vmem:[%s3119 + $0x4] sm:$0xf]
      %v3124 = vunpack.c.l.b16 %v3120
      %v3125 = vunpack.c.l.b16 %v3121
      %v3126 = vpack.c.b16 %v3125, %v3124
      %v3129 = vsel %vm353, %v3101, 0
      %v3132 = vsel %vm353, %v3102, 0
      %v3135 = vsel %vm353, %v3103, 0
      %v3138 = vsel %vm353, %v3104, 0
      %v3141 = vsel %vm353, %v3105, 0
      %v3144 = vsel %vm353, %v3106, 0
      %v3147 = vsel %vm353, %v3107, 0
      %v3150 = vsel %vm353, %v3108, 0
      %v3153 = vsel %vm353, %v3109, 0
      %v3156 = vsel %vm353, %v3110, 0
      %v3159 = vsel %vm353, %v3111, 0
      %v3162 = vsel %vm353, %v3112, 0
      %v3165 = vsel %vm353, %v3113, 0
      %v3168 = vsel %vm353, %v3114, 0
      %v3171 = vsel %vm353, %v3115, 0
      %v3174 = vsel %vm353, %v3116, 0
      %v3177 = vsel %vm353, %v3117, 0
      %v3180 = vsel %vm353, %v3118, 0
      %3182 = vmatprep.subr.bf16.mxu0 0
      %3183 = vmatpush1.bf16.msra.mxu0 0
      %3184 = vmatprep.subr.bf16.mxu0 0
      %3185 = vmatpush1.bf16.msra.mxu0 0
      %3186 = vmatprep.subr.bf16.mxu0 0
      %3187 = vmatpush1.bf16.msra.mxu0 0
      %3188 = vmatprep.subr.bf16.mxu0 0
      %3189 = vmatpush1.bf16.msra.mxu0 0
      %3190 = vmatprep.subr.bf16.mxu0 0
      %3191 = vmatpush1.bf16.msra.mxu0 0
      %3192 = vmatprep.subr.bf16.mxu0 0
      %3193 = vmatpush1.bf16.msra.mxu0 0
      %3194 = vmatprep.subr.bf16.mxu0 0
      %3195 = vmatpush1.bf16.msra.mxu0 0
      %3196 = vmatprep.subr.bf16.mxu0 0
      %3197 = vmatpush1.bf16.msra.mxu0 %v3126
      %3198 = vmatprep.subr.bf16.mxu0 0
      %3199 = vmatpush2.bf16.msra.mxu0 0
      %3200 = vmatprep.subr.bf16.mxu0 0
      %3201 = vmatpush2.bf16.msra.mxu0 0
      %3202 = vmatprep.subr.bf16.mxu0 0
      %3203 = vmatpush2.bf16.msra.mxu0 0
      %3204 = vmatprep.subr.bf16.mxu0 0
      %3205 = vmatpush2.bf16.msra.mxu0 0
      %3206 = vmatprep.subr.bf16.mxu0 0
      %3207 = vmatpush2.bf16.msra.mxu0 0
      %3208 = vmatprep.subr.bf16.mxu0 0
      %3209 = vmatpush2.bf16.msra.mxu0 0
      %3210 = vmatprep.subr.bf16.mxu0 0
      %3211 = vmatpush2.bf16.msra.mxu0 0
      %3212 = vmatprep.subr.bf16.mxu0 0
      %3213 = vmatpush2.bf16.msra.mxu0 0
      %3214 = vmatprep.mubr.bf16.mxu0 0
      %3215 = vmatmul.mubr.bf16.gmra.mxu0 %v3129
      %v3216 = vpop.f32.mrf.mxu0
      %v3217 = vadd.f32 0.0, %v3216
      %v3218 = vpop.f32.mrf.mxu0
      %v3219 = vpop.f32.mrf.mxu0
      %v3220 = vadd.f32 0.0, %v3219
      %v3221 = vpop.f32.mrf.mxu0
      %3222 = vmatprep.mubr.bf16.mxu0 0
      %3223 = vmatmul.mubr.bf16.gmra.mxu0 %v3132
      %v3224 = vpop.f32.mrf.mxu0
      %v3225 = vadd.f32 0.0, %v3224
      %v3226 = vpop.f32.mrf.mxu0
      %v3227 = vpop.f32.mrf.mxu0
      %v3228 = vadd.f32 0.0, %v3227
      %v3229 = vpop.f32.mrf.mxu0
      %3230 = vmatprep.mubr.bf16.mxu0 0
      %3231 = vmatmul.mubr.bf16.gmra.mxu0 %v3135
      %v3232 = vpop.f32.mrf.mxu0
      %v3233 = vadd.f32 0.0, %v3232
      %v3234 = vpop.f32.mrf.mxu0
      %v3235 = vpop.f32.mrf.mxu0
      %v3236 = vadd.f32 0.0, %v3235
      %v3237 = vpop.f32.mrf.mxu0
      %3238 = vmatprep.mubr.bf16.mxu0 0
      %3239 = vmatmul.mubr.bf16.gmra.mxu0 %v3138
      %v3240 = vpop.f32.mrf.mxu0
      %v3241 = vadd.f32 0.0, %v3240
      %v3242 = vpop.f32.mrf.mxu0
      %v3243 = vpop.f32.mrf.mxu0
      %v3244 = vadd.f32 0.0, %v3243
      %v3245 = vpop.f32.mrf.mxu0
      %3246 = vmatprep.mubr.bf16.mxu0 0
      %3247 = vmatmul.mubr.bf16.gmra.mxu0 %v3141
      %v3248 = vpop.f32.mrf.mxu0
      %v3249 = vadd.f32 0.0, %v3248
      %v3250 = vpop.f32.mrf.mxu0
      %v3251 = vpop.f32.mrf.mxu0
      %v3252 = vadd.f32 0.0, %v3251
      %v3253 = vpop.f32.mrf.mxu0
      %3254 = vmatprep.mubr.bf16.mxu0 0
      %3255 = vmatmul.mubr.bf16.gmra.mxu0 %v3144
      %v3256 = vpop.f32.mrf.mxu0
      %v3257 = vadd.f32 0.0, %v3256
      %v3258 = vpop.f32.mrf.mxu0
      %v3259 = vpop.f32.mrf.mxu0
      %v3260 = vadd.f32 0.0, %v3259
      %v3261 = vpop.f32.mrf.mxu0
      %3262 = vmatprep.mubr.bf16.mxu0 0
      %3263 = vmatmul.mubr.bf16.gmra.mxu0 %v3147
      %v3264 = vpop.f32.mrf.mxu0
      %v3265 = vadd.f32 0.0, %v3264
      %v3266 = vpop.f32.mrf.mxu0
      %v3267 = vpop.f32.mrf.mxu0
      %v3268 = vadd.f32 0.0, %v3267
      %v3269 = vpop.f32.mrf.mxu0
      %3270 = vmatprep.mubr.bf16.mxu0 0
      %3271 = vmatmul.mubr.bf16.gmra.mxu0 %v3150
      %v3272 = vpop.f32.mrf.mxu0
      %v3273 = vadd.f32 0.0, %v3272
      %v3274 = vpop.f32.mrf.mxu0
      %v3275 = vpop.f32.mrf.mxu0
      %v3276 = vadd.f32 0.0, %v3275
      %v3277 = vpop.f32.mrf.mxu0
      %3278 = vmatprep.mubr.bf16.mxu0 0
      %3279 = vmatmul.mubr.bf16.gmra.mxu0 %v3153
      %v3280 = vpop.f32.mrf.mxu0
      %v3281 = vadd.f32 0.0, %v3280
      %v3282 = vpop.f32.mrf.mxu0
      %v3283 = vpop.f32.mrf.mxu0
      %v3284 = vadd.f32 0.0, %v3283
      %v3285 = vpop.f32.mrf.mxu0
      %3286 = vmatprep.mubr.bf16.mxu0 0
      %3287 = vmatmul.mubr.bf16.gmra.mxu0 %v3156
      %v3288 = vpop.f32.mrf.mxu0
      %v3289 = vadd.f32 0.0, %v3288
      %v3290 = vpop.f32.mrf.mxu0
      %v3291 = vpop.f32.mrf.mxu0
      %v3292 = vadd.f32 0.0, %v3291
      %v3293 = vpop.f32.mrf.mxu0
      %3294 = vmatprep.mubr.bf16.mxu0 0
      %3295 = vmatmul.mubr.bf16.gmra.mxu0 %v3159
      %v3296 = vpop.f32.mrf.mxu0
      %v3297 = vadd.f32 0.0, %v3296
      %v3298 = vpop.f32.mrf.mxu0
      %v3299 = vpop.f32.mrf.mxu0
      %v3300 = vadd.f32 0.0, %v3299
      %v3301 = vpop.f32.mrf.mxu0
      %3302 = vmatprep.mubr.bf16.mxu0 0
      %3303 = vmatmul.mubr.bf16.gmra.mxu0 %v3162
      %v3304 = vpop.f32.mrf.mxu0
      %v3305 = vadd.f32 0.0, %v3304
      %v3306 = vpop.f32.mrf.mxu0
      %v3307 = vpop.f32.mrf.mxu0
      %v3308 = vadd.f32 0.0, %v3307
      %v3309 = vpop.f32.mrf.mxu0
      %3310 = vmatprep.mubr.bf16.mxu0 0
      %3311 = vmatmul.mubr.bf16.gmra.mxu0 %v3165
      %v3312 = vpop.f32.mrf.mxu0
      %v3313 = vadd.f32 0.0, %v3312
      %v3314 = vpop.f32.mrf.mxu0
      %v3315 = vpop.f32.mrf.mxu0
      %v3316 = vadd.f32 0.0, %v3315
      %v3317 = vpop.f32.mrf.mxu0
      %3318 = vmatprep.mubr.bf16.mxu0 0
      %3319 = vmatmul.mubr.bf16.gmra.mxu0 %v3168
      %v3320 = vpop.f32.mrf.mxu0
      %v3321 = vadd.f32 0.0, %v3320
      %v3322 = vpop.f32.mrf.mxu0
      %v3323 = vpop.f32.mrf.mxu0
      %v3324 = vadd.f32 0.0, %v3323
      %v3325 = vpop.f32.mrf.mxu0
      %3326 = vmatprep.mubr.bf16.mxu0 0
      %3327 = vmatmul.mubr.bf16.gmra.mxu0 %v3171
      %v3328 = vpop.f32.mrf.mxu0
      %v3329 = vadd.f32 0.0, %v3328
      %v3330 = vpop.f32.mrf.mxu0
      %v3331 = vpop.f32.mrf.mxu0
      %v3332 = vadd.f32 0.0, %v3331
      %v3333 = vpop.f32.mrf.mxu0
      %3334 = vmatprep.mubr.bf16.mxu0 0
      %3335 = vmatmul.mubr.bf16.gmra.mxu0 %v3174
      %v3336 = vpop.f32.mrf.mxu0
      %v3337 = vadd.f32 0.0, %v3336
      %v3338 = vpop.f32.mrf.mxu0
      %v3339 = vpop.f32.mrf.mxu0
      %v3340 = vadd.f32 0.0, %v3339
      %v3341 = vpop.f32.mrf.mxu0
      %3342 = vmatprep.mubr.bf16.mxu0 0
      %3343 = vmatmul.mubr.bf16.gmra.mxu0 %v3177
      %v3344 = vpop.f32.mrf.mxu0
      %v3345 = vadd.f32 0.0, %v3344
      %v3346 = vpop.f32.mrf.mxu0
      %v3347 = vpop.f32.mrf.mxu0
      %v3348 = vadd.f32 0.0, %v3347
      %v3349 = vpop.f32.mrf.mxu0
      %3350 = vmatprep.mubr.bf16.mxu0 0
      %3351 = vmatmul.mubr.bf16.gmra.mxu0 %v3180
      %v3352 = vpop.f32.mrf.mxu0
      %v3353 = vadd.f32 0.0, %v3352
      %v3354 = vpop.f32.mrf.mxu0
      %v3355 = vpop.f32.mrf.mxu0
      %v3356 = vadd.f32 0.0, %v3355
      %v3357 = vpop.f32.mrf.mxu0
      %3358 = vdwg.mxu0
      %v3359 = vadd.f32 %v3029, %v3217
      %v3360 = vadd.f32 %v3030, %v3220
      %v3361 = vadd.f32 %v3031, %v3225
      %v3362 = vadd.f32 %v3032, %v3228
      %v3363 = vadd.f32 %v3033, %v3233
      %v3364 = vadd.f32 %v3034, %v3236
      %v3365 = vadd.f32 %v3035, %v3241
      %v3366 = vadd.f32 %v3036, %v3244
      %v3367 = vadd.f32 %v3037, %v3249
      %v3368 = vadd.f32 %v3038, %v3252
      %v3369 = vadd.f32 %v3039, %v3257
      %v3370 = vadd.f32 %v3040, %v3260
      %v3371 = vadd.f32 %v3041, %v3265
      %v3372 = vadd.f32 %v3042, %v3268
      %v3373 = vadd.f32 %v3043, %v3273
      %v3374 = vadd.f32 %v3044, %v3276
      %v3375 = vadd.f32 %v3045, %v3281
      %v3376 = vadd.f32 %v3046, %v3284
      %v3377 = vadd.f32 %v3047, %v3289
      %v3378 = vadd.f32 %v3048, %v3292
      %v3379 = vadd.f32 %v3049, %v3297
      %v3380 = vadd.f32 %v3050, %v3300
      %v3381 = vadd.f32 %v3051, %v3305
      %v3382 = vadd.f32 %v3052, %v3308
      %v3383 = vadd.f32 %v3053, %v3313
      %v3384 = vadd.f32 %v3054, %v3316
      %v3385 = vadd.f32 %v3055, %v3321
      %v3386 = vadd.f32 %v3056, %v3324
      %v3387 = vadd.f32 %v3057, %v3329
      %v3388 = vadd.f32 %v3058, %v3332
      %v3389 = vadd.f32 %v3059, %v3337
      %v3390 = vadd.f32 %v3060, %v3340
      %v3391 = vadd.f32 %v3061, %v3345
      %v3392 = vadd.f32 %v3062, %v3348
      %v3393 = vadd.f32 %v3063, %v3353
      %v3394 = vadd.f32 %v3064, %v3356
      %v3395 = vld [vmem:[%s3] sm:$0x1]
      %v3397 = vlaneseq
      %v3398 = vshrl.u32 %v3397, 7
      %v3399 = vsub.s32 0, %v3398
      %v3400 = vrot.slane %v3395, %v3399
      %v3402 = vadd.f32 %v3359, %v3400
      %v3403 = vadd.f32 %v3360, %v3400
      %v3404 = vadd.f32 %v3361, %v3400
      %v3405 = vadd.f32 %v3362, %v3400
      %v3406 = vadd.f32 %v3363, %v3400
      %v3407 = vadd.f32 %v3364, %v3400
      %v3408 = vadd.f32 %v3365, %v3400
      %v3409 = vadd.f32 %v3366, %v3400
      %v3410 = vadd.f32 %v3367, %v3400
      %v3411 = vadd.f32 %v3368, %v3400
      %v3412 = vadd.f32 %v3369, %v3400
      %v3413 = vadd.f32 %v3370, %v3400
      %v3414 = vadd.f32 %v3371, %v3400
      %v3415 = vadd.f32 %v3372, %v3400
      %v3416 = vadd.f32 %v3373, %v3400
      %v3417 = vadd.f32 %v3374, %v3400
      %v3418 = vadd.f32 %v3375, %v3400
      %v3419 = vadd.f32 %v3376, %v3400
      %v3420 = vadd.f32 %v3377, %v3400
      %v3421 = vadd.f32 %v3378, %v3400
      %v3422 = vadd.f32 %v3379, %v3400
      %v3423 = vadd.f32 %v3380, %v3400
      %v3424 = vadd.f32 %v3381, %v3400
      %v3425 = vadd.f32 %v3382, %v3400
      %v3426 = vadd.f32 %v3383, %v3400
      %v3427 = vadd.f32 %v3384, %v3400
      %v3428 = vadd.f32 %v3385, %v3400
      %v3429 = vadd.f32 %v3386, %v3400
      %v3430 = vadd.f32 %v3387, %v3400
      %v3431 = vadd.f32 %v3388, %v3400
      %v3432 = vadd.f32 %v3389, %v3400
      %v3433 = vadd.f32 %v3390, %v3400
      %v3434 = vadd.f32 %v3391, %v3400
      %v3435 = vadd.f32 %v3392, %v3400
      %v3436 = vadd.f32 %v3393, %v3400
      %v3437 = vadd.f32 %v3394, %v3400
      %v3438 = vmax.f32 %v3402, 0.0
      %v3439 = vmax.f32 %v3403, 0.0
      %v3440 = vmax.f32 %v3404, 0.0
      %v3441 = vmax.f32 %v3405, 0.0
      %v3442 = vmax.f32 %v3406, 0.0
      %v3443 = vmax.f32 %v3407, 0.0
      %v3444 = vmax.f32 %v3408, 0.0
      %v3445 = vmax.f32 %v3409, 0.0
      %v3446 = vmax.f32 %v3410, 0.0
      %v3447 = vmax.f32 %v3411, 0.0
      %v3448 = vmax.f32 %v3412, 0.0
      %v3449 = vmax.f32 %v3413, 0.0
      %v3450 = vmax.f32 %v3414, 0.0
      %v3451 = vmax.f32 %v3415, 0.0
      %v3452 = vmax.f32 %v3416, 0.0
      %v3453 = vmax.f32 %v3417, 0.0
      %v3454 = vmax.f32 %v3418, 0.0
      %v3455 = vmax.f32 %v3419, 0.0
      %v3456 = vmax.f32 %v3420, 0.0
      %v3457 = vmax.f32 %v3421, 0.0
      %v3458 = vmax.f32 %v3422, 0.0
      %v3459 = vmax.f32 %v3423, 0.0
      %v3460 = vmax.f32 %v3424, 0.0
      %v3461 = vmax.f32 %v3425, 0.0
      %v3462 = vmax.f32 %v3426, 0.0
      %v3463 = vmax.f32 %v3427, 0.0
      %v3464 = vmax.f32 %v3428, 0.0
      %v3465 = vmax.f32 %v3429, 0.0
      %v3466 = vmax.f32 %v3430, 0.0
      %v3467 = vmax.f32 %v3431, 0.0
      %v3468 = vmax.f32 %v3432, 0.0
      %v3469 = vmax.f32 %v3433, 0.0
      %v3470 = vmax.f32 %v3434, 0.0
      %v3471 = vmax.f32 %v3435, 0.0
      %v3472 = vmax.f32 %v3436, 0.0
      %v3473 = vmax.f32 %v3437, 0.0
      %3474 = vst [vmem:[%s278] sm:$0xff] %v3438
      %3475 = vst [vmem:[%s278 + $0x8] sm:$0xff] %v3439
      %3476 = vst [vmem:[%s278 + $0x10] sm:$0xff] %v3440
      %3477 = vst [vmem:[%s278 + $0x18] sm:$0xff] %v3441
      %3478 = vst [vmem:[%s278 + $0x20] sm:$0xff] %v3442
      %3479 = vst [vmem:[%s278 + $0x28] sm:$0xff] %v3443
      %3480 = vst [vmem:[%s278 + $0x30] sm:$0xff] %v3444
      %3481 = vst [vmem:[%s278 + $0x38] sm:$0xff] %v3445
      %3482 = vst [vmem:[%s278 + $0x40] sm:$0xff] %v3446
      %3483 = vst [vmem:[%s278 + $0x48] sm:$0xff] %v3447
      %3484 = vst [vmem:[%s278 + $0x50] sm:$0xff] %v3448
      %3485 = vst [vmem:[%s278 + $0x58] sm:$0xff] %v3449
      %3486 = vst [vmem:[%s278 + $0x60] sm:$0xff] %v3450
      %3487 = vst [vmem:[%s278 + $0x68] sm:$0xff] %v3451
      %3488 = vst [vmem:[%s278 + $0x70] sm:$0xff] %v3452
      %3489 = vst [vmem:[%s278 + $0x78] sm:$0xff] %v3453
      %3490 = vst [vmem:[%s278 + $0x80] sm:$0xff] %v3454
      %3491 = vst [vmem:[%s278 + $0x88] sm:$0xff] %v3455
      %3492 = vst [vmem:[%s278 + $0x90] sm:$0xff] %v3456
      %3493 = vst [vmem:[%s278 + $0x98] sm:$0xff] %v3457
      %3494 = vst [vmem:[%s278 + $0xa0] sm:$0xff] %v3458
      %3495 = vst [vmem:[%s278 + $0xa8] sm:$0xff] %v3459
      %3496 = vst [vmem:[%s278 + $0xb0] sm:$0xff] %v3460
      %3497 = vst [vmem:[%s278 + $0xb8] sm:$0xff] %v3461
      %3498 = vst [vmem:[%s278 + $0xc0] sm:$0xff] %v3462
      %3499 = vst [vmem:[%s278 + $0xc8] sm:$0xff] %v3463
      %3500 = vst [vmem:[%s278 + $0xd0] sm:$0xff] %v3464
      %3501 = vst [vmem:[%s278 + $0xd8] sm:$0xff] %v3465
      %3502 = vst [vmem:[%s278 + $0xe0] sm:$0xff] %v3466
      %3503 = vst [vmem:[%s278 + $0xe8] sm:$0xff] %v3467
      %3504 = vst [vmem:[%s278 + $0xf0] sm:$0xff] %v3468
      %3505 = vst [vmem:[%s278 + $0xf8] sm:$0xff] %v3469
      %3506 = vst [vmem:[%s278 + $0x100] sm:$0xff] %v3470
      %3507 = vst [vmem:[%s278 + $0x108] sm:$0xff] %v3471
      %3508 = vst [vmem:[%s278 + $0x110] sm:$0xff] %v3472
      %3509 = vst [vmem:[%s278 + $0x118] sm:$0xff] %v3473
      %s3510 = smul.u32 36, %s20
      %p3511 = scmp.lt.s32.totalorder %s19, 1
      %s3512 = scalar_select %p3511, %s19, 1
      %p3513 = scmp.lt.s32.totalorder %s3510, 35
      %s3514 = scalar_select %p3513, %s3510, 35
      %s3515 = smul.addr %s3512, 36
      %s3516 = sadd.s32 %s3514, %s3515
      %s3517 = smul.addr %s3516, 8
      %s3518 = scalar_lea.vmem %s4, %s3517
      // Predicated region
      $region37: #{basic_block_2d.1} parent=35 // pred_check
        %p3519 = pneg %p147
      $region38: #{basic_block_2d.1} parent=35 // pred_check_branch
        %3521 = sbr.rel (%p3519) target = $region40
      $region39: #{basic_block_2d.1} parent=35 // pred_region
        %s3522 = smul.u32 36, %s20
      $region40: #{basic_block_2d.1} parent=35 // pred_fallthru
        _
    $region36: #{basic_block_2d.1} parent=5 // pred_fallthru
      _
    %p3523 = scmp.le.s32.totalorder 2, %s10
    // Predicated region
    $region41: #{basic_block_2d.1} parent=5 // pred_check
      %p3524 = pneg %p3523
    $region42: #{basic_block_2d.1} parent=5 // pred_check_branch
      %3526 = sbr.rel (%p3524) target = $region44
    $region43: #{basic_block_2d.1} parent=5 // pred_region
      %s3527 = ssub.s32 %s10, 2
      // Predicated region
      $region45: #{basic_block_2d.1} parent=43 // pred_check
        %p3528 = pneg %p153
      $region46: #{basic_block_2d.1} parent=43 // pred_check_branch
        %3530 = sbr.rel (%p3528) target = $region48
      $region47: #{basic_block_2d.1} parent=43 // pred_region
        %s3531 = smul.u32 36, %s22
        %p3532 = scmp.lt.s32.totalorder %s21, 1
        %s3533 = scalar_select %p3532, %s21, 1
        %p3534 = scmp.lt.s32.totalorder %s3531, 35
        %s3535 = scalar_select %p3534, %s3531, 35
        %s3536 = smul.addr %s3533, 36
        %s3537 = sadd.s32 %s3535, %s3536
        %s3538 = smul.addr %s3537, 8
        %s3539 = scalar_lea.vmem %s4, %s3538
      $region48: #{basic_block_2d.1} parent=43 // pred_fallthru
        _
    $region44: #{basic_block_2d.1} parent=5 // pred_fallthru
      _
  $region6: #{basic_block_2d.1} parent=0 // loop_footer
    %s14 = sadd.s32 1, %s10
  $region7: #{basic_block_2d.1} parent=0 // loop_footer_branch
    %9 = sbr.rel target = $region3
  $region8: #{basic_block_2d.1} parent=0 // loop_exit
    _

</llo_original>
